<compile_context>
chip_gen: v5e
topology: v5e:2x2
jax: 0.10.0
libtpu: 0.0.40
codegen_flags: <defaults>
</compile_context>

<pallas_src>
import math
import functools
from dataclasses import dataclass

import jax
import jax.numpy as jnp
from jax import lax
from jax.experimental import pallas as pl
from jax.experimental.pallas import tpu as pltpu


VMEM_LIMIT_BYTES = 32 * 1024 * 1024  # explicit scoped-VMEM budget (safe on v5e/v6e/v7x)


@dataclass(frozen=True)
class GLMConfig:
    num_layers: int = 2
    hidden_size: int = 128
    ffn_hidden_size: int = 256
    num_attention_heads: int = 4
    kv_channels: int = 32                 # head_dim
    multi_query_group_num: int = 2
    layernorm_epsilon: float = 1e-5
    apply_query_key_layer_scaling: bool = True
    window_size: int = 8
    # add_bias_linear=False, add_qkv_bias=True, rmsnorm=True, post_layer_norm=True,
    # apply_residual_connection_post_layernorm=False, fp32_residual_connection=False


def _mosaic(*sem):
    return pltpu.CompilerParams(dimension_semantics=sem,
                                vmem_limit_bytes=VMEM_LIMIT_BYTES)


def _row_block(m, cap=256):
    return m if m <= cap else cap


# ----------------------------- Pallas kernels ------------------------------

def _rmsnorm_kernel(x_ref, w_ref, o_ref, *, eps):
    x = x_ref[...].astype(jnp.float32)
    var = jnp.mean(x * x, axis=-1, keepdims=True)
    o_ref[...] = (w_ref[...] * (x * lax.rsqrt(var + eps))).astype(o_ref.dtype)


def _ln_qkv_kernel(x_ref, lnw_ref, w_ref, b_ref, o_ref, *, eps):
    """Fused input-RMSNorm + QKV projection (+ qkv bias).  bf16 matmul, f32 accum."""
    x = x_ref[...].astype(jnp.float32)
    var = jnp.mean(x * x, axis=-1, keepdims=True)
    normed = (x * lax.rsqrt(var + eps)) * lnw_ref[...]
    acc = jnp.dot(normed.astype(jnp.bfloat16), w_ref[...],
                  preferred_element_type=jnp.float32)
    o_ref[...] = (acc + b_ref[...]).astype(o_ref.dtype)


def _dense_residual_kernel(x_ref, w_ref, res_ref, o_ref):
    """Fused attention-output projection (no bias -> no zero-bias input) + residual add."""
    acc = jnp.dot(x_ref[...], w_ref[...], preferred_element_type=jnp.float32)
    o_ref[...] = (res_ref[...].astype(jnp.float32) + acc).astype(o_ref.dtype)


def _ln_mlp_residual_kernel(x_ref, lnw_ref, wg_ref, wu_ref, wd_ref, o_ref, *, eps):
    """Fused post-attention RMSNorm + SwiGLU MLP (split gate/up weights) + residual add."""
    x = x_ref[...].astype(jnp.float32)
    var = jnp.mean(x * x, axis=-1, keepdims=True)
    normed = ((x * lax.rsqrt(var + eps)) * lnw_ref[...]).astype(jnp.bfloat16)
    gate = jnp.dot(normed, wg_ref[...], preferred_element_type=jnp.float32)
    up = jnp.dot(normed, wu_ref[...], preferred_element_type=jnp.float32)
    act = (gate * jax.nn.sigmoid(gate)) * up          # silu(gate) * up, f32 epilogue
    down = jnp.dot(act.astype(jnp.bfloat16), wd_ref[...],
                   preferred_element_type=jnp.float32)
    o_ref[...] = (x + down).astype(o_ref.dtype)


def _mqa_attention_body(q, k, v, masked, *, num_heads, num_groups, head_dim):
    """q: [rows, np*hn] f32 (already scaled); k, v: [kv_rows, ng*hn] bf16 (grouped);
    masked: [rows, kv_rows] bool (True = masked).  Returns context [rows, np*hn] f32."""
    rep = num_heads // num_groups
    outs = []
    for h in range(num_heads):               # TODO(synk): head-block for large head counts
        g = h // rep                         # multi-query head -> KV group (no repeat)
        qh = q[:, h * head_dim:(h + 1) * head_dim].astype(jnp.bfloat16)
        kg = k[:, g * head_dim:(g + 1) * head_dim]
        vg = v[:, g * head_dim:(g + 1) * head_dim]
        s = lax.dot_general(qh, kg, (((1,), (1,)), ((), ())),
                            preferred_element_type=jnp.float32)      # q @ k^T, f32
        s = jnp.where(masked, -1e30, s)
        p = jnp.exp(s - jnp.max(s, axis=-1, keepdims=True))
        p = p * pl.reciprocal(jnp.sum(p, axis=-1, keepdims=True), approx=True)
        outs.append(jnp.dot(p.astype(jnp.bfloat16), vg,
                            preferred_element_type=jnp.float32))
    return jnp.concatenate(outs, axis=-1)    # lane-dense [rows, np*hn]


def _attn_window_kernel(q_ref, kp_ref, kc_ref, vp_ref, vc_ref, o_ref, *,
                        num_heads, num_groups, head_dim, window_size, tq, scale):
    """One (batch, q-block) step: only the previous + current KV blocks are loaded."""
    qi = pl.program_id(1)
    q = q_ref[0].astype(jnp.float32) * scale                  # [tq, np*hn], scale folded into q
    k = jnp.concatenate([kp_ref[0], kc_ref[0]], axis=0)       # [2*tq, ng*hn] bf16
    v = jnp.concatenate([vp_ref[0], vc_ref[0]], axis=0)
    # absolute positions: prev block starts at (qi-1)*tq (negative => duplicated block, masked)
    q_abs = qi * tq + lax.broadcasted_iota(jnp.int32, (tq, 2 * tq), 0)
    k_abs = (qi - 1) * tq + lax.broadcasted_iota(jnp.int32, (tq, 2 * tq), 1)
    masked = (k_abs < q_abs - window_size + 1) | (k_abs > q_abs) | (k_abs < 0)
    ctx = _mqa_attention_body(q, k, v, masked, num_heads=num_heads,
                              num_groups=num_groups, head_dim=head_dim)
    o_ref[0] = ctx.astype(o_ref.dtype)


def _attn_dense_kernel(*refs, num_heads, num_groups, head_dim, window_size, scale, has_mask):
    """Fallback: dense scores per batch, used when a user padding mask is supplied
    (or the sequence does not tile by the window block)."""
    if has_mask:
        q_ref, k_ref, v_ref, mask_ref, o_ref = refs
    else:
        q_ref, k_ref, v_ref, o_ref = refs
        mask_ref = None
    q = q_ref[0].astype(jnp.float32) * scale                  # [sq, np*hn]
    k = k_ref[0]                                              # [sk, ng*hn] bf16
    v = v_ref[0]
    sq, sk = q.shape[0], k.shape[0]
    qi = lax.broadcasted_iota(jnp.int32, (sq, sk), 0)
    ki = lax.broadcasted_iota(jnp.int32, (sq, sk), 1)
    masked = (ki < qi - window_size + 1) | (ki > qi)          # sliding-window causal
    if mask_ref is not None:
        masked = masked | (mask_ref[0] > 0.5)                 # single combined mask (no -2e30)
    ctx = _mqa_attention_body(q, k, v, masked, num_heads=num_heads,
                              num_groups=num_groups, head_dim=head_dim)
    o_ref[0] = ctx.astype(o_ref.dtype)


# ------------------------------ kernel wrappers -----------------------------

def rmsnorm(x2d, w, eps):
    m, h = x2d.shape
    bm = _row_block(m)
    return pl.pallas_call(
        functools.partial(_rmsnorm_kernel, eps=eps),
        out_shape=jax.ShapeDtypeStruct((m, h), x2d.dtype),
        grid=(pl.cdiv(m, bm),),
        in_specs=[pl.BlockSpec((bm, h), lambda i: (i, 0)),
                  pl.BlockSpec((1, h), lambda i: (0, 0))],
        out_specs=pl.BlockSpec((bm, h), lambda i: (i, 0)),
        compiler_params=_mosaic("parallel"),
    )(x2d, w)


def fused_rmsnorm_qkv(x2d, ln_w, w, bias, eps):
    m, h = x2d.shape
    n = w.shape[1]
    bm = _row_block(m)
    return pl.pallas_call(
        functools.partial(_ln_qkv_kernel, eps=eps),
        out_shape=jax.ShapeDtypeStruct((m, n), jnp.float32),
        grid=(pl.cdiv(m, bm),),
        in_specs=[pl.BlockSpec((bm, h), lambda i: (i, 0)),
                  pl.BlockSpec((1, h), lambda i: (0, 0)),
                  pl.BlockSpec((h, n), lambda i: (0, 0)),
                  pl.BlockSpec((1, n), lambda i: (0, 0))],
        out_specs=pl.BlockSpec((bm, n), lambda i: (i, 0)),
        compiler_params=_mosaic("parallel"),
    )(x2d, ln_w, w, bias)


def fused_dense_residual(ctx2d, w, residual2d):
    m, p = ctx2d.shape
    h = w.shape[1]
    bm = _row_block(m)
    return pl.pallas_call(
        _dense_residual_kernel,
        out_shape=jax.ShapeDtypeStruct((m, h), jnp.float32),
        grid=(pl.cdiv(m, bm),),
        in_specs=[pl.BlockSpec((bm, p), lambda i: (i, 0)),
                  pl.BlockSpec((p, h), lambda i: (0, 0)),
                  pl.BlockSpec((bm, h), lambda i: (i, 0))],
        out_specs=pl.BlockSpec((bm, h), lambda i: (i, 0)),
        compiler_params=_mosaic("parallel"),
    )(ctx2d, w, residual2d)


def fused_ln_mlp_residual(x2d, ln_w, wg, wu, wd, eps):
    m, h = x2d.shape
    ffn = wg.shape[1]
    bm = _row_block(m)
    return pl.pallas_call(
        functools.partial(_ln_mlp_residual_kernel, eps=eps),
        out_shape=jax.ShapeDtypeStruct((m, h), jnp.float32),
        grid=(pl.cdiv(m, bm),),
        in_specs=[pl.BlockSpec((bm, h), lambda i: (i, 0)),
                  pl.BlockSpec((1, h), lambda i: (0, 0)),
                  pl.BlockSpec((h, ffn), lambda i: (0, 0)),
                  pl.BlockSpec((h, ffn), lambda i: (0, 0)),
                  pl.BlockSpec((ffn, h), lambda i: (0, 0))],
        out_specs=pl.BlockSpec((bm, h), lambda i: (i, 0)),
        compiler_params=_mosaic("parallel"),
    )(x2d, ln_w, wg, wu, wd)


def sliding_window_attention(q, k, v, mask, *, num_heads, num_groups, head_dim,
                             window_size, scale):
    """q: [b, sq, np*hn] bf16; k, v: [b, sq, ng*hn] bf16 (grouped KV, not repeated);
    mask: [b, sq, sq] float (1.0 = masked) or None.  Returns [b, sq, np*hn] bf16."""
    b, sq, qc = q.shape
    kc = k.shape[-1]
    out_shape = jax.ShapeDtypeStruct((b, sq, qc), jnp.bfloat16)

    # window-blocked path: q-block of tq rows only touches KV blocks (qi-1, qi)
    tq = max(8, -(-max(window_size - 1, 1) // 8) * 8)
    if mask is None and sq % tq == 0 and window_size <= tq + 1:
        nq = sq // tq
        kernel = functools.partial(
            _attn_window_kernel, num_heads=num_heads, num_groups=num_groups,
            head_dim=head_dim, window_size=window_size, tq=tq, scale=scale)
        cur = lambda bi, qi: (bi, qi, 0)
        prev = lambda bi, qi: (bi, jnp.maximum(qi - 1, 0), 0)
        return pl.pallas_call(
            kernel,
            out_shape=out_shape,
            grid=(b, nq),
            in_specs=[pl.BlockSpec((1, tq, qc), cur),     # q block
                      pl.BlockSpec((1, tq, kc), prev),    # K previous block
                      pl.BlockSpec((1, tq, kc), cur),     # K current block
                      pl.BlockSpec((1, tq, kc), prev),    # V previous block
                      pl.BlockSpec((1, tq, kc), cur)],    # V current block
            out_specs=pl.BlockSpec((1, tq, qc), cur),
            compiler_params=_mosaic("parallel", "parallel"),
        )(q, k, k, v, v)

    # fallback: dense scores per batch (user padding mask and/or ragged seq)
    has_mask = mask is not None
    kernel = functools.partial(
        _attn_dense_kernel, num_heads=num_heads, num_groups=num_groups,
        head_dim=head_dim, window_size=window_size, scale=scale, has_mask=has_mask)
    in_specs = [pl.BlockSpec((1, sq, qc), lambda bi: (bi, 0, 0)),
                pl.BlockSpec((1, sq, kc), lambda bi: (bi, 0, 0)),
                pl.BlockSpec((1, sq, kc), lambda bi: (bi, 0, 0))]
    args = [q, k, v]
    if has_mask:
        in_specs.append(pl.BlockSpec((1, sq, sq), lambda bi: (bi, 0, 0)))
        args.append(mask)
    return pl.pallas_call(
        kernel,
        out_shape=out_shape,
        grid=(b,),
        in_specs=in_specs,
        out_specs=pl.BlockSpec((1, sq, qc), lambda bi: (bi, 0, 0)),
        compiler_params=_mosaic("parallel"),
    )(*args)


# ------------------------------- JAX glue ----------------------------------

def apply_rotary_pos_emb(x, rope_cache):
    # x: [b, sq, nh, hn]; rope_cache: [sq, 1, rot//2, 2]
    b, sq, nh, hn = x.shape
    rot = rope_cache.shape[-2] * 2
    x_rot, x_pass = x[..., :rot], x[..., rot:]
    xs = x_rot.reshape(b, sq, nh, rot // 2, 2)
    rc = rope_cache[:sq].reshape(1, sq, 1, rot // 2, 2)
    x0, x1 = xs[..., 0], xs[..., 1]
    c, s = rc[..., 0], rc[..., 1]
    out = jnp.stack([x0 * c - x1 * s, x1 * c + x0 * s], axis=-1).reshape(b, sq, nh, rot)
    return jnp.concatenate([out, x_pass], axis=-1)


def glm_block(hidden_bf, mask_f, rope_cache, p, layer_number, cfg):
    # hidden_bf: [b, sq, h] (batch-first residual stream, f32)
    b, sq, h = hidden_bf.shape
    np_ = cfg.num_attention_heads
    hn = cfg.kv_channels
    ng = cfg.multi_query_group_num
    eps = cfg.layernorm_epsilon
    m = b * sq
    x2d = hidden_bf.reshape(m, h)

    # fused input-RMSNorm + QKV projection (+ bias)
    qkv = fused_rmsnorm_qkv(x2d, p["input_ln_w"], p["qkv_w"], p["qkv_b"], eps)
    qkv = qkv.reshape(b, sq, -1)
    q, k, v = jnp.split(qkv, [np_ * hn, np_ * hn + ng * hn], axis=-1)
    q = q.reshape(b, sq, np_, hn)
    k = k.reshape(b, sq, ng, hn)
    v = v.reshape(b, sq, ng, hn)

    q = apply_rotary_pos_emb(q, rope_cache)
    k = apply_rotary_pos_emb(k, rope_cache)

    # use_cache=True, no incoming cache; cache kept in the torch [sq, b, ng, hn] layout
    kv_cache = (jnp.transpose(k, (1, 0, 2, 3)), jnp.transpose(v, (1, 0, 2, 3)))

    # apply_query_key_layer_scaling => effective scale = 1/(layer_number*sqrt(hn))
    coeff = float(max(1, layer_number))
    scale = 1.0 / (coeff * math.sqrt(hn))

    # grouped (non-expanded) KV; bf16 operands for the MXU
    q_bf = q.reshape(b, sq, np_ * hn).astype(jnp.bfloat16)
    k_bf = k.reshape(b, sq, ng * hn).astype(jnp.bfloat16)
    v_bf = v.reshape(b, sq, ng * hn).astype(jnp.bfloat16)

    ctx = sliding_window_attention(
        q_bf, k_bf, v_bf, mask_f, num_heads=np_, num_groups=ng, head_dim=hn,
        window_size=cfg.window_size, scale=scale)          # [b, sq, np*hn] bf16

    # fused dense projection + residual add (residual = hidden_states, dropout=0/eval)
    ln_input = fused_dense_residual(ctx.reshape(m, np_ * hn), p["dense_w"], x2d)

    # fused post-LN RMSNorm + SwiGLU MLP + residual add
    out2d = fused_ln_mlp_residual(ln_input, p["post_ln_w"],
                                  p["mlp_wg"], p["mlp_wu"], p["mlp_wd"], eps)
    return out2d.reshape(b, sq, h), kv_cache


def glm_transformer(hidden_states, attention_mask, rope_cache, params, cfg,
                    use_cache=True, output_hidden_states=False):
    sq, b, h = hidden_states.shape
    # single entry transpose to batch-first; all per-layer transposes are eliminated
    hidden_bf = jnp.transpose(hidden_states, (1, 0, 2))     # [b, sq, h]

    mask_f = None
    if attention_mask is not None:
        # attention_mask: [b, 1, sq, sk] bool, True = masked -> float {0,1}, OR'd in-kernel
        mask_f = attention_mask[:, 0].astype(jnp.float32)

    presents = () if use_cache else None
    all_hidden_states = () if output_hidden_states else None
    for idx, p in enumerate(params["layers"]):
        if output_hidden_states:
            all_hidden_states = all_hidden_states + (jnp.transpose(hidden_bf, (1, 0, 2)),)
        hidden_bf, kv_cache = glm_block(hidden_bf, mask_f, rope_cache, p, idx + 1, cfg)
        if use_cache:
            presents = presents + (kv_cache,)
    if output_hidden_states:
        all_hidden_states = all_hidden_states + (jnp.transpose(hidden_bf, (1, 0, 2)),)

    # post_layer_norm=True -> final RMSNorm
    out2d = rmsnorm(hidden_bf.reshape(b * sq, h), params["final_ln_w"],
                    cfg.layernorm_epsilon)
    hidden_states = jnp.transpose(out2d.reshape(b, sq, h), (1, 0, 2))
    return hidden_states, presents, all_hidden_states, None


# --------------------------- parameter construction ------------------------

def init_params(key, cfg):
    h = cfg.hidden_size
    hn = cfg.kv_channels
    np_ = cfg.num_attention_heads
    ng = cfg.multi_query_group_num
    ffn = cfg.ffn_hidden_size
    proj = np_ * hn
    qkv_out = proj + 2 * ng * hn
    layers = []
    for l in range(cfg.num_layers):
        ks = jax.random.split(jax.random.fold_in(key, l), 6)
        layers.append(dict(
            input_ln_w=jnp.ones((1, h), jnp.float32),
            qkv_w=(0.02 * jax.random.normal(ks[0], (h, qkv_out), jnp.float32)).astype(jnp.bfloat16),
            qkv_b=0.02 * jax.random.normal(ks[1], (1, qkv_out), jnp.float32),
            dense_w=(0.02 * jax.random.normal(ks[2], (proj, h), jnp.float32)).astype(jnp.bfloat16),
            post_ln_w=jnp.ones((1, h), jnp.float32),
            mlp_wg=(0.02 * jax.random.normal(ks[3], (h, ffn), jnp.float32)).astype(jnp.bfloat16),
            mlp_wu=(0.02 * jax.random.normal(ks[4], (h, ffn), jnp.float32)).astype(jnp.bfloat16),
            mlp_wd=(0.02 * jax.random.normal(ks[5], (ffn, h), jnp.float32)).astype(jnp.bfloat16),
        ))
    return dict(layers=layers, final_ln_w=jnp.ones((1, h), jnp.float32))


def make_rope_cache(seq_len, head_dim):
    rot = head_dim // 2  # ChatGLM applies RoPE to half the head dim
    inv_freq = 1.0 / (10000.0 ** (jnp.arange(0, rot, 2, dtype=jnp.float32) / rot))
    pos = jnp.arange(seq_len, dtype=jnp.float32)
    ang = jnp.outer(pos, inv_freq)                                    # [sq, rot//2]
    return jnp.stack([jnp.cos(ang), jnp.sin(ang)], axis=-1)[:, None]  # [sq,1,rot//2,2]


# ---------------------------------- main ------------------------------------

if __name__ == "__main__":
    cfg = GLMConfig()
    key = jax.random.PRNGKey(0)
    pkey, xkey = jax.random.split(key)
    params = init_params(pkey, cfg)

    sq, b = 16, 2
    hidden_states = jax.random.normal(xkey, (sq, b, cfg.hidden_size), jnp.float32)
    rope_cache = make_rope_cache(sq, cfg.kv_channels)
    attention_mask = None  # padding-free; sliding-window causal mask built in-kernel

    fwd = jax.jit(functools.partial(glm_transformer, cfg=cfg))
    out, presents, _, _ = fwd(hidden_states, attention_mask, rope_cache, params)
    out = jax.block_until_ready(out)

    assert out.shape == (sq, b, cfg.hidden_size)
    assert len(presents) == cfg.num_layers
    assert presents[0][0].shape == (sq, b, cfg.multi_query_group_num, cfg.kv_channels)
    assert bool(jnp.all(jnp.isfinite(out)))
    print("KERNEL_OK")
</pallas_src>

<mosaic_0001>
module attributes {stable_mosaic.version = 11 : i64} {
  func.func @_ln_qkv_kernel(%arg0: i32, %arg1: memref<32x128xf32, #tpu.memory_space<vmem>>, %arg2: memref<1x128xf32, #tpu.memory_space<vmem>>, %arg3: memref<128x256xbf16, #tpu.memory_space<vmem>>, %arg4: memref<1x256xf32, #tpu.memory_space<vmem>>, %arg5: memref<32x256xf32, #tpu.memory_space<vmem>>) attributes {dimension_semantics = [#tpu.dimension_semantics<parallel>], iteration_bounds = array<i64: 1>, scalar_prefetch = 0 : i64, scratch_operands = 0 : i64, tpu.core_type = #tpu.core_type<tc>, window_params = [{transform_indices = @transform_0, window_bounds = array<i64: 32, 128>}, {pipeline_mode = #tpu.pipeline_mode<synchronous>, transform_indices = @transform_1, window_bounds = array<i64: 1, 128>}, {pipeline_mode = #tpu.pipeline_mode<synchronous>, transform_indices = @transform_2, window_bounds = array<i64: 128, 256>}, {pipeline_mode = #tpu.pipeline_mode<synchronous>, transform_indices = @transform_3, window_bounds = array<i64: 1, 256>}, {transform_indices = @transform_4, window_bounds = array<i64: 32, 256>}]} {
    %c0 = arith.constant 0 : index
    %c0_0 = arith.constant 0 : index
    %0 = vector.load %arg1[%c0, %c0_0] : memref<32x128xf32, #tpu.memory_space<vmem>>, vector<32x128xf32>
    %1 = arith.mulf %0, %0 : vector<32x128xf32>
    %cst = arith.constant dense<0.000000e+00> : vector<32xf32>
    %2 = vector.multi_reduction <add>, %1, %cst [1] : vector<32x128xf32> to vector<32xf32>
    %3 = vector.shape_cast %2 : vector<32xf32> to vector<32x1xf32>
    %cst_1 = arith.constant 1.280000e+02 : f32
    %4 = vector.broadcast %cst_1 : f32 to vector<32x1xf32>
    %5 = arith.divf %3, %4 : vector<32x1xf32>
    %cst_2 = arith.constant 9.99999974E-6 : f32
    %6 = vector.broadcast %cst_2 : f32 to vector<32x1xf32>
    %7 = arith.addf %5, %6 : vector<32x1xf32>
    %8 = math.rsqrt %7 : vector<32x1xf32>
    %9 = vector.broadcast %8 : vector<32x1xf32> to vector<32x128xf32>
    %10 = arith.mulf %0, %9 : vector<32x128xf32>
    %c0_3 = arith.constant 0 : index
    %c0_4 = arith.constant 0 : index
    %11 = vector.load %arg2[%c0_3, %c0_4] : memref<1x128xf32, #tpu.memory_space<vmem>>, vector<1x128xf32>
    %12 = vector.broadcast %11 : vector<1x128xf32> to vector<32x128xf32>
    %13 = arith.mulf %10, %12 : vector<32x128xf32>
    %14 = arith.truncf %13 : vector<32x128xf32> to vector<32x128xbf16>
    %c0_5 = arith.constant 0 : index
    %c0_6 = arith.constant 0 : index
    %15 = vector.load %arg3[%c0_5, %c0_6] : memref<128x256xbf16, #tpu.memory_space<vmem>>, vector<128x256xbf16>
    %cst_7 = arith.constant dense<0.000000e+00> : vector<32x256xf32>
    %16 = tpu.matmul %14, %15, %cst_7 {dimension_numbers = #tpu.dot_dimension_numbers<[1], [0], [0], [1], [0, 0, 1, 1], [], []>} : vector<32x128xbf16>, vector<128x256xbf16>, vector<32x256xf32> -> vector<32x256xf32>
    %c0_8 = arith.constant 0 : index
    %c0_9 = arith.constant 0 : index
    %17 = vector.load %arg4[%c0_8, %c0_9] : memref<1x256xf32, #tpu.memory_space<vmem>>, vector<1x256xf32>
    %18 = vector.broadcast %17 : vector<1x256xf32> to vector<32x256xf32>
    %19 = arith.addf %16, %18 : vector<32x256xf32>
    %c0_10 = arith.constant 0 : index
    %c0_11 = arith.constant 0 : index
    %20 = vector.load %arg5[%c0_10, %c0_11] : memref<32x256xf32, #tpu.memory_space<vmem>>, vector<32x256xf32>
    tpu.vector_store %arg5[%c0_10, %c0_11], %19 {strides = array<i32>} : memref<32x256xf32, #tpu.memory_space<vmem>>, vector<32x256xf32>,
    return
  }
  func.func @transform_0(%arg0: i32) -> (i32, i32) {
    %c0_i32 = arith.constant 0 : i32
    %c0_i32_0 = arith.constant 0 : i32
    return %arg0, %c0_i32 : i32, i32
  }
  func.func @transform_1(%arg0: i32) -> (i32, i32) {
    %c0_i32 = arith.constant 0 : i32
    %c0_i32_0 = arith.constant 0 : i32
    %c0_i32_1 = arith.constant 0 : i32
    return %c0_i32, %c0_i32_0 : i32, i32
  }
  func.func @transform_2(%arg0: i32) -> (i32, i32) {
    %c0_i32 = arith.constant 0 : i32
    %c0_i32_0 = arith.constant 0 : i32
    %c0_i32_1 = arith.constant 0 : i32
    return %c0_i32, %c0_i32_0 : i32, i32
  }
  func.func @transform_3(%arg0: i32) -> (i32, i32) {
    %c0_i32 = arith.constant 0 : i32
    %c0_i32_0 = arith.constant 0 : i32
    %c0_i32_1 = arith.constant 0 : i32
    return %c0_i32, %c0_i32_0 : i32, i32
  }
  func.func @transform_4(%arg0: i32) -> (i32, i32) {
    %c0_i32 = arith.constant 0 : i32
    %c0_i32_0 = arith.constant 0 : i32
    return %arg0, %c0_i32 : i32, i32
  }
}

module attributes {stable_mosaic.version = 11 : i64} {
  func.func @_dense_residual_kernel(%arg0: i32, %arg1: memref<32x128xbf16, #tpu.memory_space<vmem>>, %arg2: memref<128x128xbf16, #tpu.memory_space<vmem>>, %arg3: memref<32x128xf32, #tpu.memory_space<vmem>>, %arg4: memref<32x128xf32, #tpu.memory_space<vmem>>) attributes {dimension_semantics = [#tpu.dimension_semantics<parallel>], iteration_bounds = array<i64: 1>, scalar_prefetch = 0 : i64, scratch_operands = 0 : i64, tpu.core_type = #tpu.core_type<tc>, window_params = [{transform_indices = @transform_0, window_bounds = array<i64: 32, 128>}, {pipeline_mode = #tpu.pipeline_mode<synchronous>, transform_indices = @transform_1, window_bounds = array<i64: 128, 128>}, {transform_indices = @transform_2, window_bounds = array<i64: 32, 128>}, {transform_indices = @transform_3, window_bounds = array<i64: 32, 128>}]} {
    %c0 = arith.constant 0 : index
    %c0_0 = arith.constant 0 : index
    %0 = vector.load %arg1[%c0, %c0_0] : memref<32x128xbf16, #tpu.memory_space<vmem>>, vector<32x128xbf16>
    %c0_1 = arith.constant 0 : index
    %c0_2 = arith.constant 0 : index
    %1 = vector.load %arg2[%c0_1, %c0_2] : memref<128x128xbf16, #tpu.memory_space<vmem>>, vector<128x128xbf16>
    %cst = arith.constant dense<0.000000e+00> : vector<32x128xf32>
    %2 = tpu.matmul %0, %1, %cst {dimension_numbers = #tpu.dot_dimension_numbers<[1], [0], [0], [1], [0, 0, 1, 1], [], []>} : vector<32x128xbf16>, vector<128x128xbf16>, vector<32x128xf32> -> vector<32x128xf32>
    %c0_3 = arith.constant 0 : index
    %c0_4 = arith.constant 0 : index
    %3 = vector.load %arg3[%c0_3, %c0_4] : memref<32x128xf32, #tpu.memory_space<vmem>>, vector<32x128xf32>
    %4 = arith.addf %3, %2 : vector<32x128xf32>
    %c0_5 = arith.constant 0 : index
    %c0_6 = arith.constant 0 : index
    %5 = vector.load %arg4[%c0_5, %c0_6] : memref<32x128xf32, #tpu.memory_space<vmem>>, vector<32x128xf32>
    tpu.vector_store %arg4[%c0_5, %c0_6], %4 {strides = array<i32>} : memref<32x128xf32, #tpu.memory_space<vmem>>, vector<32x128xf32>,
    return
  }
  func.func @transform_0(%arg0: i32) -> (i32, i32) {
    %c0_i32 = arith.constant 0 : i32
    %c0_i32_0 = arith.constant 0 : i32
    return %arg0, %c0_i32 : i32, i32
  }
  func.func @transform_1(%arg0: i32) -> (i32, i32) {
    %c0_i32 = arith.constant 0 : i32
    %c0_i32_0 = arith.constant 0 : i32
    %c0_i32_1 = arith.constant 0 : i32
    return %c0_i32, %c0_i32_0 : i32, i32
  }
  func.func @transform_2(%arg0: i32) -> (i32, i32) {
    %c0_i32 = arith.constant 0 : i32
    %c0_i32_0 = arith.constant 0 : i32
    return %arg0, %c0_i32 : i32, i32
  }
  func.func @transform_3(%arg0: i32) -> (i32, i32) {
    %c0_i32 = arith.constant 0 : i32
    %c0_i32_0 = arith.constant 0 : i32
    return %arg0, %c0_i32 : i32, i32
  }
}

module attributes {stable_mosaic.version = 11 : i64} {
  func.func @_attn_window_kernel(%arg0: i32, %arg1: i32, %arg2: memref<1x8x128xbf16, #tpu.memory_space<vmem>>, %arg3: memref<1x8x64xbf16, #tpu.memory_space<vmem>>, %arg4: memref<1x8x64xbf16, #tpu.memory_space<vmem>>, %arg5: memref<1x8x64xbf16, #tpu.memory_space<vmem>>, %arg6: memref<1x8x64xbf16, #tpu.memory_space<vmem>>, %arg7: memref<1x8x128xbf16, #tpu.memory_space<vmem>>) attributes {dimension_semantics = [#tpu.dimension_semantics<parallel>, #tpu.dimension_semantics<parallel>], iteration_bounds = array<i64: 2, 2>, scalar_prefetch = 0 : i64, scratch_operands = 0 : i64, tpu.core_type = #tpu.core_type<tc>, window_params = [{transform_indices = @transform_0, window_bounds = array<i64: 1, 8, 128>}, {transform_indices = @transform_1, window_bounds = array<i64: 1, 8, 64>}, {transform_indices = @transform_2, window_bounds = array<i64: 1, 8, 64>}, {transform_indices = @transform_3, window_bounds = array<i64: 1, 8, 64>}, {transform_indices = @transform_4, window_bounds = array<i64: 1, 8, 64>}, {transform_indices = @transform_5, window_bounds = array<i64: 1, 8, 128>}]} {
    %c0 = arith.constant 0 : index
    %c0_0 = arith.constant 0 : index
    %c0_1 = arith.constant 0 : index
    %0 = vector.load %arg2[%c0, %c0_0, %c0_1] : memref<1x8x128xbf16, #tpu.memory_space<vmem>>, vector<1x8x128xbf16>
    %1 = vector.shape_cast %0 : vector<1x8x128xbf16> to vector<8x128xbf16>
    %2 = arith.extf %1 : vector<8x128xbf16> to vector<8x128xf32>
    %cst = arith.constant 0.176776692 : f32
    %3 = vector.broadcast %cst : f32 to vector<8x128xf32>
    %4 = arith.mulf %2, %3 : vector<8x128xf32>
    %c0_2 = arith.constant 0 : index
    %c0_3 = arith.constant 0 : index
    %c0_4 = arith.constant 0 : index
    %5 = vector.load %arg3[%c0_2, %c0_3, %c0_4] : memref<1x8x64xbf16, #tpu.memory_space<vmem>>, vector<1x8x64xbf16>
    %6 = vector.shape_cast %5 : vector<1x8x64xbf16> to vector<8x64xbf16>
    %c0_5 = arith.constant 0 : index
    %c0_6 = arith.constant 0 : index
    %c0_7 = arith.constant 0 : index
    %7 = vector.load %arg4[%c0_5, %c0_6, %c0_7] : memref<1x8x64xbf16, #tpu.memory_space<vmem>>, vector<1x8x64xbf16>
    %8 = vector.shape_cast %7 : vector<1x8x64xbf16> to vector<8x64xbf16>
    %9 = tpu.concatenate %6, %8 in 0 : vector<8x64xbf16>, vector<8x64xbf16> -> vector<16x64xbf16>
    %c0_8 = arith.constant 0 : index
    %c0_9 = arith.constant 0 : index
    %c0_10 = arith.constant 0 : index
    %10 = vector.load %arg5[%c0_8, %c0_9, %c0_10] : memref<1x8x64xbf16, #tpu.memory_space<vmem>>, vector<1x8x64xbf16>
    %11 = vector.shape_cast %10 : vector<1x8x64xbf16> to vector<8x64xbf16>
    %c0_11 = arith.constant 0 : index
    %c0_12 = arith.constant 0 : index
    %c0_13 = arith.constant 0 : index
    %12 = vector.load %arg6[%c0_11, %c0_12, %c0_13] : memref<1x8x64xbf16, #tpu.memory_space<vmem>>, vector<1x8x64xbf16>
    %13 = vector.shape_cast %12 : vector<1x8x64xbf16> to vector<8x64xbf16>
    %14 = tpu.concatenate %11, %13 in 0 : vector<8x64xbf16>, vector<8x64xbf16> -> vector<16x64xbf16>
    %c8_i32 = arith.constant 8 : i32
    %15 = arith.muli %arg1, %c8_i32 : i32
    %16 = tpu.iota {dimensions = array<i32: 0>} : vector<8x16xi32>
    %17 = vector.broadcast %15 : i32 to vector<8x16xi32>
    %18 = arith.addi %17, %16 : vector<8x16xi32>
    %c1_i32 = arith.constant 1 : i32
    %19 = arith.subi %arg1, %c1_i32 : i32
    %c8_i32_14 = arith.constant 8 : i32
    %20 = arith.muli %19, %c8_i32_14 : i32
    %21 = tpu.iota {dimensions = array<i32: 1>} : vector<8x16xi32>
    %22 = vector.broadcast %20 : i32 to vector<8x16xi32>
    %23 = arith.addi %22, %21 : vector<8x16xi32>
    %c8_i32_15 = arith.constant 8 : i32
    %24 = vector.broadcast %c8_i32_15 : i32 to vector<8x16xi32>
    %25 = arith.subi %18, %24 : vector<8x16xi32>
    %c1_i32_16 = arith.constant 1 : i32
    %26 = vector.broadcast %c1_i32_16 : i32 to vector<8x16xi32>
    %27 = arith.addi %25, %26 : vector<8x16xi32>
    %28 = arith.cmpi slt, %23, %27 : vector<8x16xi32>
    %29 = arith.cmpi sgt, %23, %18 : vector<8x16xi32>
    %30 = arith.ori %28, %29 : vector<8x16xi1>
    %c0_i32 = arith.constant 0 : i32
    %31 = vector.broadcast %c0_i32 : i32 to vector<8x16xi32>
    %32 = arith.cmpi slt, %23, %31 : vector<8x16xi32>
    %33 = arith.ori %30, %32 : vector<8x16xi1>
    %34 = vector.extract_strided_slice %4 {offsets = [0, 0], sizes = [8, 32], strides = [1, 1]} : vector<8x128xf32> to vector<8x32xf32>
    %35 = arith.truncf %34 : vector<8x32xf32> to vector<8x32xbf16>
    %36 = vector.extract_strided_slice %9 {offsets = [0, 0], sizes = [16, 32], strides = [1, 1]} : vector<16x64xbf16> to vector<16x32xbf16>
    %37 = vector.extract_strided_slice %14 {offsets = [0, 0], sizes = [16, 32], strides = [1, 1]} : vector<16x64xbf16> to vector<16x32xbf16>
    %cst_17 = arith.constant dense<0.000000e+00> : vector<8x16xf32>
    %38 = tpu.matmul %35, %36, %cst_17 {dimension_numbers = #tpu.dot_dimension_numbers<[1], [1], [0], [0], [0, 0, 1, 0], [], []>} : vector<8x32xbf16>, vector<16x32xbf16>, vector<8x16xf32> -> vector<8x16xf32>
    %cst_18 = arith.constant -1.000000e+30 : f32
    %39 = vector.broadcast %cst_18 : f32 to vector<8x16xf32>
    %40 = arith.select %33, %39, %38 : vector<8x16xi1>, vector<8x16xf32>
    %cst_19 = arith.constant dense<0xFF800000> : vector<8xf32>
    %41 = vector.multi_reduction <maximumf>, %40, %cst_19 [1] : vector<8x16xf32> to vector<8xf32>
    %42 = vector.shape_cast %41 : vector<8xf32> to vector<8x1xf32>
    %43 = vector.broadcast %42 : vector<8x1xf32> to vector<8x16xf32>
    %44 = arith.subf %40, %43 : vector<8x16xf32>
    %45 = math.exp %44 : vector<8x16xf32>
    %cst_20 = arith.constant dense<0.000000e+00> : vector<8xf32>
    %46 = vector.multi_reduction <add>, %45, %cst_20 [1] : vector<8x16xf32> to vector<8xf32>
    %47 = vector.shape_cast %46 : vector<8xf32> to vector<8x1xf32>
    %48 = tpu.reciprocal %47 {approx = true} : vector<8x1xf32> -> vector<8x1xf32>
    %49 = vector.broadcast %48 : vector<8x1xf32> to vector<8x16xf32>
    %50 = arith.mulf %45, %49 : vector<8x16xf32>
    %51 = arith.truncf %50 : vector<8x16xf32> to vector<8x16xbf16>
    %cst_21 = arith.constant dense<0.000000e+00> : vector<8x32xf32>
    %52 = tpu.matmul %51, %37, %cst_21 {dimension_numbers = #tpu.dot_dimension_numbers<[1], [0], [0], [1], [0, 0, 1, 1], [], []>} : vector<8x16xbf16>, vector<16x32xbf16>, vector<8x32xf32> -> vector<8x32xf32>
    %53 = vector.extract_strided_slice %4 {offsets = [0, 32], sizes = [8, 32], strides = [1, 1]} : vector<8x128xf32> to vector<8x32xf32>
    %54 = arith.truncf %53 : vector<8x32xf32> to vector<8x32xbf16>
    %55 = vector.extract_strided_slice %9 {offsets = [0, 0], sizes = [16, 32], strides = [1, 1]} : vector<16x64xbf16> to vector<16x32xbf16>
    %56 = vector.extract_strided_slice %14 {offsets = [0, 0], sizes = [16, 32], strides = [1, 1]} : vector<16x64xbf16> to vector<16x32xbf16>
    %cst_22 = arith.constant dense<0.000000e+00> : vector<8x16xf32>
    %57 = tpu.matmul %54, %55, %cst_22 {dimension_numbers = #tpu.dot_dimension_numbers<[1], [1], [0], [0], [0, 0, 1, 0], [], []>} : vector<8x32xbf16>, vector<16x32xbf16>, vector<8x16xf32> -> vector<8x16xf32>
    %cst_23 = arith.constant -1.000000e+30 : f32
    %58 = vector.broadcast %cst_23 : f32 to vector<8x16xf32>
    %59 = arith.select %33, %58, %57 : vector<8x16xi1>, vector<8x16xf32>
    %cst_24 = arith.constant dense<0xFF800000> : vector<8xf32>
    %60 = vector.multi_reduction <maximumf>, %59, %cst_24 [1] : vector<8x16xf32> to vector<8xf32>
    %61 = vector.shape_cast %60 : vector<8xf32> to vector<8x1xf32>
    %62 = vector.broadcast %61 : vector<8x1xf32> to vector<8x16xf32>
    %63 = arith.subf %59, %62 : vector<8x16xf32>
    %64 = math.exp %63 : vector<8x16xf32>
    %cst_25 = arith.constant dense<0.000000e+00> : vector<8xf32>
    %65 = vector.multi_reduction <add>, %64, %cst_25 [1] : vector<8x16xf32> to vector<8xf32>
    %66 = vector.shape_cast %65 : vector<8xf32> to vector<8x1xf32>
    %67 = tpu.reciprocal %66 {approx = true} : vector<8x1xf32> -> vector<8x1xf32>
    %68 = vector.broadcast %67 : vector<8x1xf32> to vector<8x16xf32>
    %69 = arith.mulf %64, %68 : vector<8x16xf32>
    %70 = arith.truncf %69 : vector<8x16xf32> to vector<8x16xbf16>
    %cst_26 = arith.constant dense<0.000000e+00> : vector<8x32xf32>
    %71 = tpu.matmul %70, %56, %cst_26 {dimension_numbers = #tpu.dot_dimension_numbers<[1], [0], [0], [1], [0, 0, 1, 1], [], []>} : vector<8x16xbf16>, vector<16x32xbf16>, vector<8x32xf32> -> vector<8x32xf32>
    %72 = vector.extract_strided_slice %4 {offsets = [0, 64], sizes = [8, 32], strides = [1, 1]} : vector<8x128xf32> to vector<8x32xf32>
    %73 = arith.truncf %72 : vector<8x32xf32> to vector<8x32xbf16>
    %74 = vector.extract_strided_slice %9 {offsets = [0, 32], sizes = [16, 32], strides = [1, 1]} : vector<16x64xbf16> to vector<16x32xbf16>
    %75 = vector.extract_strided_slice %14 {offsets = [0, 32], sizes = [16, 32], strides = [1, 1]} : vector<16x64xbf16> to vector<16x32xbf16>
    %cst_27 = arith.constant dense<0.000000e+00> : vector<8x16xf32>
    %76 = tpu.matmul %73, %74, %cst_27 {dimension_numbers = #tpu.dot_dimension_numbers<[1], [1], [0], [0], [0, 0, 1, 0], [], []>} : vector<8x32xbf16>, vector<16x32xbf16>, vector<8x16xf32> -> vector<8x16xf32>
    %cst_28 = arith.constant -1.000000e+30 : f32
    %77 = vector.broadcast %cst_28 : f32 to vector<8x16xf32>
    %78 = arith.select %33, %77, %76 : vector<8x16xi1>, vector<8x16xf32>
    %cst_29 = arith.constant dense<0xFF800000> : vector<8xf32>
    %79 = vector.multi_reduction <maximumf>, %78, %cst_29 [1] : vector<8x16xf32> to vector<8xf32>
    %80 = vector.shape_cast %79 : vector<8xf32> to vector<8x1xf32>
    %81 = vector.broadcast %80 : vector<8x1xf32> to vector<8x16xf32>
    %82 = arith.subf %78, %81 : vector<8x16xf32>
    %83 = math.exp %82 : vector<8x16xf32>
    %cst_30 = arith.constant dense<0.000000e+00> : vector<8xf32>
    %84 = vector.multi_reduction <add>, %83, %cst_30 [1] : vector<8x16xf32> to vector<8xf32>
    %85 = vector.shape_cast %84 : vector<8xf32> to vector<8x1xf32>
    %86 = tpu.reciprocal %85 {approx = true} : vector<8x1xf32> -> vector<8x1xf32>
    %87 = vector.broadcast %86 : vector<8x1xf32> to vector<8x16xf32>
    %88 = arith.mulf %83, %87 : vector<8x16xf32>
    %89 = arith.truncf %88 : vector<8x16xf32> to vector<8x16xbf16>
    %cst_31 = arith.constant dense<0.000000e+00> : vector<8x32xf32>
    %90 = tpu.matmul %89, %75, %cst_31 {dimension_numbers = #tpu.dot_dimension_numbers<[1], [0], [0], [1], [0, 0, 1, 1], [], []>} : vector<8x16xbf16>, vector<16x32xbf16>, vector<8x32xf32> -> vector<8x32xf32>
    %91 = vector.extract_strided_slice %4 {offsets = [0, 96], sizes = [8, 32], strides = [1, 1]} : vector<8x128xf32> to vector<8x32xf32>
    %92 = arith.truncf %91 : vector<8x32xf32> to vector<8x32xbf16>
    %93 = vector.extract_strided_slice %9 {offsets = [0, 32], sizes = [16, 32], strides = [1, 1]} : vector<16x64xbf16> to vector<16x32xbf16>
    %94 = vector.extract_strided_slice %14 {offsets = [0, 32], sizes = [16, 32], strides = [1, 1]} : vector<16x64xbf16> to vector<16x32xbf16>
    %cst_32 = arith.constant dense<0.000000e+00> : vector<8x16xf32>
    %95 = tpu.matmul %92, %93, %cst_32 {dimension_numbers = #tpu.dot_dimension_numbers<[1], [1], [0], [0], [0, 0, 1, 0], [], []>} : vector<8x32xbf16>, vector<16x32xbf16>, vector<8x16xf32> -> vector<8x16xf32>
    %cst_33 = arith.constant -1.000000e+30 : f32
    %96 = vector.broadcast %cst_33 : f32 to vector<8x16xf32>
    %97 = arith.select %33, %96, %95 : vector<8x16xi1>, vector<8x16xf32>
    %cst_34 = arith.constant dense<0xFF800000> : vector<8xf32>
    %98 = vector.multi_reduction <maximumf>, %97, %cst_34 [1] : vector<8x16xf32> to vector<8xf32>
    %99 = vector.shape_cast %98 : vector<8xf32> to vector<8x1xf32>
    %100 = vector.broadcast %99 : vector<8x1xf32> to vector<8x16xf32>
    %101 = arith.subf %97, %100 : vector<8x16xf32>
    %102 = math.exp %101 : vector<8x16xf32>
    %cst_35 = arith.constant dense<0.000000e+00> : vector<8xf32>
    %103 = vector.multi_reduction <add>, %102, %cst_35 [1] : vector<8x16xf32> to vector<8xf32>
    %104 = vector.shape_cast %103 : vector<8xf32> to vector<8x1xf32>
    %105 = tpu.reciprocal %104 {approx = true} : vector<8x1xf32> -> vector<8x1xf32>
    %106 = vector.broadcast %105 : vector<8x1xf32> to vector<8x16xf32>
    %107 = arith.mulf %102, %106 : vector<8x16xf32>
    %108 = arith.truncf %107 : vector<8x16xf32> to vector<8x16xbf16>
    %cst_36 = arith.constant dense<0.000000e+00> : vector<8x32xf32>
    %109 = tpu.matmul %108, %94, %cst_36 {dimension_numbers = #tpu.dot_dimension_numbers<[1], [0], [0], [1], [0, 0, 1, 1], [], []>} : vector<8x16xbf16>, vector<16x32xbf16>, vector<8x32xf32> -> vector<8x32xf32>
    %110 = tpu.concatenate %52, %71, %90, %109 in 1 : vector<8x32xf32>, vector<8x32xf32>, vector<8x32xf32>, vector<8x32xf32> -> vector<8x128xf32>
    %111 = arith.truncf %110 : vector<8x128xf32> to vector<8x128xbf16>
    %c0_37 = arith.constant 0 : index
    %c0_38 = arith.constant 0 : index
    %c0_39 = arith.constant 0 : index
    %112 = vector.load %arg7[%c0_37, %c0_38, %c0_39] : memref<1x8x128xbf16, #tpu.memory_space<vmem>>, vector<1x8x128xbf16>
    %113 = vector.shape_cast %112 : vector<1x8x128xbf16> to vector<8x128xbf16>
    %114 = vector.shape_cast %111 : vector<8x128xbf16> to vector<1x8x128xbf16>
    tpu.vector_store %arg7[%c0_37, %c0_38, %c0_39], %114 {strides = array<i32>} : memref<1x8x128xbf16, #tpu.memory_space<vmem>>, vector<1x8x128xbf16>,
    return
  }
  func.func @transform_0(%arg0: i32, %arg1: i32) -> (i32, i32, i32) {
    %c0_i32 = arith.constant 0 : i32
    %c0_i32_0 = arith.constant 0 : i32
    return %arg0, %arg1, %c0_i32 : i32, i32, i32
  }
  func.func @transform_1(%arg0: i32, %arg1: i32) -> (i32, i32, i32) {
    %c1_i32 = arith.constant 1 : i32
    %0 = arith.subi %arg1, %c1_i32 : i32
    %c0_i32 = arith.constant 0 : i32
    %1 = arith.maxsi %0, %c0_i32 : i32
    %c0_i32_0 = arith.constant 0 : i32
    %c0_i32_1 = arith.constant 0 : i32
    return %arg0, %1, %c0_i32_0 : i32, i32, i32
  }
  func.func @transform_2(%arg0: i32, %arg1: i32) -> (i32, i32, i32) {
    %c0_i32 = arith.constant 0 : i32
    %c0_i32_0 = arith.constant 0 : i32
    return %arg0, %arg1, %c0_i32 : i32, i32, i32
  }
  func.func @transform_3(%arg0: i32, %arg1: i32) -> (i32, i32, i32) {
    %c1_i32 = arith.constant 1 : i32
    %0 = arith.subi %arg1, %c1_i32 : i32
    %c0_i32 = arith.constant 0 : i32
    %1 = arith.maxsi %0, %c0_i32 : i32
    %c0_i32_0 = arith.constant 0 : i32
    %c0_i32_1 = arith.constant 0 : i32
    return %arg0, %1, %c0_i32_0 : i32, i32, i32
  }
  func.func @transform_4(%arg0: i32, %arg1: i32) -> (i32, i32, i32) {
    %c0_i32 = arith.constant 0 : i32
    %c0_i32_0 = arith.constant 0 : i32
    return %arg0, %arg1, %c0_i32 : i32, i32, i32
  }
  func.func @transform_5(%arg0: i32, %arg1: i32) -> (i32, i32, i32) {
    %c0_i32 = arith.constant 0 : i32
    %c0_i32_0 = arith.constant 0 : i32
    return %arg0, %arg1, %c0_i32 : i32, i32, i32
  }
}

module attributes {stable_mosaic.version = 11 : i64} {
  func.func @_ln_mlp_residual_kernel(%arg0: i32, %arg1: memref<32x128xf32, #tpu.memory_space<vmem>>, %arg2: memref<1x128xf32, #tpu.memory_space<vmem>>, %arg3: memref<128x256xbf16, #tpu.memory_space<vmem>>, %arg4: memref<128x256xbf16, #tpu.memory_space<vmem>>, %arg5: memref<256x128xbf16, #tpu.memory_space<vmem>>, %arg6: memref<32x128xf32, #tpu.memory_space<vmem>>) attributes {dimension_semantics = [#tpu.dimension_semantics<parallel>], iteration_bounds = array<i64: 1>, scalar_prefetch = 0 : i64, scratch_operands = 0 : i64, tpu.core_type = #tpu.core_type<tc>, window_params = [{transform_indices = @transform_0, window_bounds = array<i64: 32, 128>}, {pipeline_mode = #tpu.pipeline_mode<synchronous>, transform_indices = @transform_1, window_bounds = array<i64: 1, 128>}, {pipeline_mode = #tpu.pipeline_mode<synchronous>, transform_indices = @transform_2, window_bounds = array<i64: 128, 256>}, {pipeline_mode = #tpu.pipeline_mode<synchronous>, transform_indices = @transform_3, window_bounds = array<i64: 128, 256>}, {pipeline_mode = #tpu.pipeline_mode<synchronous>, transform_indices = @transform_4, window_bounds = array<i64: 256, 128>}, {transform_indices = @transform_5, window_bounds = array<i64: 32, 128>}]} {
    %c0 = arith.constant 0 : index
    %c0_0 = arith.constant 0 : index
    %0 = vector.load %arg1[%c0, %c0_0] : memref<32x128xf32, #tpu.memory_space<vmem>>, vector<32x128xf32>
    %1 = arith.mulf %0, %0 : vector<32x128xf32>
    %cst = arith.constant dense<0.000000e+00> : vector<32xf32>
    %2 = vector.multi_reduction <add>, %1, %cst [1] : vector<32x128xf32> to vector<32xf32>
    %3 = vector.shape_cast %2 : vector<32xf32> to vector<32x1xf32>
    %cst_1 = arith.constant 1.280000e+02 : f32
    %4 = vector.broadcast %cst_1 : f32 to vector<32x1xf32>
    %5 = arith.divf %3, %4 : vector<32x1xf32>
    %cst_2 = arith.constant 9.99999974E-6 : f32
    %6 = vector.broadcast %cst_2 : f32 to vector<32x1xf32>
    %7 = arith.addf %5, %6 : vector<32x1xf32>
    %8 = math.rsqrt %7 : vector<32x1xf32>
    %9 = vector.broadcast %8 : vector<32x1xf32> to vector<32x128xf32>
    %10 = arith.mulf %0, %9 : vector<32x128xf32>
    %c0_3 = arith.constant 0 : index
    %c0_4 = arith.constant 0 : index
    %11 = vector.load %arg2[%c0_3, %c0_4] : memref<1x128xf32, #tpu.memory_space<vmem>>, vector<1x128xf32>
    %12 = vector.broadcast %11 : vector<1x128xf32> to vector<32x128xf32>
    %13 = arith.mulf %10, %12 : vector<32x128xf32>
    %14 = arith.truncf %13 : vector<32x128xf32> to vector<32x128xbf16>
    %c0_5 = arith.constant 0 : index
    %c0_6 = arith.constant 0 : index
    %15 = vector.load %arg3[%c0_5, %c0_6] : memref<128x256xbf16, #tpu.memory_space<vmem>>, vector<128x256xbf16>
    %cst_7 = arith.constant dense<0.000000e+00> : vector<32x256xf32>
    %16 = tpu.matmul %14, %15, %cst_7 {dimension_numbers = #tpu.dot_dimension_numbers<[1], [0], [0], [1], [0, 0, 1, 1], [], []>} : vector<32x128xbf16>, vector<128x256xbf16>, vector<32x256xf32> -> vector<32x256xf32>
    %c0_8 = arith.constant 0 : index
    %c0_9 = arith.constant 0 : index
    %17 = vector.load %arg4[%c0_8, %c0_9] : memref<128x256xbf16, #tpu.memory_space<vmem>>, vector<128x256xbf16>
    %cst_10 = arith.constant dense<0.000000e+00> : vector<32x256xf32>
    %18 = tpu.matmul %14, %17, %cst_10 {dimension_numbers = #tpu.dot_dimension_numbers<[1], [0], [0], [1], [0, 0, 1, 1], [], []>} : vector<32x128xbf16>, vector<128x256xbf16>, vector<32x256xf32> -> vector<32x256xf32>
    %19 = arith.negf %16 : vector<32x256xf32>
    %20 = math.exp %19 : vector<32x256xf32>
    %cst_11 = arith.constant 1.000000e+00 : f32
    %21 = vector.broadcast %cst_11 : f32 to vector<32x256xf32>
    %22 = arith.addf %21, %20 : vector<32x256xf32>
    %23 = arith.divf %21, %22 : vector<32x256xf32>
    %24 = arith.mulf %16, %23 : vector<32x256xf32>
    %25 = arith.mulf %24, %18 : vector<32x256xf32>
    %26 = arith.truncf %25 : vector<32x256xf32> to vector<32x256xbf16>
    %c0_12 = arith.constant 0 : index
    %c0_13 = arith.constant 0 : index
    %27 = vector.load %arg5[%c0_12, %c0_13] : memref<256x128xbf16, #tpu.memory_space<vmem>>, vector<256x128xbf16>
    %cst_14 = arith.constant dense<0.000000e+00> : vector<32x128xf32>
    %28 = tpu.matmul %26, %27, %cst_14 {dimension_numbers = #tpu.dot_dimension_numbers<[1], [0], [0], [1], [0, 0, 1, 1], [], []>} : vector<32x256xbf16>, vector<256x128xbf16>, vector<32x128xf32> -> vector<32x128xf32>
    %29 = arith.addf %0, %28 : vector<32x128xf32>
    %c0_15 = arith.constant 0 : index
    %c0_16 = arith.constant 0 : index
    %30 = vector.load %arg6[%c0_15, %c0_16] : memref<32x128xf32, #tpu.memory_space<vmem>>, vector<32x128xf32>
    tpu.vector_store %arg6[%c0_15, %c0_16], %29 {strides = array<i32>} : memref<32x128xf32, #tpu.memory_space<vmem>>, vector<32x128xf32>,
    return
  }
  func.func @transform_0(%arg0: i32) -> (i32, i32) {
    %c0_i32 = arith.constant 0 : i32
    %c0_i32_0 = arith.constant 0 : i32
    return %arg0, %c0_i32 : i32, i32
  }
  func.func @transform_1(%arg0: i32) -> (i32, i32) {
    %c0_i32 = arith.constant 0 : i32
    %c0_i32_0 = arith.constant 0 : i32
    %c0_i32_1 = arith.constant 0 : i32
    return %c0_i32, %c0_i32_0 : i32, i32
  }
  func.func @transform_2(%arg0: i32) -> (i32, i32) {
    %c0_i32 = arith.constant 0 : i32
    %c0_i32_0 = arith.constant 0 : i32
    %c0_i32_1 = arith.constant 0 : i32
    return %c0_i32, %c0_i32_0 : i32, i32
  }
  func.func @transform_3(%arg0: i32) -> (i32, i32) {
    %c0_i32 = arith.constant 0 : i32
    %c0_i32_0 = arith.constant 0 : i32
    %c0_i32_1 = arith.constant 0 : i32
    return %c0_i32, %c0_i32_0 : i32, i32
  }
  func.func @transform_4(%arg0: i32) -> (i32, i32) {
    %c0_i32 = arith.constant 0 : i32
    %c0_i32_0 = arith.constant 0 : i32
    %c0_i32_1 = arith.constant 0 : i32
    return %c0_i32, %c0_i32_0 : i32, i32
  }
  func.func @transform_5(%arg0: i32) -> (i32, i32) {
    %c0_i32 = arith.constant 0 : i32
    %c0_i32_0 = arith.constant 0 : i32
    return %arg0, %c0_i32 : i32, i32
  }
}

module attributes {stable_mosaic.version = 11 : i64} {
  func.func @_ln_qkv_kernel(%arg0: i32, %arg1: memref<32x128xf32, #tpu.memory_space<vmem>>, %arg2: memref<1x128xf32, #tpu.memory_space<vmem>>, %arg3: memref<128x256xbf16, #tpu.memory_space<vmem>>, %arg4: memref<1x256xf32, #tpu.memory_space<vmem>>, %arg5: memref<32x256xf32, #tpu.memory_space<vmem>>) attributes {dimension_semantics = [#tpu.dimension_semantics<parallel>], iteration_bounds = array<i64: 1>, scalar_prefetch = 0 : i64, scratch_operands = 0 : i64, tpu.core_type = #tpu.core_type<tc>, window_params = [{transform_indices = @transform_0, window_bounds = array<i64: 32, 128>}, {pipeline_mode = #tpu.pipeline_mode<synchronous>, transform_indices = @transform_1, window_bounds = array<i64: 1, 128>}, {pipeline_mode = #tpu.pipeline_mode<synchronous>, transform_indices = @transform_2, window_bounds = array<i64: 128, 256>}, {pipeline_mode = #tpu.pipeline_mode<synchronous>, transform_indices = @transform_3, window_bounds = array<i64: 1, 256>}, {transform_indices = @transform_4, window_bounds = array<i64: 32, 256>}]} {
    %c0 = arith.constant 0 : index
    %c0_0 = arith.constant 0 : index
    %0 = vector.load %arg1[%c0, %c0_0] : memref<32x128xf32, #tpu.memory_space<vmem>>, vector<32x128xf32>
    %1 = arith.mulf %0, %0 : vector<32x128xf32>
    %cst = arith.constant dense<0.000000e+00> : vector<32xf32>
    %2 = vector.multi_reduction <add>, %1, %cst [1] : vector<32x128xf32> to vector<32xf32>
    %3 = vector.shape_cast %2 : vector<32xf32> to vector<32x1xf32>
    %cst_1 = arith.constant 1.280000e+02 : f32
    %4 = vector.broadcast %cst_1 : f32 to vector<32x1xf32>
    %5 = arith.divf %3, %4 : vector<32x1xf32>
    %cst_2 = arith.constant 9.99999974E-6 : f32
    %6 = vector.broadcast %cst_2 : f32 to vector<32x1xf32>
    %7 = arith.addf %5, %6 : vector<32x1xf32>
    %8 = math.rsqrt %7 : vector<32x1xf32>
    %9 = vector.broadcast %8 : vector<32x1xf32> to vector<32x128xf32>
    %10 = arith.mulf %0, %9 : vector<32x128xf32>
    %c0_3 = arith.constant 0 : index
    %c0_4 = arith.constant 0 : index
    %11 = vector.load %arg2[%c0_3, %c0_4] : memref<1x128xf32, #tpu.memory_space<vmem>>, vector<1x128xf32>
    %12 = vector.broadcast %11 : vector<1x128xf32> to vector<32x128xf32>
    %13 = arith.mulf %10, %12 : vector<32x128xf32>
    %14 = arith.truncf %13 : vector<32x128xf32> to vector<32x128xbf16>
    %c0_5 = arith.constant 0 : index
    %c0_6 = arith.constant 0 : index
    %15 = vector.load %arg3[%c0_5, %c0_6] : memref<128x256xbf16, #tpu.memory_space<vmem>>, vector<128x256xbf16>
    %cst_7 = arith.constant dense<0.000000e+00> : vector<32x256xf32>
    %16 = tpu.matmul %14, %15, %cst_7 {dimension_numbers = #tpu.dot_dimension_numbers<[1], [0], [0], [1], [0, 0, 1, 1], [], []>} : vector<32x128xbf16>, vector<128x256xbf16>, vector<32x256xf32> -> vector<32x256xf32>
    %c0_8 = arith.constant 0 : index
    %c0_9 = arith.constant 0 : index
    %17 = vector.load %arg4[%c0_8, %c0_9] : memref<1x256xf32, #tpu.memory_space<vmem>>, vector<1x256xf32>
    %18 = vector.broadcast %17 : vector<1x256xf32> to vector<32x256xf32>
    %19 = arith.addf %16, %18 : vector<32x256xf32>
    %c0_10 = arith.constant 0 : index
    %c0_11 = arith.constant 0 : index
    %20 = vector.load %arg5[%c0_10, %c0_11] : memref<32x256xf32, #tpu.memory_space<vmem>>, vector<32x256xf32>
    tpu.vector_store %arg5[%c0_10, %c0_11], %19 {strides = array<i32>} : memref<32x256xf32, #tpu.memory_space<vmem>>, vector<32x256xf32>,
    return
  }
  func.func @transform_0(%arg0: i32) -> (i32, i32) {
    %c0_i32 = arith.constant 0 : i32
    %c0_i32_0 = arith.constant 0 : i32
    return %arg0, %c0_i32 : i32, i32
  }
  func.func @transform_1(%arg0: i32) -> (i32, i32) {
    %c0_i32 = arith.constant 0 : i32
    %c0_i32_0 = arith.constant 0 : i32
    %c0_i32_1 = arith.constant 0 : i32
    return %c0_i32, %c0_i32_0 : i32, i32
  }
  func.func @transform_2(%arg0: i32) -> (i32, i32) {
    %c0_i32 = arith.constant 0 : i32
    %c0_i32_0 = arith.constant 0 : i32
    %c0_i32_1 = arith.constant 0 : i32
    return %c0_i32, %c0_i32_0 : i32, i32
  }
  func.func @transform_3(%arg0: i32) -> (i32, i32) {
    %c0_i32 = arith.constant 0 : i32
    %c0_i32_0 = arith.constant 0 : i32
    %c0_i32_1 = arith.constant 0 : i32
    return %c0_i32, %c0_i32_0 : i32, i32
  }
  func.func @transform_4(%arg0: i32) -> (i32, i32) {
    %c0_i32 = arith.constant 0 : i32
    %c0_i32_0 = arith.constant 0 : i32
    return %arg0, %c0_i32 : i32, i32
  }
}

module attributes {stable_mosaic.version = 11 : i64} {
  func.func @_attn_window_kernel(%arg0: i32, %arg1: i32, %arg2: memref<1x8x128xbf16, #tpu.memory_space<vmem>>, %arg3: memref<1x8x64xbf16, #tpu.memory_space<vmem>>, %arg4: memref<1x8x64xbf16, #tpu.memory_space<vmem>>, %arg5: memref<1x8x64xbf16, #tpu.memory_space<vmem>>, %arg6: memref<1x8x64xbf16, #tpu.memory_space<vmem>>, %arg7: memref<1x8x128xbf16, #tpu.memory_space<vmem>>) attributes {dimension_semantics = [#tpu.dimension_semantics<parallel>, #tpu.dimension_semantics<parallel>], iteration_bounds = array<i64: 2, 2>, scalar_prefetch = 0 : i64, scratch_operands = 0 : i64, tpu.core_type = #tpu.core_type<tc>, window_params = [{transform_indices = @transform_0, window_bounds = array<i64: 1, 8, 128>}, {transform_indices = @transform_1, window_bounds = array<i64: 1, 8, 64>}, {transform_indices = @transform_2, window_bounds = array<i64: 1, 8, 64>}, {transform_indices = @transform_3, window_bounds = array<i64: 1, 8, 64>}, {transform_indices = @transform_4, window_bounds = array<i64: 1, 8, 64>}, {transform_indices = @transform_5, window_bounds = array<i64: 1, 8, 128>}]} {
    %c0 = arith.constant 0 : index
    %c0_0 = arith.constant 0 : index
    %c0_1 = arith.constant 0 : index
    %0 = vector.load %arg2[%c0, %c0_0, %c0_1] : memref<1x8x128xbf16, #tpu.memory_space<vmem>>, vector<1x8x128xbf16>
    %1 = vector.shape_cast %0 : vector<1x8x128xbf16> to vector<8x128xbf16>
    %2 = arith.extf %1 : vector<8x128xbf16> to vector<8x128xf32>
    %cst = arith.constant 0.0883883461 : f32
    %3 = vector.broadcast %cst : f32 to vector<8x128xf32>
    %4 = arith.mulf %2, %3 : vector<8x128xf32>
    %c0_2 = arith.constant 0 : index
    %c0_3 = arith.constant 0 : index
    %c0_4 = arith.constant 0 : index
    %5 = vector.load %arg3[%c0_2, %c0_3, %c0_4] : memref<1x8x64xbf16, #tpu.memory_space<vmem>>, vector<1x8x64xbf16>
    %6 = vector.shape_cast %5 : vector<1x8x64xbf16> to vector<8x64xbf16>
    %c0_5 = arith.constant 0 : index
    %c0_6 = arith.constant 0 : index
    %c0_7 = arith.constant 0 : index
    %7 = vector.load %arg4[%c0_5, %c0_6, %c0_7] : memref<1x8x64xbf16, #tpu.memory_space<vmem>>, vector<1x8x64xbf16>
    %8 = vector.shape_cast %7 : vector<1x8x64xbf16> to vector<8x64xbf16>
    %9 = tpu.concatenate %6, %8 in 0 : vector<8x64xbf16>, vector<8x64xbf16> -> vector<16x64xbf16>
    %c0_8 = arith.constant 0 : index
    %c0_9 = arith.constant 0 : index
    %c0_10 = arith.constant 0 : index
    %10 = vector.load %arg5[%c0_8, %c0_9, %c0_10] : memref<1x8x64xbf16, #tpu.memory_space<vmem>>, vector<1x8x64xbf16>
    %11 = vector.shape_cast %10 : vector<1x8x64xbf16> to vector<8x64xbf16>
    %c0_11 = arith.constant 0 : index
    %c0_12 = arith.constant 0 : index
    %c0_13 = arith.constant 0 : index
    %12 = vector.load %arg6[%c0_11, %c0_12, %c0_13] : memref<1x8x64xbf16, #tpu.memory_space<vmem>>, vector<1x8x64xbf16>
    %13 = vector.shape_cast %12 : vector<1x8x64xbf16> to vector<8x64xbf16>
    %14 = tpu.concatenate %11, %13 in 0 : vector<8x64xbf16>, vector<8x64xbf16> -> vector<16x64xbf16>
    %c8_i32 = arith.constant 8 : i32
    %15 = arith.muli %arg1, %c8_i32 : i32
    %16 = tpu.iota {dimensions = array<i32: 0>} : vector<8x16xi32>
    %17 = vector.broadcast %15 : i32 to vector<8x16xi32>
    %18 = arith.addi %17, %16 : vector<8x16xi32>
    %c1_i32 = arith.constant 1 : i32
    %19 = arith.subi %arg1, %c1_i32 : i32
    %c8_i32_14 = arith.constant 8 : i32
    %20 = arith.muli %19, %c8_i32_14 : i32
    %21 = tpu.iota {dimensions = array<i32: 1>} : vector<8x16xi32>
    %22 = vector.broadcast %20 : i32 to vector<8x16xi32>
    %23 = arith.addi %22, %21 : vector<8x16xi32>
    %c8_i32_15 = arith.constant 8 : i32
    %24 = vector.broadcast %c8_i32_15 : i32 to vector<8x16xi32>
    %25 = arith.subi %18, %24 : vector<8x16xi32>
    %c1_i32_16 = arith.constant 1 : i32
    %26 = vector.broadcast %c1_i32_16 : i32 to vector<8x16xi32>
    %27 = arith.addi %25, %26 : vector<8x16xi32>
    %28 = arith.cmpi slt, %23, %27 : vector<8x16xi32>
    %29 = arith.cmpi sgt, %23, %18 : vector<8x16xi32>
    %30 = arith.ori %28, %29 : vector<8x16xi1>
    %c0_i32 = arith.constant 0 : i32
    %31 = vector.broadcast %c0_i32 : i32 to vector<8x16xi32>
    %32 = arith.cmpi slt, %23, %31 : vector<8x16xi32>
    %33 = arith.ori %30, %32 : vector<8x16xi1>
    %34 = vector.extract_strided_slice %4 {offsets = [0, 0], sizes = [8, 32], strides = [1, 1]} : vector<8x128xf32> to vector<8x32xf32>
    %35 = arith.truncf %34 : vector<8x32xf32> to vector<8x32xbf16>
    %36 = vector.extract_strided_slice %9 {offsets = [0, 0], sizes = [16, 32], strides = [1, 1]} : vector<16x64xbf16> to vector<16x32xbf16>
    %37 = vector.extract_strided_slice %14 {offsets = [0, 0], sizes = [16, 32], strides = [1, 1]} : vector<16x64xbf16> to vector<16x32xbf16>
    %cst_17 = arith.constant dense<0.000000e+00> : vector<8x16xf32>
    %38 = tpu.matmul %35, %36, %cst_17 {dimension_numbers = #tpu.dot_dimension_numbers<[1], [1], [0], [0], [0, 0, 1, 0], [], []>} : vector<8x32xbf16>, vector<16x32xbf16>, vector<8x16xf32> -> vector<8x16xf32>
    %cst_18 = arith.constant -1.000000e+30 : f32
    %39 = vector.broadcast %cst_18 : f32 to vector<8x16xf32>
    %40 = arith.select %33, %39, %38 : vector<8x16xi1>, vector<8x16xf32>
    %cst_19 = arith.constant dense<0xFF800000> : vector<8xf32>
    %41 = vector.multi_reduction <maximumf>, %40, %cst_19 [1] : vector<8x16xf32> to vector<8xf32>
    %42 = vector.shape_cast %41 : vector<8xf32> to vector<8x1xf32>
    %43 = vector.broadcast %42 : vector<8x1xf32> to vector<8x16xf32>
    %44 = arith.subf %40, %43 : vector<8x16xf32>
    %45 = math.exp %44 : vector<8x16xf32>
    %cst_20 = arith.constant dense<0.000000e+00> : vector<8xf32>
    %46 = vector.multi_reduction <add>, %45, %cst_20 [1] : vector<8x16xf32> to vector<8xf32>
    %47 = vector.shape_cast %46 : vector<8xf32> to vector<8x1xf32>
    %48 = tpu.reciprocal %47 {approx = true} : vector<8x1xf32> -> vector<8x1xf32>
    %49 = vector.broadcast %48 : vector<8x1xf32> to vector<8x16xf32>
    %50 = arith.mulf %45, %49 : vector<8x16xf32>
    %51 = arith.truncf %50 : vector<8x16xf32> to vector<8x16xbf16>
    %cst_21 = arith.constant dense<0.000000e+00> : vector<8x32xf32>
    %52 = tpu.matmul %51, %37, %cst_21 {dimension_numbers = #tpu.dot_dimension_numbers<[1], [0], [0], [1], [0, 0, 1, 1], [], []>} : vector<8x16xbf16>, vector<16x32xbf16>, vector<8x32xf32> -> vector<8x32xf32>
    %53 = vector.extract_strided_slice %4 {offsets = [0, 32], sizes = [8, 32], strides = [1, 1]} : vector<8x128xf32> to vector<8x32xf32>
    %54 = arith.truncf %53 : vector<8x32xf32> to vector<8x32xbf16>
    %55 = vector.extract_strided_slice %9 {offsets = [0, 0], sizes = [16, 32], strides = [1, 1]} : vector<16x64xbf16> to vector<16x32xbf16>
    %56 = vector.extract_strided_slice %14 {offsets = [0, 0], sizes = [16, 32], strides = [1, 1]} : vector<16x64xbf16> to vector<16x32xbf16>
    %cst_22 = arith.constant dense<0.000000e+00> : vector<8x16xf32>
    %57 = tpu.matmul %54, %55, %cst_22 {dimension_numbers = #tpu.dot_dimension_numbers<[1], [1], [0], [0], [0, 0, 1, 0], [], []>} : vector<8x32xbf16>, vector<16x32xbf16>, vector<8x16xf32> -> vector<8x16xf32>
    %cst_23 = arith.constant -1.000000e+30 : f32
    %58 = vector.broadcast %cst_23 : f32 to vector<8x16xf32>
    %59 = arith.select %33, %58, %57 : vector<8x16xi1>, vector<8x16xf32>
    %cst_24 = arith.constant dense<0xFF800000> : vector<8xf32>
    %60 = vector.multi_reduction <maximumf>, %59, %cst_24 [1] : vector<8x16xf32> to vector<8xf32>
    %61 = vector.shape_cast %60 : vector<8xf32> to vector<8x1xf32>
    %62 = vector.broadcast %61 : vector<8x1xf32> to vector<8x16xf32>
    %63 = arith.subf %59, %62 : vector<8x16xf32>
    %64 = math.exp %63 : vector<8x16xf32>
    %cst_25 = arith.constant dense<0.000000e+00> : vector<8xf32>
    %65 = vector.multi_reduction <add>, %64, %cst_25 [1] : vector<8x16xf32> to vector<8xf32>
    %66 = vector.shape_cast %65 : vector<8xf32> to vector<8x1xf32>
    %67 = tpu.reciprocal %66 {approx = true} : vector<8x1xf32> -> vector<8x1xf32>
    %68 = vector.broadcast %67 : vector<8x1xf32> to vector<8x16xf32>
    %69 = arith.mulf %64, %68 : vector<8x16xf32>
    %70 = arith.truncf %69 : vector<8x16xf32> to vector<8x16xbf16>
    %cst_26 = arith.constant dense<0.000000e+00> : vector<8x32xf32>
    %71 = tpu.matmul %70, %56, %cst_26 {dimension_numbers = #tpu.dot_dimension_numbers<[1], [0], [0], [1], [0, 0, 1, 1], [], []>} : vector<8x16xbf16>, vector<16x32xbf16>, vector<8x32xf32> -> vector<8x32xf32>
    %72 = vector.extract_strided_slice %4 {offsets = [0, 64], sizes = [8, 32], strides = [1, 1]} : vector<8x128xf32> to vector<8x32xf32>
    %73 = arith.truncf %72 : vector<8x32xf32> to vector<8x32xbf16>
    %74 = vector.extract_strided_slice %9 {offsets = [0, 32], sizes = [16, 32], strides = [1, 1]} : vector<16x64xbf16> to vector<16x32xbf16>
    %75 = vector.extract_strided_slice %14 {offsets = [0, 32], sizes = [16, 32], strides = [1, 1]} : vector<16x64xbf16> to vector<16x32xbf16>
    %cst_27 = arith.constant dense<0.000000e+00> : vector<8x16xf32>
    %76 = tpu.matmul %73, %74, %cst_27 {dimension_numbers = #tpu.dot_dimension_numbers<[1], [1], [0], [0], [0, 0, 1, 0], [], []>} : vector<8x32xbf16>, vector<16x32xbf16>, vector<8x16xf32> -> vector<8x16xf32>
    %cst_28 = arith.constant -1.000000e+30 : f32
    %77 = vector.broadcast %cst_28 : f32 to vector<8x16xf32>
    %78 = arith.select %33, %77, %76 : vector<8x16xi1>, vector<8x16xf32>
    %cst_29 = arith.constant dense<0xFF800000> : vector<8xf32>
    %79 = vector.multi_reduction <maximumf>, %78, %cst_29 [1] : vector<8x16xf32> to vector<8xf32>
    %80 = vector.shape_cast %79 : vector<8xf32> to vector<8x1xf32>
    %81 = vector.broadcast %80 : vector<8x1xf32> to vector<8x16xf32>
    %82 = arith.subf %78, %81 : vector<8x16xf32>
    %83 = math.exp %82 : vector<8x16xf32>
    %cst_30 = arith.constant dense<0.000000e+00> : vector<8xf32>
    %84 = vector.multi_reduction <add>, %83, %cst_30 [1] : vector<8x16xf32> to vector<8xf32>
    %85 = vector.shape_cast %84 : vector<8xf32> to vector<8x1xf32>
    %86 = tpu.reciprocal %85 {approx = true} : vector<8x1xf32> -> vector<8x1xf32>
    %87 = vector.broadcast %86 : vector<8x1xf32> to vector<8x16xf32>
    %88 = arith.mulf %83, %87 : vector<8x16xf32>
    %89 = arith.truncf %88 : vector<8x16xf32> to vector<8x16xbf16>
    %cst_31 = arith.constant dense<0.000000e+00> : vector<8x32xf32>
    %90 = tpu.matmul %89, %75, %cst_31 {dimension_numbers = #tpu.dot_dimension_numbers<[1], [0], [0], [1], [0, 0, 1, 1], [], []>} : vector<8x16xbf16>, vector<16x32xbf16>, vector<8x32xf32> -> vector<8x32xf32>
    %91 = vector.extract_strided_slice %4 {offsets = [0, 96], sizes = [8, 32], strides = [1, 1]} : vector<8x128xf32> to vector<8x32xf32>
    %92 = arith.truncf %91 : vector<8x32xf32> to vector<8x32xbf16>
    %93 = vector.extract_strided_slice %9 {offsets = [0, 32], sizes = [16, 32], strides = [1, 1]} : vector<16x64xbf16> to vector<16x32xbf16>
    %94 = vector.extract_strided_slice %14 {offsets = [0, 32], sizes = [16, 32], strides = [1, 1]} : vector<16x64xbf16> to vector<16x32xbf16>
    %cst_32 = arith.constant dense<0.000000e+00> : vector<8x16xf32>
    %95 = tpu.matmul %92, %93, %cst_32 {dimension_numbers = #tpu.dot_dimension_numbers<[1], [1], [0], [0], [0, 0, 1, 0], [], []>} : vector<8x32xbf16>, vector<16x32xbf16>, vector<8x16xf32> -> vector<8x16xf32>
    %cst_33 = arith.constant -1.000000e+30 : f32
    %96 = vector.broadcast %cst_33 : f32 to vector<8x16xf32>
    %97 = arith.select %33, %96, %95 : vector<8x16xi1>, vector<8x16xf32>
    %cst_34 = arith.constant dense<0xFF800000> : vector<8xf32>
    %98 = vector.multi_reduction <maximumf>, %97, %cst_34 [1] : vector<8x16xf32> to vector<8xf32>
    %99 = vector.shape_cast %98 : vector<8xf32> to vector<8x1xf32>
    %100 = vector.broadcast %99 : vector<8x1xf32> to vector<8x16xf32>
    %101 = arith.subf %97, %100 : vector<8x16xf32>
    %102 = math.exp %101 : vector<8x16xf32>
    %cst_35 = arith.constant dense<0.000000e+00> : vector<8xf32>
    %103 = vector.multi_reduction <add>, %102, %cst_35 [1] : vector<8x16xf32> to vector<8xf32>
    %104 = vector.shape_cast %103 : vector<8xf32> to vector<8x1xf32>
    %105 = tpu.reciprocal %104 {approx = true} : vector<8x1xf32> -> vector<8x1xf32>
    %106 = vector.broadcast %105 : vector<8x1xf32> to vector<8x16xf32>
    %107 = arith.mulf %102, %106 : vector<8x16xf32>
    %108 = arith.truncf %107 : vector<8x16xf32> to vector<8x16xbf16>
    %cst_36 = arith.constant dense<0.000000e+00> : vector<8x32xf32>
    %109 = tpu.matmul %108, %94, %cst_36 {dimension_numbers = #tpu.dot_dimension_numbers<[1], [0], [0], [1], [0, 0, 1, 1], [], []>} : vector<8x16xbf16>, vector<16x32xbf16>, vector<8x32xf32> -> vector<8x32xf32>
    %110 = tpu.concatenate %52, %71, %90, %109 in 1 : vector<8x32xf32>, vector<8x32xf32>, vector<8x32xf32>, vector<8x32xf32> -> vector<8x128xf32>
    %111 = arith.truncf %110 : vector<8x128xf32> to vector<8x128xbf16>
    %c0_37 = arith.constant 0 : index
    %c0_38 = arith.constant 0 : index
    %c0_39 = arith.constant 0 : index
    %112 = vector.load %arg7[%c0_37, %c0_38, %c0_39] : memref<1x8x128xbf16, #tpu.memory_space<vmem>>, vector<1x8x128xbf16>
    %113 = vector.shape_cast %112 : vector<1x8x128xbf16> to vector<8x128xbf16>
    %114 = vector.shape_cast %111 : vector<8x128xbf16> to vector<1x8x128xbf16>
    tpu.vector_store %arg7[%c0_37, %c0_38, %c0_39], %114 {strides = array<i32>} : memref<1x8x128xbf16, #tpu.memory_space<vmem>>, vector<1x8x128xbf16>,
    return
  }
  func.func @transform_0(%arg0: i32, %arg1: i32) -> (i32, i32, i32) {
    %c0_i32 = arith.constant 0 : i32
    %c0_i32_0 = arith.constant 0 : i32
    return %arg0, %arg1, %c0_i32 : i32, i32, i32
  }
  func.func @transform_1(%arg0: i32, %arg1: i32) -> (i32, i32, i32) {
    %c1_i32 = arith.constant 1 : i32
    %0 = arith.subi %arg1, %c1_i32 : i32
    %c0_i32 = arith.constant 0 : i32
    %1 = arith.maxsi %0, %c0_i32 : i32
    %c0_i32_0 = arith.constant 0 : i32
    %c0_i32_1 = arith.constant 0 : i32
    return %arg0, %1, %c0_i32_0 : i32, i32, i32
  }
  func.func @transform_2(%arg0: i32, %arg1: i32) -> (i32, i32, i32) {
    %c0_i32 = arith.constant 0 : i32
    %c0_i32_0 = arith.constant 0 : i32
    return %arg0, %arg1, %c0_i32 : i32, i32, i32
  }
  func.func @transform_3(%arg0: i32, %arg1: i32) -> (i32, i32, i32) {
    %c1_i32 = arith.constant 1 : i32
    %0 = arith.subi %arg1, %c1_i32 : i32
    %c0_i32 = arith.constant 0 : i32
    %1 = arith.maxsi %0, %c0_i32 : i32
    %c0_i32_0 = arith.constant 0 : i32
    %c0_i32_1 = arith.constant 0 : i32
    return %arg0, %1, %c0_i32_0 : i32, i32, i32
  }
  func.func @transform_4(%arg0: i32, %arg1: i32) -> (i32, i32, i32) {
    %c0_i32 = arith.constant 0 : i32
    %c0_i32_0 = arith.constant 0 : i32
    return %arg0, %arg1, %c0_i32 : i32, i32, i32
  }
  func.func @transform_5(%arg0: i32, %arg1: i32) -> (i32, i32, i32) {
    %c0_i32 = arith.constant 0 : i32
    %c0_i32_0 = arith.constant 0 : i32
    return %arg0, %arg1, %c0_i32 : i32, i32, i32
  }
}

module attributes {stable_mosaic.version = 11 : i64} {
  func.func @_rmsnorm_kernel(%arg0: i32, %arg1: memref<32x128xf32, #tpu.memory_space<vmem>>, %arg2: memref<1x128xf32, #tpu.memory_space<vmem>>, %arg3: memref<32x128xf32, #tpu.memory_space<vmem>>) attributes {dimension_semantics = [#tpu.dimension_semantics<parallel>], iteration_bounds = array<i64: 1>, scalar_prefetch = 0 : i64, scratch_operands = 0 : i64, tpu.core_type = #tpu.core_type<tc>, window_params = [{transform_indices = @transform_0, window_bounds = array<i64: 32, 128>}, {pipeline_mode = #tpu.pipeline_mode<synchronous>, transform_indices = @transform_1, window_bounds = array<i64: 1, 128>}, {transform_indices = @transform_2, window_bounds = array<i64: 32, 128>}]} {
    %c0 = arith.constant 0 : index
    %c0_0 = arith.constant 0 : index
    %0 = vector.load %arg1[%c0, %c0_0] : memref<32x128xf32, #tpu.memory_space<vmem>>, vector<32x128xf32>
    %1 = arith.mulf %0, %0 : vector<32x128xf32>
    %cst = arith.constant dense<0.000000e+00> : vector<32xf32>
    %2 = vector.multi_reduction <add>, %1, %cst [1] : vector<32x128xf32> to vector<32xf32>
    %3 = vector.shape_cast %2 : vector<32xf32> to vector<32x1xf32>
    %cst_1 = arith.constant 1.280000e+02 : f32
    %4 = vector.broadcast %cst_1 : f32 to vector<32x1xf32>
    %5 = arith.divf %3, %4 : vector<32x1xf32>
    %c0_2 = arith.constant 0 : index
    %c0_3 = arith.constant 0 : index
    %6 = vector.load %arg2[%c0_2, %c0_3] : memref<1x128xf32, #tpu.memory_space<vmem>>, vector<1x128xf32>
    %cst_4 = arith.constant 9.99999974E-6 : f32
    %7 = vector.broadcast %cst_4 : f32 to vector<32x1xf32>
    %8 = arith.addf %5, %7 : vector<32x1xf32>
    %9 = math.rsqrt %8 : vector<32x1xf32>
    %10 = vector.broadcast %9 : vector<32x1xf32> to vector<32x128xf32>
    %11 = arith.mulf %0, %10 : vector<32x128xf32>
    %12 = vector.broadcast %6 : vector<1x128xf32> to vector<32x128xf32>
    %13 = arith.mulf %12, %11 : vector<32x128xf32>
    %c0_5 = arith.constant 0 : index
    %c0_6 = arith.constant 0 : index
    %14 = vector.load %arg3[%c0_5, %c0_6] : memref<32x128xf32, #tpu.memory_space<vmem>>, vector<32x128xf32>
    tpu.vector_store %arg3[%c0_5, %c0_6], %13 {strides = array<i32>} : memref<32x128xf32, #tpu.memory_space<vmem>>, vector<32x128xf32>,
    return
  }
  func.func @transform_0(%arg0: i32) -> (i32, i32) {
    %c0_i32 = arith.constant 0 : i32
    %c0_i32_0 = arith.constant 0 : i32
    return %arg0, %c0_i32 : i32, i32
  }
  func.func @transform_1(%arg0: i32) -> (i32, i32) {
    %c0_i32 = arith.constant 0 : i32
    %c0_i32_0 = arith.constant 0 : i32
    %c0_i32_1 = arith.constant 0 : i32
    return %c0_i32, %c0_i32_0 : i32, i32
  }
  func.func @transform_2(%arg0: i32) -> (i32, i32) {
    %c0_i32 = arith.constant 0 : i32
    %c0_i32_0 = arith.constant 0 : i32
    return %arg0, %c0_i32 : i32, i32
  }
}

</mosaic_0001>

<llo_original>
// kernel: split.0
$region0: #{split.0}
  #allocation0 [shape = 'u32[2048]{0}', space=vmem, size = 0x2000, scoped, tag = 'scoped memory for split.0']
  #allocation1 [shape = 'u32[2048]{0}', space=vmem, size = 0x2000, scoped, tag = 'scoped memory for split.0']
  #allocation2 [shape = 'u32[2048]{0}', space=vmem, size = 0x2000, scoped, tag = 'scoped memory for split.0']
  #allocation3 [shape = 'u32[2048]{0}', space=vmem, size = 0x2000, scoped, tag = 'scoped memory for split.0']
  #allocation4 [shape = 'u32[2048]{0}', space=vmem, size = 0x2000, scoped, tag = 'scoped memory for split.0']
  #allocation5 [shape = 's32[1]{0}', space=sflag, size = 0x4, scoped, tag = 'scoped memory for split.0']
  %s0 = inlined_call_operand.vmem [shape: f32[2,16,256], index: 0, kind: input, shape index: {}]
  %s1 = inlined_call_operand.vmem [shape: f32[2,16,128], index: 1, kind: output, shape index: {}]
  %v2 = vld [vmem:[%s0] sm:$0xff]
  %3 = vst [vmem:[%s1] sm:$0xff] %v2
  %s4 = scalar_lea.vmem %s0, 32
  %v5 = vld [vmem:[%s4] sm:$0xff]
  %s6 = scalar_lea.vmem %s1, 16
  %7 = vst [vmem:[%s6] sm:$0xff] %v5
  %s8 = scalar_lea.vmem %s0, 16
  %v9 = vld [vmem:[%s8] sm:$0xff]
  %s10 = scalar_lea.vmem %s1, 8
  %11 = vst [vmem:[%s10] sm:$0xff] %v9
  %s12 = scalar_lea.vmem %s0, 48
  %v13 = vld [vmem:[%s12] sm:$0xff]
  %s14 = scalar_lea.vmem %s1, 24
  %15 = vst [vmem:[%s14] sm:$0xff] %v13

// kernel: glm_transformer.9
$region0: #{glm_transformer.9}
  #allocation0 [shape = 'u32[]', space=smem, size = 0x4, offset = 0x4, fixed_abs, tag = 'smem constant byte address 0x4 - core index']
  #allocation1 [shape = 'u32[72,128]{1,0:T(1,128)}', space=vmem, size = 0x9000, scoped, tag = 'internal scratch']
  %s0 = inlined_call_operand.vmem [shape: f32[32,128], index: 0, kind: input, shape index: {}]
  %s1 = inlined_call_operand.vmem [shape: f32[1,128], index: 1, kind: input, shape index: {}]
  %s2 = inlined_call_operand.hbm [shape: bf16[128,256], index: 2, kind: input, shape index: {}]
  %s3 = inlined_call_operand.vmem [shape: f32[1,256], index: 3, kind: input, shape index: {}]
  %s4 = inlined_call_operand.vmem [shape: f32[32,256], index: 4, kind: output, shape index: {}]
  %s5 = sld [smem:[#allocation0]]
  $region30: #{glm_transformer.9} parent=0
    _
  %s7 = ssub.s32 1, %s5
  %s8 = scalar_select 0, %s7, %s5
  $region1: #{glm_transformer.9} parent=0
    #allocation2 [shape = 'u8[65536]{0}', space=vmem, size = 0x10000, scoped, tag = 'input window, operand 2, single buffered']
    #allocation3 [shape = 's32[1]{0}', space=sflag, size = 0x4, scoped, tag = 'scoped memory for glm_transformer.9']
    %9 = vsyncpa [#allocation3], 0
    // Predicated region
    $region2: #{glm_transformer.9} parent=1 // pred_check
      _
    $region3: #{glm_transformer.9} parent=1 // pred_check_branch
      %11 = sbr.rel (0) target = $region5
    $region4: #{glm_transformer.9} parent=1 // pred_region
      _
    $region5: #{glm_transformer.9} parent=1 // pred_fallthru
      _
    // Predicated region
    $region6: #{glm_transformer.9} parent=1 // pred_check
      _
    $region7: #{glm_transformer.9} parent=1 // pred_check_branch
      %13 = sbr.rel (0) target = $region9
    $region8: #{glm_transformer.9} parent=1 // pred_region
      _
    $region9: #{glm_transformer.9} parent=1 // pred_fallthru
      _
    // Predicated region
    $region10: #{glm_transformer.9} parent=1 // pred_check
      _
    $region11: #{glm_transformer.9} parent=1 // pred_check_branch
      %15 = sbr.rel (0) target = $region13
    $region12: #{glm_transformer.9} parent=1 // pred_region
      %17 = vsyncadd [#allocation3], 0
      %s18 = sshll.u32 %s2, 4
      %s19 = int_to_ptr.hbm [resolvable:$true] %s18
      %s20 = sshll.u32 [#allocation2], 4
      %s21 = int_to_ptr.vmem [resolvable:$true] %s20
      %26 = dma.hbm_to_vmem [thread:$0]  %s19, 2048, %s21, [#allocation3], 128, 128, 8
    $region13: #{glm_transformer.9} parent=1 // pred_fallthru
      _
    // Predicated region
    $region14: #{glm_transformer.9} parent=1 // pred_check
      _
    $region15: #{glm_transformer.9} parent=1 // pred_check_branch
      %28 = sbr.rel (0) target = $region17
    $region16: #{glm_transformer.9} parent=1 // pred_region
      _
    $region17: #{glm_transformer.9} parent=1 // pred_fallthru
      _
    // Predicated region
    $region18: #{glm_transformer.9} parent=1 // pred_check
      _
    $region19: #{glm_transformer.9} parent=1 // pred_check_branch
      %30 = sbr.rel (0) target = $region21
    $region20: #{glm_transformer.9} parent=1 // pred_region
      %32 = dma.done [#allocation3], 2048
    $region21: #{glm_transformer.9} parent=1 // pred_fallthru
      _
    %v33 = vld [vmem:[%s0] sm:$0xff]
    %v34 = vld [vmem:[%s0 + $0x8] sm:$0xff]
    %v35 = vld [vmem:[%s0 + $0x10] sm:$0xff]
    %v36 = vld [vmem:[%s0 + $0x18] sm:$0xff]
    %v37 = vmul.f32 %v33, %v33
    %v38 = vmul.f32 %v34, %v34
    %v39 = vmul.f32 %v35, %v35
    %v40 = vmul.f32 %v36, %v36
    %41 = vadd.xlane.f32.xlu0 %v37
    %v42 = vpop.xlane.xlu0 %41
    %43 = vadd.xlane.f32.xlu0 %v38
    %v44 = vpop.xlane.xlu0 %43
    %45 = vadd.xlane.f32.xlu0 %v39
    %v46 = vpop.xlane.xlu0 %45
    %47 = vadd.xlane.f32.xlu0 %v40
    %v48 = vpop.xlane.xlu0 %47
    %v49 = vrcp.pop 128.0
    %v50 = vmul.f32 128.0, %v49
    %v51 = vsub.f32 1.0, %v50
    %v52 = vmul.f32 %v49, %v51
    %v53 = vadd.f32 %v49, %v52
    %vm54 = vweird.f32 %v49
    %v55 = vsel %vm54, %v49, %v53
    %v56 = vmul.f32 %v42, %v55
    %v57 = vmul.f32 %v44, %v55
    %v58 = vmul.f32 %v46, %v55
    %v59 = vmul.f32 %v48, %v55
    %v60 = vadd.f32 %v56, 1e-05
    %v61 = vadd.f32 %v57, 1e-05
    %v62 = vadd.f32 %v58, 1e-05
    %v63 = vadd.f32 %v59, 1e-05
    %v64 = vrsqrt.pop %v60
    %v65 = vmul.f32 %v64, %v60
    %v66 = vmul.f32 %v65, %v64
    %v67 = vmul.f32 0.5, %v66
    %v68 = vsub.f32 1.5, %v67
    %v69 = vmul.f32 %v64, %v68
    %vm70 = vweird.f32 %v60
    %vm71 = vweird.f32 %v64
    %vm72 = vmor %vm70, %vm71
    %v73 = vsel %vm72, %v64, %v69
    %v74 = vrsqrt.pop %v61
    %v75 = vmul.f32 %v74, %v61
    %v76 = vmul.f32 %v75, %v74
    %v77 = vmul.f32 0.5, %v76
    %v78 = vsub.f32 1.5, %v77
    %v79 = vmul.f32 %v74, %v78
    %vm80 = vweird.f32 %v61
    %vm81 = vweird.f32 %v74
    %vm82 = vmor %vm80, %vm81
    %v83 = vsel %vm82, %v74, %v79
    %v84 = vrsqrt.pop %v62
    %v85 = vmul.f32 %v84, %v62
    %v86 = vmul.f32 %v85, %v84
    %v87 = vmul.f32 0.5, %v86
    %v88 = vsub.f32 1.5, %v87
    %v89 = vmul.f32 %v84, %v88
    %vm90 = vweird.f32 %v62
    %vm91 = vweird.f32 %v84
    %vm92 = vmor %vm90, %vm91
    %v93 = vsel %vm92, %v84, %v89
    %v94 = vrsqrt.pop %v63
    %v95 = vmul.f32 %v94, %v63
    %v96 = vmul.f32 %v95, %v94
    %v97 = vmul.f32 0.5, %v96
    %v98 = vsub.f32 1.5, %v97
    %v99 = vmul.f32 %v94, %v98
    %vm100 = vweird.f32 %v63
    %vm101 = vweird.f32 %v94
    %vm102 = vmor %vm100, %vm101
    %v103 = vsel %vm102, %v94, %v99
    %v104 = vmul.f32 %v33, %v73
    %v105 = vmul.f32 %v34, %v83
    %v106 = vmul.f32 %v35, %v93
    %v107 = vmul.f32 %v36, %v103
    %v108 = vld [vmem:[%s1] sm:$0x1]
    %v110 = vperm.slane %v108, 0
    %v112 = vmul.f32 %v104, %v110
    %v113 = vmul.f32 %v105, %v110
    %v114 = vmul.f32 %v106, %v110
    %v115 = vmul.f32 %v107, %v110
    %v116 = vpack.c.bf16 %v113, %v112
    %v117 = vpack.c.bf16 %v115, %v114
    %v118 = vld [vmem:[#allocation2] sm:$0xff]
    %v119 = vld [vmem:[#allocation2 + $0x8] sm:$0xff]
    %v120 = vld [vmem:[#allocation2 + $0x10] sm:$0xff]
    %v121 = vld [vmem:[#allocation2 + $0x18] sm:$0xff]
    %v122 = vld [vmem:[#allocation2 + $0x20] sm:$0xff]
    %v123 = vld [vmem:[#allocation2 + $0x28] sm:$0xff]
    %v124 = vld [vmem:[#allocation2 + $0x30] sm:$0xff]
    %v125 = vld [vmem:[#allocation2 + $0x38] sm:$0xff]
    %v126 = vld [vmem:[#allocation2 + $0x40] sm:$0xff]
    %v127 = vld [vmem:[#allocation2 + $0x48] sm:$0xff]
    %v128 = vld [vmem:[#allocation2 + $0x50] sm:$0xff]
    %v129 = vld [vmem:[#allocation2 + $0x58] sm:$0xff]
    %v130 = vld [vmem:[#allocation2 + $0x60] sm:$0xff]
    %v131 = vld [vmem:[#allocation2 + $0x68] sm:$0xff]
    %v132 = vld [vmem:[#allocation2 + $0x70] sm:$0xff]
    %v133 = vld [vmem:[#allocation2 + $0x78] sm:$0xff]
    %v134 = vld [vmem:[%s3] sm:$0x3]
    %v136 = vperm.slane %v134, 0
    %v137 = vperm.slane %v134, 1
    %v156 = vunpack.c.l.b16 %v118
    %v157 = vunpack.c.h.b16 %v118
    %v158 = vunpack.c.l.b16 %v119
    %v159 = vunpack.c.h.b16 %v119
    %v160 = vunpack.c.l.b16 %v120
    %v161 = vunpack.c.h.b16 %v120
    %v162 = vunpack.c.l.b16 %v121
    %v163 = vunpack.c.h.b16 %v121
    %v164 = vunpack.c.l.b16 %v122
    %v165 = vunpack.c.h.b16 %v122
    %v166 = vunpack.c.l.b16 %v123
    %v167 = vunpack.c.h.b16 %v123
    %v168 = vunpack.c.l.b16 %v124
    %v169 = vunpack.c.h.b16 %v124
    %v170 = vunpack.c.l.b16 %v125
    %v171 = vunpack.c.h.b16 %v125
    %v172 = vunpack.c.l.b16 %v126
    %v173 = vunpack.c.h.b16 %v126
    %v174 = vunpack.c.l.b16 %v127
    %v175 = vunpack.c.h.b16 %v127
    %v176 = vunpack.c.l.b16 %v128
    %v177 = vunpack.c.h.b16 %v128
    %v178 = vunpack.c.l.b16 %v129
    %v179 = vunpack.c.h.b16 %v129
    %v180 = vunpack.c.l.b16 %v130
    %v181 = vunpack.c.h.b16 %v130
    %v182 = vunpack.c.l.b16 %v131
    %v183 = vunpack.c.h.b16 %v131
    %v184 = vunpack.c.l.b16 %v132
    %v185 = vunpack.c.h.b16 %v132
    %v186 = vunpack.c.l.b16 %v133
    %v187 = vunpack.c.h.b16 %v133
    %v188 = vpack.c.b16 %v158, %v156
    %v189 = vpack.c.b16 %v159, %v157
    %v190 = vpack.c.b16 %v162, %v160
    %v191 = vpack.c.b16 %v163, %v161
    %v192 = vpack.c.b16 %v166, %v164
    %v193 = vpack.c.b16 %v167, %v165
    %v194 = vpack.c.b16 %v170, %v168
    %v195 = vpack.c.b16 %v171, %v169
    %v196 = vpack.c.b16 %v174, %v172
    %v197 = vpack.c.b16 %v175, %v173
    %v198 = vpack.c.b16 %v178, %v176
    %v199 = vpack.c.b16 %v179, %v177
    %v200 = vpack.c.b16 %v182, %v180
    %v201 = vpack.c.b16 %v183, %v181
    %v202 = vpack.c.b16 %v186, %v184
    %v203 = vpack.c.b16 %v187, %v185
    %220 = vmatpush.bf16.msra.mxu0 %v202
    %221 = vmatpush.bf16.msra.mxu0 %v200
    %222 = vmatpush.bf16.msra.mxu0 %v198
    %223 = vmatpush.bf16.msra.mxu0 %v196
    %224 = vmatpush.bf16.msra.mxu0 %v194
    %225 = vmatpush.bf16.msra.mxu0 %v192
    %226 = vmatpush.bf16.msra.mxu0 %v190
    %227 = vmatpush.bf16.msra.mxu0 %v188
    %228 = vmatmul.bf16.gmra.mxu0 %v116
    %v229 = vpop.f32.mrf.mxu0
    %v230 = vadd.f32 %v136, %v229
    %v231 = vpop.f32.mrf.mxu0
    %v232 = vadd.f32 %v136, %v231
    %233 = vmatmul.bf16.gmra.mxu0 %v117
    %v234 = vpop.f32.mrf.mxu0
    %v235 = vadd.f32 %v136, %v234
    %v236 = vpop.f32.mrf.mxu0
    %v237 = vadd.f32 %v136, %v236
    %238 = vdwg.mxu0
    %239 = vmatpush.bf16.msra.mxu0 %v203
    %240 = vmatpush.bf16.msra.mxu0 %v201
    %241 = vmatpush.bf16.msra.mxu0 %v199
    %242 = vmatpush.bf16.msra.mxu0 %v197
    %243 = vmatpush.bf16.msra.mxu0 %v195
    %244 = vmatpush.bf16.msra.mxu0 %v193
    %245 = vmatpush.bf16.msra.mxu0 %v191
    %246 = vmatpush.bf16.msra.mxu0 %v189
    %247 = vmatmul.bf16.gmra.mxu0 %v116
    %v248 = vpop.f32.mrf.mxu0
    %v249 = vadd.f32 %v137, %v248
    %v250 = vpop.f32.mrf.mxu0
    %v251 = vadd.f32 %v137, %v250
    %252 = vmatmul.bf16.gmra.mxu0 %v117
    %v253 = vpop.f32.mrf.mxu0
    %v254 = vadd.f32 %v137, %v253
    %v255 = vpop.f32.mrf.mxu0
    %v256 = vadd.f32 %v137, %v255
    %257 = vdwg.mxu0
    %258 = vst [vmem:[%s4] sm:$0xff] %v230
    %259 = vst [vmem:[%s4 + $0x8] sm:$0xff] %v249
    %260 = vst [vmem:[%s4 + $0x10] sm:$0xff] %v232
    %261 = vst [vmem:[%s4 + $0x18] sm:$0xff] %v251
    %262 = vst [vmem:[%s4 + $0x20] sm:$0xff] %v235
    %263 = vst [vmem:[%s4 + $0x28] sm:$0xff] %v254
    %264 = vst [vmem:[%s4 + $0x30] sm:$0xff] %v237
    %265 = vst [vmem:[%s4 + $0x38] sm:$0xff] %v256
    // Predicated region
    $region22: #{glm_transformer.9} parent=1 // pred_check
      _
    $region23: #{glm_transformer.9} parent=1 // pred_check_branch
      %267 = sbr.rel (0) target = $region25
    $region24: #{glm_transformer.9} parent=1 // pred_region
      _
    $region25: #{glm_transformer.9} parent=1 // pred_fallthru
      _
    // Predicated region
    $region26: #{glm_transformer.9} parent=1 // pred_check
      _
    $region27: #{glm_transformer.9} parent=1 // pred_check_branch
      %269 = sbr.rel (0) target = $region29
    $region28: #{glm_transformer.9} parent=1 // pred_region
      _
    $region29: #{glm_transformer.9} parent=1 // pred_fallthru
      _
    %270 = vsyncpa [#allocation3], 1

// kernel: split.15
$region0: #{split.15}
  #allocation0 [shape = 'u32[2048]{0}', space=vmem, size = 0x2000, scoped, tag = 'scoped memory for split.15']
  #allocation1 [shape = 'u32[2048]{0}', space=vmem, size = 0x2000, scoped, tag = 'scoped memory for split.15']
  #allocation2 [shape = 'u32[2048]{0}', space=vmem, size = 0x2000, scoped, tag = 'scoped memory for split.15']
  #allocation3 [shape = 'u32[2048]{0}', space=vmem, size = 0x2000, scoped, tag = 'scoped memory for split.15']
  #allocation4 [shape = 'u32[2048]{0}', space=vmem, size = 0x2000, scoped, tag = 'scoped memory for split.15']
  #allocation5 [shape = 's32[1]{0}', space=sflag, size = 0x4, scoped, tag = 'scoped memory for split.15']
  %s0 = inlined_call_operand.vmem [shape: f32[2,16,256], index: 0, kind: input, shape index: {}]
  %s1 = inlined_call_operand.vmem [shape: bf16[2,16,64], index: 1, kind: output, shape index: {}]
  %s2 = scalar_lea.vmem %s0, 8
  %s3 = scalar_lea.vmem %s0, 8
  %s4 = scalar_lea.vmem %s0, 8
  %v5 = vld [vmem:[%s4] sm:$0xff]
  %v6 = vlaneseq
  %v7 = vand.u32 %v6, 127
  %vm8 = vcmp.lt.s32.totalorder %v7, 64
  %v9 = vsel %vm8, 0, %v5
  %10 = vrot.lane.b32.xlu0 %v9, 64
  %v11 = vpop.permute.xlu0 %10
  %v12 = vpack.i.bf16 %v11, 0.0
  %v13 = vpack.c.bf16 0.0, %v12
  %14 = vst [vmem:[%s1] sm:$0xf] %v13
  %s15 = scalar_lea.vmem %s4, 32
  %v16 = vld [vmem:[%s15] sm:$0xff]
  %v17 = vlaneseq
  %v18 = vand.u32 %v17, 127
  %vm19 = vcmp.lt.s32.totalorder %v18, 64
  %v20 = vsel %vm19, 0, %v16
  %21 = vrot.lane.b32.xlu0 %v20, 64
  %v22 = vpop.permute.xlu0 %21
  %v23 = vpack.i.bf16 %v22, 0.0
  %s24 = scalar_lea.vmem %s1, 8
  %v25 = vpack.c.bf16 0.0, %v23
  %26 = vst [vmem:[%s24] sm:$0xf] %v25
  %s27 = scalar_lea.vmem %s4, 16
  %v28 = vld [vmem:[%s27] sm:$0xff]
  %v29 = vlaneseq
  %v30 = vand.u32 %v29, 127
  %vm31 = vcmp.lt.s32.totalorder %v30, 64
  %v32 = vsel %vm31, 0, %v28
  %33 = vrot.lane.b32.xlu0 %v32, 64
  %v34 = vpop.permute.xlu0 %33
  %v35 = vpack.i.bf16 %v34, 0.0
  %s36 = scalar_lea.vmem %s1, 4
  %v37 = vpack.c.bf16 0.0, %v35
  %38 = vst [vmem:[%s36] sm:$0xf] %v37
  %s39 = scalar_lea.vmem %s4, 48
  %v40 = vld [vmem:[%s39] sm:$0xff]
  %v41 = vlaneseq
  %v42 = vand.u32 %v41, 127
  %vm43 = vcmp.lt.s32.totalorder %v42, 64
  %v44 = vsel %vm43, 0, %v40
  %45 = vrot.lane.b32.xlu0 %v44, 64
  %v46 = vpop.permute.xlu0 %45
  %v47 = vpack.i.bf16 %v46, 0.0
  %s48 = scalar_lea.vmem %s1, 12
  %v49 = vpack.c.bf16 0.0, %v47
  %50 = vst [vmem:[%s48] sm:$0xf] %v49

// kernel: glm_transformer.11
$region0: #{glm_transformer.11}
  #allocation0 [shape = 'u32[]', space=smem, size = 0x4, offset = 0x4, fixed_abs, tag = 'smem constant byte address 0x4 - core index']
  #allocation1 [shape = 'u32[72,128]{1,0:T(1,128)}', space=vmem, size = 0x9000, scoped, tag = 'internal scratch']
  %s0 = inlined_call_operand.vmem [shape: bf16[32,128], index: 0, kind: input, shape index: {}]
  %s1 = inlined_call_operand.vmem [shape: bf16[128,128], index: 1, kind: input, shape index: {}]
  %s2 = inlined_call_operand.vmem [shape: f32[32,128], index: 2, kind: input, shape index: {}]
  %s3 = inlined_call_operand.vmem [shape: f32[32,128], index: 3, kind: output, shape index: {}]
  %s4 = sld [smem:[#allocation0]]
  $region22: #{glm_transformer.11} parent=0
    _
  %s6 = ssub.s32 1, %s4
  %s7 = scalar_select 0, %s6, %s4
  // Predicated region
  $region2: #{glm_transformer.11} parent=0 // pred_check
    _
  $region3: #{glm_transformer.11} parent=0 // pred_check_branch
    %9 = sbr.rel (0) target = $region5
  $region4: #{glm_transformer.11} parent=0 // pred_region
    _
  $region5: #{glm_transformer.11} parent=0 // pred_fallthru
    _
  // Predicated region
  $region6: #{glm_transformer.11} parent=0 // pred_check
    _
  $region7: #{glm_transformer.11} parent=0 // pred_check_branch
    %11 = sbr.rel (0) target = $region9
  $region8: #{glm_transformer.11} parent=0 // pred_region
    _
  $region9: #{glm_transformer.11} parent=0 // pred_fallthru
    _
  // Predicated region
  $region10: #{glm_transformer.11} parent=0 // pred_check
    _
  $region11: #{glm_transformer.11} parent=0 // pred_check_branch
    %13 = sbr.rel (0) target = $region13
  $region12: #{glm_transformer.11} parent=0 // pred_region
    _
  $region13: #{glm_transformer.11} parent=0 // pred_fallthru
    _
  %v14 = vld [vmem:[%s0] sm:$0xf]
  %v15 = vld [vmem:[%s0 + $0x4] sm:$0xf]
  %v16 = vld [vmem:[%s0 + $0x8] sm:$0xf]
  %v17 = vld [vmem:[%s0 + $0xc] sm:$0xf]
  %v18 = vld [vmem:[%s1] sm:$0xf]
  %v19 = vld [vmem:[%s1 + $0x4] sm:$0xf]
  %v20 = vld [vmem:[%s1 + $0x8] sm:$0xf]
  %v21 = vld [vmem:[%s1 + $0xc] sm:$0xf]
  %v22 = vld [vmem:[%s1 + $0x10] sm:$0xf]
  %v23 = vld [vmem:[%s1 + $0x14] sm:$0xf]
  %v24 = vld [vmem:[%s1 + $0x18] sm:$0xf]
  %v25 = vld [vmem:[%s1 + $0x1c] sm:$0xf]
  %v26 = vld [vmem:[%s1 + $0x20] sm:$0xf]
  %v27 = vld [vmem:[%s1 + $0x24] sm:$0xf]
  %v28 = vld [vmem:[%s1 + $0x28] sm:$0xf]
  %v29 = vld [vmem:[%s1 + $0x2c] sm:$0xf]
  %v30 = vld [vmem:[%s1 + $0x30] sm:$0xf]
  %v31 = vld [vmem:[%s1 + $0x34] sm:$0xf]
  %v32 = vld [vmem:[%s1 + $0x38] sm:$0xf]
  %v33 = vld [vmem:[%s1 + $0x3c] sm:$0xf]
  %v38 = vunpack.c.l.b16 %v14
  %v39 = vunpack.c.l.b16 %v15
  %v40 = vunpack.c.l.b16 %v16
  %v41 = vunpack.c.l.b16 %v17
  %v42 = vpack.c.b16 %v39, %v38
  %v43 = vpack.c.b16 %v41, %v40
  %v62 = vunpack.c.l.b16 %v18
  %v63 = vunpack.c.l.b16 %v19
  %v64 = vunpack.c.l.b16 %v20
  %v65 = vunpack.c.l.b16 %v21
  %v66 = vunpack.c.l.b16 %v22
  %v67 = vunpack.c.l.b16 %v23
  %v68 = vunpack.c.l.b16 %v24
  %v69 = vunpack.c.l.b16 %v25
  %v70 = vunpack.c.l.b16 %v26
  %v71 = vunpack.c.l.b16 %v27
  %v72 = vunpack.c.l.b16 %v28
  %v73 = vunpack.c.l.b16 %v29
  %v74 = vunpack.c.l.b16 %v30
  %v75 = vunpack.c.l.b16 %v31
  %v76 = vunpack.c.l.b16 %v32
  %v77 = vunpack.c.l.b16 %v33
  %v78 = vpack.c.b16 %v63, %v62
  %v79 = vpack.c.b16 %v65, %v64
  %v80 = vpack.c.b16 %v67, %v66
  %v81 = vpack.c.b16 %v69, %v68
  %v82 = vpack.c.b16 %v71, %v70
  %v83 = vpack.c.b16 %v73, %v72
  %v84 = vpack.c.b16 %v75, %v74
  %v85 = vpack.c.b16 %v77, %v76
  %94 = vmatpush.bf16.msra.mxu0 %v85
  %95 = vmatpush.bf16.msra.mxu0 %v84
  %96 = vmatpush.bf16.msra.mxu0 %v83
  %97 = vmatpush.bf16.msra.mxu0 %v82
  %98 = vmatpush.bf16.msra.mxu0 %v81
  %99 = vmatpush.bf16.msra.mxu0 %v80
  %100 = vmatpush.bf16.msra.mxu0 %v79
  %101 = vmatpush.bf16.msra.mxu0 %v78
  %102 = vmatmul.bf16.gmra.mxu0 %v42
  %v103 = vpop.f32.mrf.mxu0
  %v104 = vadd.f32 0.0, %v103
  %v105 = vpop.f32.mrf.mxu0
  %v106 = vadd.f32 0.0, %v105
  %107 = vmatmul.bf16.gmra.mxu0 %v43
  %v108 = vpop.f32.mrf.mxu0
  %v109 = vadd.f32 0.0, %v108
  %v110 = vpop.f32.mrf.mxu0
  %v111 = vadd.f32 0.0, %v110
  %112 = vdwg.mxu0
  %v113 = vld [vmem:[%s2] sm:$0xff]
  %v114 = vld [vmem:[%s2 + $0x8] sm:$0xff]
  %v115 = vld [vmem:[%s2 + $0x10] sm:$0xff]
  %v116 = vld [vmem:[%s2 + $0x18] sm:$0xff]
  %v117 = vadd.f32 %v113, %v104
  %v118 = vadd.f32 %v114, %v106
  %v119 = vadd.f32 %v115, %v109
  %v120 = vadd.f32 %v116, %v111
  %121 = vst [vmem:[%s3] sm:$0xff] %v117
  %122 = vst [vmem:[%s3 + $0x8] sm:$0xff] %v118
  %123 = vst [vmem:[%s3 + $0x10] sm:$0xff] %v119
  %124 = vst [vmem:[%s3 + $0x18] sm:$0xff] %v120
  // Predicated region
  $region14: #{glm_transformer.11} parent=0 // pred_check
    _
  $region15: #{glm_transformer.11} parent=0 // pred_check_branch
    %126 = sbr.rel (0) target = $region17
  $region16: #{glm_transformer.11} parent=0 // pred_region
    _
  $region17: #{glm_transformer.11} parent=0 // pred_fallthru
    _
  // Predicated region
  $region18: #{glm_transformer.11} parent=0 // pred_check
    _
  $region19: #{glm_transformer.11} parent=0 // pred_check_branch
    %128 = sbr.rel (0) target = $region21
  $region20: #{glm_transformer.11} parent=0 // pred_region
    _
  $region21: #{glm_transformer.11} parent=0 // pred_fallthru
    _

// kernel: glm_transformer.10
$region0: #{glm_transformer.10}
  #allocation0 [shape = 'u32[]', space=smem, size = 0x4, offset = 0x4, fixed_abs, tag = 'smem constant byte address 0x4 - core index']
  #allocation1 [shape = 'u32[72,128]{1,0:T(1,128)}', space=vmem, size = 0x9000, scoped, tag = 'internal scratch']
  %s0 = inlined_call_operand.vmem [shape: bf16[2,16,128], index: 0, kind: input, shape index: {}]
  %s1 = inlined_call_operand.vmem [shape: bf16[2,16,64], index: 1, kind: input, shape index: {}, may-alias: {1,2}]
  %s2 = inlined_call_operand.vmem [shape: bf16[2,16,64], index: 2, kind: input, shape index: {}, may-alias: {1,2}]
  %s3 = inlined_call_operand.vmem [shape: bf16[2,16,64], index: 3, kind: input, shape index: {}, may-alias: {3,4}]
  %s4 = inlined_call_operand.vmem [shape: bf16[2,16,64], index: 4, kind: input, shape index: {}, may-alias: {3,4}]
  %s5 = inlined_call_operand.vmem [shape: bf16[2,16,128], index: 5, kind: output, shape index: {}]
  %s6 = sld [smem:[#allocation0]]
  $region53: #{glm_transformer.10} parent=0
    _
  %s8 = ssub.s32 1, %s6
  %s9 = scalar_select 0, %s8, %s6
  loop: start=0, step=1, limit=6
  $region2: #{glm_transformer.10} parent=0 // loop_pre_header
    _
  $region3: #{glm_transformer.10} parent=0 // loop_header
    %s11 = sphi 0, %s15
    %p12 = scmp.ge.s32.totalorder %s11, 6
    %s18 = sphi 0, %s30
    %s19 = sphi 0, %s26
    %s20 = sphi 0, %s18
    %s21 = sphi 0, %s19
    %s22 = sphi 0, %s20
    %s23 = sphi 0, %s21
    %s35 = sphi 0, %s37
    %s38 = sphi 0, %s35
    %s39 = sphi 0, %s38
    %s55 = sphi 0, %s39
    %s69 = sphi 0, %s71
    %s72 = sphi 0, %s69
    %s73 = sphi 0, %s72
    %s89 = sphi 0, %s73
    %s97 = sphi 0, %s99
    %s100 = sphi 0, %s97
    %s101 = sphi 0, %s100
    %s117 = sphi 0, %s101
    %s131 = sphi 0, %s133
    %s134 = sphi 0, %s131
    %s135 = sphi 0, %s134
    %s151 = sphi 0, %s135
    %s159 = sphi 0, %s161
    %s162 = sphi 0, %s159
    %s163 = sphi 0, %s162
    %s179 = sphi 0, %s163
    %s187 = sphi 0, %s189
    %s190 = sphi 0, %s187
    %s191 = sphi 0, %s190
    %s207 = sphi 0, %s191
  $region4: #{glm_transformer.10} parent=0 // loop_header_branch
    %14 = sbr.rel (%p12) target = $region8
  $region5: #{glm_transformer.10} parent=0 // loop_body
    %s16 = ssub.s32 %s11, 1
    %s17 = ssub.s32 %s11, 2
    %s24 = sadd.s32 1, %s19
    %p25 = scmp.ge.s32.totalorder %s24, 2
    %s26 = scalar_select %p25, 0, %s24
    %s27 = sadd.s32 1, %s18
    %s28 = scalar_select %p25, %s27, %s18
    %p29 = scmp.ge.s32.totalorder %s28, 2
    %s30 = scalar_select %p29, 0, %s28
    %s31 = ssub.s32 %s18, %s30
    %s32 = ssub.s32 %s19, %s26
    %s33 = sor.u32 %s31, %s32
    %p34 = scmp.eq.s32.totalorder %s33, 0
    %s36 = sadd.s32 %s35, 1
    %s37 = scalar_select %p34, %s35, %s36
    %p40 = pneg %p34
    %p41 = scmp.eq.s32.totalorder %s11, 3
    %p42 = por %p40, %p41
    %p43 = scmp.ne.s32.totalorder %s35, %s38
    %p44 = scmp.eq.s32.totalorder %s11, 0
    %p45 = por %p43, %p44
    %p46 = scmp.ne.s32.totalorder %s35, %s38
    %p47 = scmp.eq.s32.totalorder %s16, 3
    %p48 = por %p46, %p47
    %p49 = scmp.ne.s32.totalorder %s38, %s39
    %p50 = scmp.eq.s32.totalorder %s16, 0
    %p51 = por %p49, %p50
    %p52 = scmp.ne.s32.totalorder %s38, %s39
    %p53 = scmp.eq.s32.totalorder %s17, 3
    %p54 = por %p52, %p53
    %p56 = scmp.ne.s32.totalorder %s39, %s55
    %p57 = scmp.eq.s32.totalorder %s17, 0
    %p58 = por %p56, %p57
    %s59 = ssub.s32 %s19, 1
    %p60 = scmp.gt.s32.totalorder %s59, 0
    %s61 = scalar_select %p60, %s59, 0
    %s62 = ssub.s32 %s26, 1
    %p63 = scmp.gt.s32.totalorder %s62, 0
    %s64 = scalar_select %p63, %s62, 0
    %s65 = ssub.s32 %s18, %s30
    %s66 = ssub.s32 %s61, %s64
    %s67 = sor.u32 %s65, %s66
    %p68 = scmp.eq.s32.totalorder %s67, 0
    %s70 = sadd.s32 %s69, 1
    %s71 = scalar_select %p68, %s69, %s70
    %p74 = pneg %p68
    %p75 = scmp.eq.s32.totalorder %s11, 3
    %p76 = por %p74, %p75
    %p77 = scmp.ne.s32.totalorder %s69, %s72
    %p78 = scmp.eq.s32.totalorder %s11, 0
    %p79 = por %p77, %p78
    %p80 = scmp.ne.s32.totalorder %s69, %s72
    %p81 = scmp.eq.s32.totalorder %s16, 3
    %p82 = por %p80, %p81
    %p83 = scmp.ne.s32.totalorder %s72, %s73
    %p84 = scmp.eq.s32.totalorder %s16, 0
    %p85 = por %p83, %p84
    %p86 = scmp.ne.s32.totalorder %s72, %s73
    %p87 = scmp.eq.s32.totalorder %s17, 3
    %p88 = por %p86, %p87
    %p90 = scmp.ne.s32.totalorder %s73, %s89
    %p91 = scmp.eq.s32.totalorder %s17, 0
    %p92 = por %p90, %p91
    %s93 = ssub.s32 %s18, %s30
    %s94 = ssub.s32 %s19, %s26
    %s95 = sor.u32 %s93, %s94
    %p96 = scmp.eq.s32.totalorder %s95, 0
    %s98 = sadd.s32 %s97, 1
    %s99 = scalar_select %p96, %s97, %s98
    %p102 = pneg %p96
    %p103 = scmp.eq.s32.totalorder %s11, 3
    %p104 = por %p102, %p103
    %p105 = scmp.ne.s32.totalorder %s97, %s100
    %p106 = scmp.eq.s32.totalorder %s11, 0
    %p107 = por %p105, %p106
    %p108 = scmp.ne.s32.totalorder %s97, %s100
    %p109 = scmp.eq.s32.totalorder %s16, 3
    %p110 = por %p108, %p109
    %p111 = scmp.ne.s32.totalorder %s100, %s101
    %p112 = scmp.eq.s32.totalorder %s16, 0
    %p113 = por %p111, %p112
    %p114 = scmp.ne.s32.totalorder %s100, %s101
    %p115 = scmp.eq.s32.totalorder %s17, 3
    %p116 = por %p114, %p115
    %p118 = scmp.ne.s32.totalorder %s101, %s117
    %p119 = scmp.eq.s32.totalorder %s17, 0
    %p120 = por %p118, %p119
    %s121 = ssub.s32 %s19, 1
    %p122 = scmp.gt.s32.totalorder %s121, 0
    %s123 = scalar_select %p122, %s121, 0
    %s124 = ssub.s32 %s26, 1
    %p125 = scmp.gt.s32.totalorder %s124, 0
    %s126 = scalar_select %p125, %s124, 0
    %s127 = ssub.s32 %s18, %s30
    %s128 = ssub.s32 %s123, %s126
    %s129 = sor.u32 %s127, %s128
    %p130 = scmp.eq.s32.totalorder %s129, 0
    %s132 = sadd.s32 %s131, 1
    %s133 = scalar_select %p130, %s131, %s132
    %p136 = pneg %p130
    %p137 = scmp.eq.s32.totalorder %s11, 3
    %p138 = por %p136, %p137
    %p139 = scmp.ne.s32.totalorder %s131, %s134
    %p140 = scmp.eq.s32.totalorder %s11, 0
    %p141 = por %p139, %p140
    %p142 = scmp.ne.s32.totalorder %s131, %s134
    %p143 = scmp.eq.s32.totalorder %s16, 3
    %p144 = por %p142, %p143
    %p145 = scmp.ne.s32.totalorder %s134, %s135
    %p146 = scmp.eq.s32.totalorder %s16, 0
    %p147 = por %p145, %p146
    %p148 = scmp.ne.s32.totalorder %s134, %s135
    %p149 = scmp.eq.s32.totalorder %s17, 3
    %p150 = por %p148, %p149
    %p152 = scmp.ne.s32.totalorder %s135, %s151
    %p153 = scmp.eq.s32.totalorder %s17, 0
    %p154 = por %p152, %p153
    %s155 = ssub.s32 %s18, %s30
    %s156 = ssub.s32 %s19, %s26
    %s157 = sor.u32 %s155, %s156
    %p158 = scmp.eq.s32.totalorder %s157, 0
    %s160 = sadd.s32 %s159, 1
    %s161 = scalar_select %p158, %s159, %s160
    %p164 = pneg %p158
    %p165 = scmp.eq.s32.totalorder %s11, 3
    %p166 = por %p164, %p165
    %p167 = scmp.ne.s32.totalorder %s159, %s162
    %p168 = scmp.eq.s32.totalorder %s11, 0
    %p169 = por %p167, %p168
    %p170 = scmp.ne.s32.totalorder %s159, %s162
    %p171 = scmp.eq.s32.totalorder %s16, 3
    %p172 = por %p170, %p171
    %p173 = scmp.ne.s32.totalorder %s162, %s163
    %p174 = scmp.eq.s32.totalorder %s16, 0
    %p175 = por %p173, %p174
    %p176 = scmp.ne.s32.totalorder %s162, %s163
    %p177 = scmp.eq.s32.totalorder %s17, 3
    %p178 = por %p176, %p177
    %p180 = scmp.ne.s32.totalorder %s163, %s179
    %p181 = scmp.eq.s32.totalorder %s17, 0
    %p182 = por %p180, %p181
    %s183 = ssub.s32 %s18, %s30
    %s184 = ssub.s32 %s19, %s26
    %s185 = sor.u32 %s183, %s184
    %p186 = scmp.eq.s32.totalorder %s185, 0
    %s188 = sadd.s32 %s187, 1
    %s189 = scalar_select %p186, %s187, %s188
    %p192 = pneg %p186
    %p193 = scmp.eq.s32.totalorder %s11, 3
    %p194 = por %p192, %p193
    %p195 = scmp.ne.s32.totalorder %s187, %s190
    %p196 = scmp.eq.s32.totalorder %s11, 0
    %p197 = por %p195, %p196
    %p198 = scmp.ne.s32.totalorder %s187, %s190
    %p199 = scmp.eq.s32.totalorder %s16, 3
    %p200 = por %p198, %p199
    %p201 = scmp.ne.s32.totalorder %s190, %s191
    %p202 = scmp.eq.s32.totalorder %s16, 0
    %p203 = por %p201, %p202
    %p204 = scmp.ne.s32.totalorder %s190, %s191
    %p205 = scmp.eq.s32.totalorder %s17, 3
    %p206 = por %p204, %p205
    %p208 = scmp.ne.s32.totalorder %s191, %s207
    %p209 = scmp.eq.s32.totalorder %s17, 0
    %p210 = por %p208, %p209
    %p211 = scmp.le.s32.totalorder 1, %s11
    %p212 = scmp.lt.s32.totalorder %s11, 5
    %p213 = pnand %p211, %p212
    %p214 = pneg %p213
    // Predicated region
    $region9: #{glm_transformer.10} parent=5 // pred_check
      _
    $region10: #{glm_transformer.10} parent=5 // pred_check_branch
      %216 = sbr.rel (%p213) target = $region12
    $region11: #{glm_transformer.10} parent=5 // pred_region
      %s217 = ssub.s32 %s11, 1
    $region12: #{glm_transformer.10} parent=5 // pred_fallthru
      _
    %p218 = scmp.lt.s32.totalorder %s11, 4
    // Predicated region
    $region13: #{glm_transformer.10} parent=5 // pred_check
      %p219 = pneg %p218
    $region14: #{glm_transformer.10} parent=5 // pred_check_branch
      %221 = sbr.rel (%p219) target = $region16
    $region15: #{glm_transformer.10} parent=5 // pred_region
      // Predicated region
      $region17: #{glm_transformer.10} parent=15 // pred_check
        %p222 = pneg %p45
      $region18: #{glm_transformer.10} parent=15 // pred_check_branch
        %224 = sbr.rel (%p222) target = $region20
      $region19: #{glm_transformer.10} parent=15 // pred_region
        %p225 = scmp.lt.s32.totalorder %s18, 1
        %s226 = scalar_select %p225, %s18, 1
        %p227 = scmp.lt.s32.totalorder %s19, 1
        %s228 = scalar_select %p227, %s19, 1
        %s229 = smul.addr %s226, 2
        %s230 = sadd.s32 %s228, %s229
        %s231 = smul.addr %s230, 4
        %s232 = scalar_lea.vmem %s0, %s231
      $region20: #{glm_transformer.10} parent=15 // pred_fallthru
        _
      // Predicated region
      $region21: #{glm_transformer.10} parent=15 // pred_check
        %p233 = pneg %p79
      $region22: #{glm_transformer.10} parent=15 // pred_check_branch
        %235 = sbr.rel (%p233) target = $region24
      $region23: #{glm_transformer.10} parent=15 // pred_region
        %s236 = ssub.s32 %s19, 1
        %p237 = scmp.gt.s32.totalorder %s236, 0
        %s238 = scalar_select %p237, %s236, 0
        %p239 = scmp.lt.s32.totalorder %s18, 1
        %s240 = scalar_select %p239, %s18, 1
        %p241 = scmp.lt.s32.totalorder %s238, 1
        %s242 = scalar_select %p241, %s238, 1
        %s243 = smul.addr %s240, 2
        %s244 = sadd.s32 %s242, %s243
        %s245 = smul.addr %s244, 4
        %s246 = scalar_lea.vmem %s1, %s245
        %s247 = ssub.s32 %s19, 1
        %p248 = scmp.gt.s32.totalorder %s247, 0
        %s249 = scalar_select %p248, %s247, 0
      $region24: #{glm_transformer.10} parent=15 // pred_fallthru
        _
      // Predicated region
      $region25: #{glm_transformer.10} parent=15 // pred_check
        %p250 = pneg %p107
      $region26: #{glm_transformer.10} parent=15 // pred_check_branch
        %252 = sbr.rel (%p250) target = $region28
      $region27: #{glm_transformer.10} parent=15 // pred_region
        %p253 = scmp.lt.s32.totalorder %s18, 1
        %s254 = scalar_select %p253, %s18, 1
        %p255 = scmp.lt.s32.totalorder %s19, 1
        %s256 = scalar_select %p255, %s19, 1
        %s257 = smul.addr %s254, 2
        %s258 = sadd.s32 %s256, %s257
        %s259 = smul.addr %s258, 4
        %s260 = scalar_lea.vmem %s2, %s259
      $region28: #{glm_transformer.10} parent=15 // pred_fallthru
        _
      // Predicated region
      $region29: #{glm_transformer.10} parent=15 // pred_check
        %p261 = pneg %p141
      $region30: #{glm_transformer.10} parent=15 // pred_check_branch
        %263 = sbr.rel (%p261) target = $region32
      $region31: #{glm_transformer.10} parent=15 // pred_region
        %s264 = ssub.s32 %s19, 1
        %p265 = scmp.gt.s32.totalorder %s264, 0
        %s266 = scalar_select %p265, %s264, 0
        %p267 = scmp.lt.s32.totalorder %s18, 1
        %s268 = scalar_select %p267, %s18, 1
        %p269 = scmp.lt.s32.totalorder %s266, 1
        %s270 = scalar_select %p269, %s266, 1
        %s271 = smul.addr %s268, 2
        %s272 = sadd.s32 %s270, %s271
        %s273 = smul.addr %s272, 4
        %s274 = scalar_lea.vmem %s3, %s273
        %s275 = ssub.s32 %s19, 1
        %p276 = scmp.gt.s32.totalorder %s275, 0
        %s277 = scalar_select %p276, %s275, 0
      $region32: #{glm_transformer.10} parent=15 // pred_fallthru
        _
      // Predicated region
      $region33: #{glm_transformer.10} parent=15 // pred_check
        %p278 = pneg %p169
      $region34: #{glm_transformer.10} parent=15 // pred_check_branch
        %280 = sbr.rel (%p278) target = $region36
      $region35: #{glm_transformer.10} parent=15 // pred_region
        %p281 = scmp.lt.s32.totalorder %s18, 1
        %s282 = scalar_select %p281, %s18, 1
        %p283 = scmp.lt.s32.totalorder %s19, 1
        %s284 = scalar_select %p283, %s19, 1
        %s285 = smul.addr %s282, 2
        %s286 = sadd.s32 %s284, %s285
        %s287 = smul.addr %s286, 4
        %s288 = scalar_lea.vmem %s4, %s287
      $region36: #{glm_transformer.10} parent=15 // pred_fallthru
        _
    $region16: #{glm_transformer.10} parent=5 // pred_fallthru
      _
    %p289 = scmp.le.s32.totalorder 1, %s11
    %p290 = scmp.lt.s32.totalorder %s11, 5
    %p291 = pnand %p289, %p290
    %p292 = pneg %p291
    // Predicated region
    $region37: #{glm_transformer.10} parent=5 // pred_check
      _
    $region38: #{glm_transformer.10} parent=5 // pred_check_branch
      %294 = sbr.rel (%p291) target = $region40
    $region39: #{glm_transformer.10} parent=5 // pred_region
      %s295 = ssub.s32 %s11, 1
      %p296 = scmp.lt.s32.totalorder %s20, 1
      %s297 = scalar_select %p296, %s20, 1
      %p298 = scmp.lt.s32.totalorder %s21, 1
      %s299 = scalar_select %p298, %s21, 1
      %s300 = smul.addr %s297, 2
      %s301 = sadd.s32 %s299, %s300
      %s302 = smul.addr %s301, 4
      %s303 = scalar_lea.vmem %s0, %s302
      %p304 = pneg %p51
      %p305 = pneg %p48
      %s306 = ssub.s32 %s21, 1
      %p307 = scmp.gt.s32.totalorder %s306, 0
      %s308 = scalar_select %p307, %s306, 0
      %p309 = scmp.lt.s32.totalorder %s20, 1
      %s310 = scalar_select %p309, %s20, 1
      %p311 = scmp.lt.s32.totalorder %s308, 1
      %s312 = scalar_select %p311, %s308, 1
      %s313 = smul.addr %s310, 2
      %s314 = sadd.s32 %s312, %s313
      %s315 = smul.addr %s314, 4
      %s316 = scalar_lea.vmem %s1, %s315
      %p317 = pneg %p85
      %p318 = pneg %p82
      %p319 = scmp.lt.s32.totalorder %s20, 1
      %s320 = scalar_select %p319, %s20, 1
      %p321 = scmp.lt.s32.totalorder %s21, 1
      %s322 = scalar_select %p321, %s21, 1
      %s323 = smul.addr %s320, 2
      %s324 = sadd.s32 %s322, %s323
      %s325 = smul.addr %s324, 4
      %s326 = scalar_lea.vmem %s2, %s325
      %p327 = pneg %p113
      %p328 = pneg %p110
      %s329 = ssub.s32 %s21, 1
      %p330 = scmp.gt.s32.totalorder %s329, 0
      %s331 = scalar_select %p330, %s329, 0
      %p332 = scmp.lt.s32.totalorder %s20, 1
      %s333 = scalar_select %p332, %s20, 1
      %p334 = scmp.lt.s32.totalorder %s331, 1
      %s335 = scalar_select %p334, %s331, 1
      %s336 = smul.addr %s333, 2
      %s337 = sadd.s32 %s335, %s336
      %s338 = smul.addr %s337, 4
      %s339 = scalar_lea.vmem %s3, %s338
      %p340 = pneg %p147
      %p341 = pneg %p144
      %p342 = scmp.lt.s32.totalorder %s20, 1
      %s343 = scalar_select %p342, %s20, 1
      %p344 = scmp.lt.s32.totalorder %s21, 1
      %s345 = scalar_select %p344, %s21, 1
      %s346 = smul.addr %s343, 2
      %s347 = sadd.s32 %s345, %s346
      %s348 = smul.addr %s347, 4
      %s349 = scalar_lea.vmem %s4, %s348
      %p350 = pneg %p175
      %p351 = pneg %p172
      %p352 = pneg %p203
      %p353 = pneg %p200
      %p354 = scmp.lt.s32.totalorder %s20, 1
      %s355 = scalar_select %p354, %s20, 1
      %p356 = scmp.lt.s32.totalorder %s21, 1
      %s357 = scalar_select %p356, %s21, 1
      %s358 = smul.addr %s355, 2
      %s359 = sadd.s32 %s357, %s358
      %s360 = smul.addr %s359, 4
      %s361 = scalar_lea.vmem %s5, %s360
      %p362 = scmp.lt.s32.totalorder %s20, 1
      %s363 = scalar_select %p362, %s20, 1
      %p364 = scmp.lt.s32.totalorder %s21, 1
      %s365 = scalar_select %p364, %s21, 1
      %s366 = smul.addr %s363, 2
      %s367 = sadd.s32 %s365, %s366
      %s368 = smul.addr %s367, 4
      %s369 = scalar_lea.vmem %s0, %s368
      %s370 = ssub.s32 %s21, 1
      %p371 = scmp.gt.s32.totalorder %s370, 0
      %s372 = scalar_select %p371, %s370, 0
      %p373 = scmp.lt.s32.totalorder %s20, 1
      %s374 = scalar_select %p373, %s20, 1
      %p375 = scmp.lt.s32.totalorder %s372, 1
      %s376 = scalar_select %p375, %s372, 1
      %s377 = smul.addr %s374, 2
      %s378 = sadd.s32 %s376, %s377
      %s379 = smul.addr %s378, 4
      %s380 = scalar_lea.vmem %s1, %s379
      %s381 = ssub.s32 %s21, 1
      %p382 = scmp.gt.s32.totalorder %s381, 0
      %s383 = scalar_select %p382, %s381, 0
      %p384 = scmp.lt.s32.totalorder %s20, 1
      %s385 = scalar_select %p384, %s20, 1
      %p386 = scmp.lt.s32.totalorder %s21, 1
      %s387 = scalar_select %p386, %s21, 1
      %s388 = smul.addr %s385, 2
      %s389 = sadd.s32 %s387, %s388
      %s390 = smul.addr %s389, 4
      %s391 = scalar_lea.vmem %s2, %s390
      %s392 = ssub.s32 %s21, 1
      %p393 = scmp.gt.s32.totalorder %s392, 0
      %s394 = scalar_select %p393, %s392, 0
      %p395 = scmp.lt.s32.totalorder %s20, 1
      %s396 = scalar_select %p395, %s20, 1
      %p397 = scmp.lt.s32.totalorder %s394, 1
      %s398 = scalar_select %p397, %s394, 1
      %s399 = smul.addr %s396, 2
      %s400 = sadd.s32 %s398, %s399
      %s401 = smul.addr %s400, 4
      %s402 = scalar_lea.vmem %s3, %s401
      %s403 = ssub.s32 %s21, 1
      %p404 = scmp.gt.s32.totalorder %s403, 0
      %s405 = scalar_select %p404, %s403, 0
      %p406 = scmp.lt.s32.totalorder %s20, 1
      %s407 = scalar_select %p406, %s20, 1
      %p408 = scmp.lt.s32.totalorder %s21, 1
      %s409 = scalar_select %p408, %s21, 1
      %s410 = smul.addr %s407, 2
      %s411 = sadd.s32 %s409, %s410
      %s412 = smul.addr %s411, 4
      %s413 = scalar_lea.vmem %s4, %s412
      %p414 = scmp.lt.s32.totalorder %s20, 1
      %s415 = scalar_select %p414, %s20, 1
      %p416 = scmp.lt.s32.totalorder %s21, 1
      %s417 = scalar_select %p416, %s21, 1
      %s418 = smul.addr %s415, 2
      %s419 = sadd.s32 %s417, %s418
      %s420 = smul.addr %s419, 4
      %s421 = scalar_lea.vmem %s5, %s420
      %v423 = vld [vmem:[%s369] sm:$0xf]
      %v424 = vunpack.c.l.bf16 %v423
      %v425 = vmul.f32 %v424, 0.17677669
      %v426 = vld [vmem:[%s380] sm:$0xf]
      %v427 = vld [vmem:[%s391] sm:$0xf]
      %v429 = vunpack.c.l.b16 %v427
      %v430 = vpack.c.b16 %v429, %v429
      %vm431 = vcmask 1043456
      %v434 = vsel %vm431, %v426, %v430
      %v435 = vld [vmem:[%s402] sm:$0xf]
      %v436 = vld [vmem:[%s413] sm:$0xf]
      %v438 = vunpack.c.l.b16 %v436
      %v439 = vpack.c.b16 %v438, %v438
      %v442 = vsel %vm431, %v435, %v439
      %s444 = smul.u32 %s21, 8
      %v445 = vlaneseq
      %v446 = vshrl.u32 %v445, 7
      %v447 = vstv %s444
      %v448 = vadd.s32 %v447, %v446
      %s449 = ssub.s32 %s21, 1
      %s450 = smul.u32 %s449, 8
      %v451 = vlaneseq
      %v452 = vand.u32 %v451, 127
      %v453 = vstv %s450
      %v454 = vadd.s32 %v453, %v452
      %v455 = vsub.s32 %v448, 8
      %v456 = vadd.s32 %v455, 1
      %vm457 = vcmp.lt.s32.totalorder %v454, %v456
      %vm458 = vcmp.gt.s32.totalorder %v454, %v448
      %vm459 = vmor %vm457, %vm458
      %vm460 = vcmp.lt.s32.totalorder %v454, 0
      %vm461 = vmor %vm459, %vm460
      %v462 = vpack.c.bf16 %v425, %v425
      %vm463 = vcmask 261120
      %v465 = vsel %vm463, %v462, 0
      %v467 = vsel %vm463, %v434, 0
      %469 = vmatpush.bf16.xpose.msra.mxu0 0
      %470 = vmatpush.bf16.xpose.msra.mxu0 0
      %471 = vmatpush.bf16.xpose.msra.mxu0 0
      %472 = vmatpush.bf16.xpose.msra.mxu0 0
      %473 = vmatpush.bf16.xpose.msra.mxu0 0
      %474 = vmatpush.bf16.xpose.msra.mxu0 0
      %475 = vmatpush.bf16.xpose.msra.mxu0 0
      %476 = vmatpush.bf16.xpose.msra.mxu0 %v467
      %477 = vmatmul.bf16.gmra.mxu0 %v465
      %v478 = vpop.f32.mrf.mxu0
      %v479 = vadd.f32 0.0, %v478
      %v480 = vpop.f32.mrf.mxu0
      %481 = vdwg.mxu0
      %v482 = vsel %vm461, -1e+30, %v479
      %vm483 = vcmask 130048
      %v484 = vsel %vm483, %v482, -inf
      %485 = vmax.xlane.f32.xlu0 %v484
      %v486 = vpop.xlane.xlu0 %485
      %v487 = vsub.f32 %v482, %v486
      %v488 = vmul.f32 %v487, 1.442695
      %v489 = vpow.pop %v488
      %v490 = vsel %vm483, %v489, 0.0
      %491 = vadd.xlane.f32.xlu0 %v490
      %v492 = vpop.xlane.xlu0 %491
      %v493 = vrcp.pop %v492
      %v494 = vmul.f32 %v489, %v493
      %v495 = vpack.c.bf16 %v494, %v494
      %v497 = vsel %vm483, %v495, 0
      %499 = vmatpush.bf16.msra.mxu0 0
      %500 = vmatpush.bf16.msra.mxu0 0
      %501 = vmatpush.bf16.msra.mxu0 0
      %502 = vmatpush.bf16.msra.mxu0 0
      %503 = vmatpush.bf16.msra.mxu0 0
      %504 = vmatpush.bf16.msra.mxu0 0
      %505 = vmatpush.bf16.msra.mxu0 0
      %506 = vmatpush.bf16.msra.mxu0 %v442
      %507 = vmatmul.bf16.gmra.mxu0 %v497
      %v508 = vpop.f32.mrf.mxu0
      %v509 = vadd.f32 0.0, %v508
      %v510 = vpop.f32.mrf.mxu0
      %511 = vdwg.mxu0
      %513 = vrot.lane.b32.xlu0 %v462, 96
      %v514 = vpop.permute.xlu0 %513
      %v516 = vsel %vm463, %v514, 0
      %518 = vmatpush.bf16.xpose.msra.mxu0 0
      %519 = vmatpush.bf16.xpose.msra.mxu0 0
      %520 = vmatpush.bf16.xpose.msra.mxu0 0
      %521 = vmatpush.bf16.xpose.msra.mxu0 0
      %522 = vmatpush.bf16.xpose.msra.mxu0 0
      %523 = vmatpush.bf16.xpose.msra.mxu0 0
      %524 = vmatpush.bf16.xpose.msra.mxu0 0
      %525 = vmatpush.bf16.xpose.msra.mxu0 %v467
      %526 = vmatmul.bf16.gmra.mxu0 %v516
      %v527 = vpop.f32.mrf.mxu0
      %v528 = vadd.f32 0.0, %v527
      %v529 = vpop.f32.mrf.mxu0
      %530 = vdwg.mxu0
      %v531 = vsel %vm461, -1e+30, %v528
      %v532 = vsel %vm483, %v531, -inf
      %533 = vmax.xlane.f32.xlu0 %v532
      %v534 = vpop.xlane.xlu0 %533
      %v535 = vsub.f32 %v531, %v534
      %v536 = vmul.f32 %v535, 1.442695
      %v537 = vpow.pop %v536
      %v538 = vsel %vm483, %v537, 0.0
      %539 = vadd.xlane.f32.xlu0 %v538
      %v540 = vpop.xlane.xlu0 %539
      %v541 = vrcp.pop %v540
      %v542 = vmul.f32 %v537, %v541
      %v543 = vpack.c.bf16 %v542, %v542
      %v545 = vsel %vm483, %v543, 0
      %547 = vmatpush.bf16.msra.mxu0 0
      %548 = vmatpush.bf16.msra.mxu0 0
      %549 = vmatpush.bf16.msra.mxu0 0
      %550 = vmatpush.bf16.msra.mxu0 0
      %551 = vmatpush.bf16.msra.mxu0 0
      %552 = vmatpush.bf16.msra.mxu0 0
      %553 = vmatpush.bf16.msra.mxu0 0
      %554 = vmatpush.bf16.msra.mxu0 %v442
      %555 = vmatmul.bf16.gmra.mxu0 %v545
      %v556 = vpop.f32.mrf.mxu0
      %v557 = vadd.f32 0.0, %v556
      %v558 = vpop.f32.mrf.mxu0
      %559 = vdwg.mxu0
      %560 = vrot.lane.b32.xlu0 %v462, 64
      %v561 = vpop.permute.xlu0 %560
      %563 = vrot.lane.b32.xlu0 %v434, 96
      %v564 = vpop.permute.xlu0 %563
      %v566 = vsel %vm463, %v561, 0
      %v569 = vsel %vm463, %v564, 0
      %571 = vmatpush.bf16.xpose.msra.mxu0 0
      %572 = vmatpush.bf16.xpose.msra.mxu0 0
      %573 = vmatpush.bf16.xpose.msra.mxu0 0
      %574 = vmatpush.bf16.xpose.msra.mxu0 0
      %575 = vmatpush.bf16.xpose.msra.mxu0 0
      %576 = vmatpush.bf16.xpose.msra.mxu0 0
      %577 = vmatpush.bf16.xpose.msra.mxu0 0
      %578 = vmatpush.bf16.xpose.msra.mxu0 %v569
      %579 = vmatmul.bf16.gmra.mxu0 %v566
      %v580 = vpop.f32.mrf.mxu0
      %v581 = vadd.f32 0.0, %v580
      %v582 = vpop.f32.mrf.mxu0
      %583 = vdwg.mxu0
      %v584 = vsel %vm461, -1e+30, %v581
      %v585 = vsel %vm483, %v584, -inf
      %586 = vmax.xlane.f32.xlu0 %v585
      %v587 = vpop.xlane.xlu0 %586
      %v588 = vsub.f32 %v584, %v587
      %v589 = vmul.f32 %v588, 1.442695
      %v590 = vpow.pop %v589
      %v591 = vsel %vm483, %v590, 0.0
      %592 = vadd.xlane.f32.xlu0 %v591
      %v593 = vpop.xlane.xlu0 %592
      %v594 = vrcp.pop %v593
      %v595 = vmul.f32 %v590, %v594
      %v596 = vpack.c.bf16 %v595, %v595
      %598 = vrot.lane.b32.xlu0 %v442, 96
      %v599 = vpop.permute.xlu0 %598
      %v602 = vsel %vm483, %v596, 0
      %604 = vmatpush.bf16.msra.mxu0 0
      %605 = vmatpush.bf16.msra.mxu0 0
      %606 = vmatpush.bf16.msra.mxu0 0
      %607 = vmatpush.bf16.msra.mxu0 0
      %608 = vmatpush.bf16.msra.mxu0 0
      %609 = vmatpush.bf16.msra.mxu0 0
      %610 = vmatpush.bf16.msra.mxu0 0
      %611 = vmatpush.bf16.msra.mxu0 %v599
      %612 = vmatmul.bf16.gmra.mxu0 %v602
      %v613 = vpop.f32.mrf.mxu0
      %v614 = vadd.f32 0.0, %v613
      %v615 = vpop.f32.mrf.mxu0
      %616 = vdwg.mxu0
      %617 = vrot.lane.b32.xlu0 %v462, 32
      %v618 = vpop.permute.xlu0 %617
      %v620 = vsel %vm463, %v618, 0
      %622 = vmatpush.bf16.xpose.msra.mxu0 0
      %623 = vmatpush.bf16.xpose.msra.mxu0 0
      %624 = vmatpush.bf16.xpose.msra.mxu0 0
      %625 = vmatpush.bf16.xpose.msra.mxu0 0
      %626 = vmatpush.bf16.xpose.msra.mxu0 0
      %627 = vmatpush.bf16.xpose.msra.mxu0 0
      %628 = vmatpush.bf16.xpose.msra.mxu0 0
      %629 = vmatpush.bf16.xpose.msra.mxu0 %v569
      %630 = vmatmul.bf16.gmra.mxu0 %v620
      %v631 = vpop.f32.mrf.mxu0
      %v632 = vadd.f32 0.0, %v631
      %v633 = vpop.f32.mrf.mxu0
      %634 = vdwg.mxu0
      %v635 = vsel %vm461, -1e+30, %v632
      %v636 = vsel %vm483, %v635, -inf
      %637 = vmax.xlane.f32.xlu0 %v636
      %v638 = vpop.xlane.xlu0 %637
      %v639 = vsub.f32 %v635, %v638
      %v640 = vmul.f32 %v639, 1.442695
      %v641 = vpow.pop %v640
      %v642 = vsel %vm483, %v641, 0.0
      %643 = vadd.xlane.f32.xlu0 %v642
      %v644 = vpop.xlane.xlu0 %643
      %v645 = vrcp.pop %v644
      %v646 = vmul.f32 %v641, %v645
      %v647 = vpack.c.bf16 %v646, %v646
      %v649 = vsel %vm483, %v647, 0
      %651 = vmatpush.bf16.msra.mxu0 0
      %652 = vmatpush.bf16.msra.mxu0 0
      %653 = vmatpush.bf16.msra.mxu0 0
      %654 = vmatpush.bf16.msra.mxu0 0
      %655 = vmatpush.bf16.msra.mxu0 0
      %656 = vmatpush.bf16.msra.mxu0 0
      %657 = vmatpush.bf16.msra.mxu0 0
      %658 = vmatpush.bf16.msra.mxu0 %v599
      %659 = vmatmul.bf16.gmra.mxu0 %v649
      %v660 = vpop.f32.mrf.mxu0
      %v661 = vadd.f32 0.0, %v660
      %v662 = vpop.f32.mrf.mxu0
      %663 = vdwg.mxu0
      %665 = vrot.lane.b32.xlu0 %v557, 32
      %v666 = vpop.permute.xlu0 %665
      %669 = vrot.lane.b32.xlu0 %v614, 64
      %v670 = vpop.permute.xlu0 %669
      %673 = vrot.lane.b32.xlu0 %v661, 96
      %v674 = vpop.permute.xlu0 %673
      %v676 = vsel %vm463, %v509, %v666
      %vm677 = vcmask 523264
      %v678 = vsel %vm677, %v676, %v670
      %vm679 = vcmask 785408
      %v680 = vsel %vm679, %v678, %v674
      %v681 = vpack.c.bf16 %v680, %v680
      %682 = vst [vmem:[%s421] sm:$0xf] %v681
      %p683 = scmp.lt.s32.totalorder %s20, 1
      %s684 = scalar_select %p683, %s20, 1
      %p685 = scmp.lt.s32.totalorder %s21, 1
      %s686 = scalar_select %p685, %s21, 1
      %s687 = smul.addr %s684, 2
      %s688 = sadd.s32 %s686, %s687
      %s689 = smul.addr %s688, 4
      %s690 = scalar_lea.vmem %s5, %s689
      // Predicated region
      $region41: #{glm_transformer.10} parent=39 // pred_check
        %p691 = pneg %p200
      $region42: #{glm_transformer.10} parent=39 // pred_check_branch
        %693 = sbr.rel (%p691) target = $region44
      $region43: #{glm_transformer.10} parent=39 // pred_region
        _
      $region44: #{glm_transformer.10} parent=39 // pred_fallthru
        _
    $region40: #{glm_transformer.10} parent=5 // pred_fallthru
      _
    %p694 = scmp.le.s32.totalorder 2, %s11
    // Predicated region
    $region45: #{glm_transformer.10} parent=5 // pred_check
      %p695 = pneg %p694
    $region46: #{glm_transformer.10} parent=5 // pred_check_branch
      %697 = sbr.rel (%p695) target = $region48
    $region47: #{glm_transformer.10} parent=5 // pred_region
      %s698 = ssub.s32 %s11, 2
      // Predicated region
      $region49: #{glm_transformer.10} parent=47 // pred_check
        %p699 = pneg %p206
      $region50: #{glm_transformer.10} parent=47 // pred_check_branch
        %701 = sbr.rel (%p699) target = $region52
      $region51: #{glm_transformer.10} parent=47 // pred_region
        %p702 = scmp.lt.s32.totalorder %s22, 1
        %s703 = scalar_select %p702, %s22, 1
        %p704 = scmp.lt.s32.totalorder %s23, 1
        %s705 = scalar_select %p704, %s23, 1
        %s706 = smul.addr %s703, 2
        %s707 = sadd.s32 %s705, %s706
        %s708 = smul.addr %s707, 4
        %s709 = scalar_lea.vmem %s5, %s708
      $region52: #{glm_transformer.10} parent=47 // pred_fallthru
        _
    $region48: #{glm_transformer.10} parent=5 // pred_fallthru
      _
  $region6: #{glm_transformer.10} parent=0 // loop_footer
    %s15 = sadd.s32 1, %s11
  $region7: #{glm_transformer.10} parent=0 // loop_footer_branch
    %10 = sbr.rel target = $region3
  $region8: #{glm_transformer.10} parent=0 // loop_exit
    _

// kernel: glm_transformer.13
$region0: #{glm_transformer.13}
  #allocation0 [shape = 'u32[]', space=smem, size = 0x4, offset = 0x4, fixed_abs, tag = 'smem constant byte address 0x4 - core index']
  #allocation1 [shape = 'u32[72,128]{1,0:T(1,128)}', space=vmem, size = 0x9000, scoped, tag = 'internal scratch']
  %s0 = inlined_call_operand.vmem [shape: f32[32,128], index: 0, kind: input, shape index: {}]
  %s1 = inlined_call_operand.vmem [shape: f32[1,128], index: 1, kind: input, shape index: {}]
  %s2 = inlined_call_operand.vmem [shape: bf16[128,256], index: 2, kind: input, shape index: {}]
  %s3 = inlined_call_operand.vmem [shape: f32[1,256], index: 3, kind: input, shape index: {}]
  %s4 = inlined_call_operand.vmem [shape: f32[32,256], index: 4, kind: output, shape index: {}]
  %s5 = sld [smem:[#allocation0]]
  $region26: #{glm_transformer.13} parent=0
    _
  %s7 = ssub.s32 1, %s5
  %s8 = scalar_select 0, %s7, %s5
  // Predicated region
  $region2: #{glm_transformer.13} parent=0 // pred_check
    _
  $region3: #{glm_transformer.13} parent=0 // pred_check_branch
    %10 = sbr.rel (0) target = $region5
  $region4: #{glm_transformer.13} parent=0 // pred_region
    _
  $region5: #{glm_transformer.13} parent=0 // pred_fallthru
    _
  // Predicated region
  $region6: #{glm_transformer.13} parent=0 // pred_check
    _
  $region7: #{glm_transformer.13} parent=0 // pred_check_branch
    %12 = sbr.rel (0) target = $region9
  $region8: #{glm_transformer.13} parent=0 // pred_region
    _
  $region9: #{glm_transformer.13} parent=0 // pred_fallthru
    _
  // Predicated region
  $region10: #{glm_transformer.13} parent=0 // pred_check
    _
  $region11: #{glm_transformer.13} parent=0 // pred_check_branch
    %14 = sbr.rel (0) target = $region13
  $region12: #{glm_transformer.13} parent=0 // pred_region
    _
  $region13: #{glm_transformer.13} parent=0 // pred_fallthru
    _
  // Predicated region
  $region14: #{glm_transformer.13} parent=0 // pred_check
    _
  $region15: #{glm_transformer.13} parent=0 // pred_check_branch
    %16 = sbr.rel (0) target = $region17
  $region16: #{glm_transformer.13} parent=0 // pred_region
    _
  $region17: #{glm_transformer.13} parent=0 // pred_fallthru
    _
  %v17 = vld [vmem:[%s0] sm:$0xff]
  %v18 = vld [vmem:[%s0 + $0x8] sm:$0xff]
  %v19 = vld [vmem:[%s0 + $0x10] sm:$0xff]
  %v20 = vld [vmem:[%s0 + $0x18] sm:$0xff]
  %v21 = vmul.f32 %v17, %v17
  %v22 = vmul.f32 %v18, %v18
  %v23 = vmul.f32 %v19, %v19
  %v24 = vmul.f32 %v20, %v20
  %25 = vadd.xlane.f32.xlu0 %v21
  %v26 = vpop.xlane.xlu0 %25
  %27 = vadd.xlane.f32.xlu0 %v22
  %v28 = vpop.xlane.xlu0 %27
  %29 = vadd.xlane.f32.xlu0 %v23
  %v30 = vpop.xlane.xlu0 %29
  %31 = vadd.xlane.f32.xlu0 %v24
  %v32 = vpop.xlane.xlu0 %31
  %v33 = vrcp.pop 128.0
  %v34 = vmul.f32 128.0, %v33
  %v35 = vsub.f32 1.0, %v34
  %v36 = vmul.f32 %v33, %v35
  %v37 = vadd.f32 %v33, %v36
  %vm38 = vweird.f32 %v33
  %v39 = vsel %vm38, %v33, %v37
  %v40 = vmul.f32 %v26, %v39
  %v41 = vmul.f32 %v28, %v39
  %v42 = vmul.f32 %v30, %v39
  %v43 = vmul.f32 %v32, %v39
  %v44 = vadd.f32 %v40, 1e-05
  %v45 = vadd.f32 %v41, 1e-05
  %v46 = vadd.f32 %v42, 1e-05
  %v47 = vadd.f32 %v43, 1e-05
  %v48 = vrsqrt.pop %v44
  %v49 = vmul.f32 %v48, %v44
  %v50 = vmul.f32 %v49, %v48
  %v51 = vmul.f32 0.5, %v50
  %v52 = vsub.f32 1.5, %v51
  %v53 = vmul.f32 %v48, %v52
  %vm54 = vweird.f32 %v44
  %vm55 = vweird.f32 %v48
  %vm56 = vmor %vm54, %vm55
  %v57 = vsel %vm56, %v48, %v53
  %v58 = vrsqrt.pop %v45
  %v59 = vmul.f32 %v58, %v45
  %v60 = vmul.f32 %v59, %v58
  %v61 = vmul.f32 0.5, %v60
  %v62 = vsub.f32 1.5, %v61
  %v63 = vmul.f32 %v58, %v62
  %vm64 = vweird.f32 %v45
  %vm65 = vweird.f32 %v58
  %vm66 = vmor %vm64, %vm65
  %v67 = vsel %vm66, %v58, %v63
  %v68 = vrsqrt.pop %v46
  %v69 = vmul.f32 %v68, %v46
  %v70 = vmul.f32 %v69, %v68
  %v71 = vmul.f32 0.5, %v70
  %v72 = vsub.f32 1.5, %v71
  %v73 = vmul.f32 %v68, %v72
  %vm74 = vweird.f32 %v46
  %vm75 = vweird.f32 %v68
  %vm76 = vmor %vm74, %vm75
  %v77 = vsel %vm76, %v68, %v73
  %v78 = vrsqrt.pop %v47
  %v79 = vmul.f32 %v78, %v47
  %v80 = vmul.f32 %v79, %v78
  %v81 = vmul.f32 0.5, %v80
  %v82 = vsub.f32 1.5, %v81
  %v83 = vmul.f32 %v78, %v82
  %vm84 = vweird.f32 %v47
  %vm85 = vweird.f32 %v78
  %vm86 = vmor %vm84, %vm85
  %v87 = vsel %vm86, %v78, %v83
  %v88 = vmul.f32 %v17, %v57
  %v89 = vmul.f32 %v18, %v67
  %v90 = vmul.f32 %v19, %v77
  %v91 = vmul.f32 %v20, %v87
  %v92 = vld [vmem:[%s1] sm:$0x1]
  %v94 = vperm.slane %v92, 0
  %v96 = vmul.f32 %v88, %v94
  %v97 = vmul.f32 %v89, %v94
  %v98 = vmul.f32 %v90, %v94
  %v99 = vmul.f32 %v91, %v94
  %v100 = vpack.c.bf16 %v97, %v96
  %v101 = vpack.c.bf16 %v99, %v98
  %v102 = vld [vmem:[%s2] sm:$0xff]
  %v103 = vld [vmem:[%s2 + $0x8] sm:$0xff]
  %v104 = vld [vmem:[%s2 + $0x10] sm:$0xff]
  %v105 = vld [vmem:[%s2 + $0x18] sm:$0xff]
  %v106 = vld [vmem:[%s2 + $0x20] sm:$0xff]
  %v107 = vld [vmem:[%s2 + $0x28] sm:$0xff]
  %v108 = vld [vmem:[%s2 + $0x30] sm:$0xff]
  %v109 = vld [vmem:[%s2 + $0x38] sm:$0xff]
  %v110 = vld [vmem:[%s2 + $0x40] sm:$0xff]
  %v111 = vld [vmem:[%s2 + $0x48] sm:$0xff]
  %v112 = vld [vmem:[%s2 + $0x50] sm:$0xff]
  %v113 = vld [vmem:[%s2 + $0x58] sm:$0xff]
  %v114 = vld [vmem:[%s2 + $0x60] sm:$0xff]
  %v115 = vld [vmem:[%s2 + $0x68] sm:$0xff]
  %v116 = vld [vmem:[%s2 + $0x70] sm:$0xff]
  %v117 = vld [vmem:[%s2 + $0x78] sm:$0xff]
  %v118 = vld [vmem:[%s3] sm:$0x3]
  %v120 = vperm.slane %v118, 0
  %v121 = vperm.slane %v118, 1
  %v140 = vunpack.c.l.b16 %v102
  %v141 = vunpack.c.h.b16 %v102
  %v142 = vunpack.c.l.b16 %v103
  %v143 = vunpack.c.h.b16 %v103
  %v144 = vunpack.c.l.b16 %v104
  %v145 = vunpack.c.h.b16 %v104
  %v146 = vunpack.c.l.b16 %v105
  %v147 = vunpack.c.h.b16 %v105
  %v148 = vunpack.c.l.b16 %v106
  %v149 = vunpack.c.h.b16 %v106
  %v150 = vunpack.c.l.b16 %v107
  %v151 = vunpack.c.h.b16 %v107
  %v152 = vunpack.c.l.b16 %v108
  %v153 = vunpack.c.h.b16 %v108
  %v154 = vunpack.c.l.b16 %v109
  %v155 = vunpack.c.h.b16 %v109
  %v156 = vunpack.c.l.b16 %v110
  %v157 = vunpack.c.h.b16 %v110
  %v158 = vunpack.c.l.b16 %v111
  %v159 = vunpack.c.h.b16 %v111
  %v160 = vunpack.c.l.b16 %v112
  %v161 = vunpack.c.h.b16 %v112
  %v162 = vunpack.c.l.b16 %v113
  %v163 = vunpack.c.h.b16 %v113
  %v164 = vunpack.c.l.b16 %v114
  %v165 = vunpack.c.h.b16 %v114
  %v166 = vunpack.c.l.b16 %v115
  %v167 = vunpack.c.h.b16 %v115
  %v168 = vunpack.c.l.b16 %v116
  %v169 = vunpack.c.h.b16 %v116
  %v170 = vunpack.c.l.b16 %v117
  %v171 = vunpack.c.h.b16 %v117
  %v172 = vpack.c.b16 %v142, %v140
  %v173 = vpack.c.b16 %v143, %v141
  %v174 = vpack.c.b16 %v146, %v144
  %v175 = vpack.c.b16 %v147, %v145
  %v176 = vpack.c.b16 %v150, %v148
  %v177 = vpack.c.b16 %v151, %v149
  %v178 = vpack.c.b16 %v154, %v152
  %v179 = vpack.c.b16 %v155, %v153
  %v180 = vpack.c.b16 %v158, %v156
  %v181 = vpack.c.b16 %v159, %v157
  %v182 = vpack.c.b16 %v162, %v160
  %v183 = vpack.c.b16 %v163, %v161
  %v184 = vpack.c.b16 %v166, %v164
  %v185 = vpack.c.b16 %v167, %v165
  %v186 = vpack.c.b16 %v170, %v168
  %v187 = vpack.c.b16 %v171, %v169
  %204 = vmatpush.bf16.msra.mxu0 %v186
  %205 = vmatpush.bf16.msra.mxu0 %v184
  %206 = vmatpush.bf16.msra.mxu0 %v182
  %207 = vmatpush.bf16.msra.mxu0 %v180
  %208 = vmatpush.bf16.msra.mxu0 %v178
  %209 = vmatpush.bf16.msra.mxu0 %v176
  %210 = vmatpush.bf16.msra.mxu0 %v174
  %211 = vmatpush.bf16.msra.mxu0 %v172
  %212 = vmatmul.bf16.gmra.mxu0 %v100
  %v213 = vpop.f32.mrf.mxu0
  %v214 = vadd.f32 %v120, %v213
  %v215 = vpop.f32.mrf.mxu0
  %v216 = vadd.f32 %v120, %v215
  %217 = vmatmul.bf16.gmra.mxu0 %v101
  %v218 = vpop.f32.mrf.mxu0
  %v219 = vadd.f32 %v120, %v218
  %v220 = vpop.f32.mrf.mxu0
  %v221 = vadd.f32 %v120, %v220
  %222 = vdwg.mxu0
  %223 = vmatpush.bf16.msra.mxu0 %v187
  %224 = vmatpush.bf16.msra.mxu0 %v185
  %225 = vmatpush.bf16.msra.mxu0 %v183
  %226 = vmatpush.bf16.msra.mxu0 %v181
  %227 = vmatpush.bf16.msra.mxu0 %v179
  %228 = vmatpush.bf16.msra.mxu0 %v177
  %229 = vmatpush.bf16.msra.mxu0 %v175
  %230 = vmatpush.bf16.msra.mxu0 %v173
  %231 = vmatmul.bf16.gmra.mxu0 %v100
  %v232 = vpop.f32.mrf.mxu0
  %v233 = vadd.f32 %v121, %v232
  %v234 = vpop.f32.mrf.mxu0
  %v235 = vadd.f32 %v121, %v234
  %236 = vmatmul.bf16.gmra.mxu0 %v101
  %v237 = vpop.f32.mrf.mxu0
  %v238 = vadd.f32 %v121, %v237
  %v239 = vpop.f32.mrf.mxu0
  %v240 = vadd.f32 %v121, %v239
  %241 = vdwg.mxu0
  %242 = vst [vmem:[%s4] sm:$0xff] %v214
  %243 = vst [vmem:[%s4 + $0x8] sm:$0xff] %v233
  %244 = vst [vmem:[%s4 + $0x10] sm:$0xff] %v216
  %245 = vst [vmem:[%s4 + $0x18] sm:$0xff] %v235
  %246 = vst [vmem:[%s4 + $0x20] sm:$0xff] %v219
  %247 = vst [vmem:[%s4 + $0x28] sm:$0xff] %v238
  %248 = vst [vmem:[%s4 + $0x30] sm:$0xff] %v221
  %249 = vst [vmem:[%s4 + $0x38] sm:$0xff] %v240
  // Predicated region
  $region18: #{glm_transformer.13} parent=0 // pred_check
    _
  $region19: #{glm_transformer.13} parent=0 // pred_check_branch
    %251 = sbr.rel (0) target = $region21
  $region20: #{glm_transformer.13} parent=0 // pred_region
    _
  $region21: #{glm_transformer.13} parent=0 // pred_fallthru
    _
  // Predicated region
  $region22: #{glm_transformer.13} parent=0 // pred_check
    _
  $region23: #{glm_transformer.13} parent=0 // pred_check_branch
    %253 = sbr.rel (0) target = $region25
  $region24: #{glm_transformer.13} parent=0 // pred_region
    _
  $region25: #{glm_transformer.13} parent=0 // pred_fallthru
    _

// kernel: glm_transformer.14
$region0: #{glm_transformer.14}
  #allocation0 [shape = 'u32[]', space=smem, size = 0x4, offset = 0x4, fixed_abs, tag = 'smem constant byte address 0x4 - core index']
  #allocation1 [shape = 'u32[72,128]{1,0:T(1,128)}', space=vmem, size = 0x9000, scoped, tag = 'internal scratch']
  %s0 = inlined_call_operand.vmem [shape: bf16[2,16,128], index: 0, kind: input, shape index: {}]
  %s1 = inlined_call_operand.vmem [shape: bf16[2,16,64], index: 1, kind: input, shape index: {}, may-alias: {1,2}]
  %s2 = inlined_call_operand.vmem [shape: bf16[2,16,64], index: 2, kind: input, shape index: {}, may-alias: {1,2}]
  %s3 = inlined_call_operand.vmem [shape: bf16[2,16,64], index: 3, kind: input, shape index: {}, may-alias: {3,4}]
  %s4 = inlined_call_operand.vmem [shape: bf16[2,16,64], index: 4, kind: input, shape index: {}, may-alias: {3,4}]
  %s5 = inlined_call_operand.vmem [shape: bf16[2,16,128], index: 5, kind: output, shape index: {}]
  %s6 = sld [smem:[#allocation0]]
  $region53: #{glm_transformer.14} parent=0
    _
  %s8 = ssub.s32 1, %s6
  %s9 = scalar_select 0, %s8, %s6
  loop: start=0, step=1, limit=6
  $region2: #{glm_transformer.14} parent=0 // loop_pre_header
    _
  $region3: #{glm_transformer.14} parent=0 // loop_header
    %s11 = sphi 0, %s15
    %p12 = scmp.ge.s32.totalorder %s11, 6
    %s18 = sphi 0, %s30
    %s19 = sphi 0, %s26
    %s20 = sphi 0, %s18
    %s21 = sphi 0, %s19
    %s22 = sphi 0, %s20
    %s23 = sphi 0, %s21
    %s35 = sphi 0, %s37
    %s38 = sphi 0, %s35
    %s39 = sphi 0, %s38
    %s55 = sphi 0, %s39
    %s69 = sphi 0, %s71
    %s72 = sphi 0, %s69
    %s73 = sphi 0, %s72
    %s89 = sphi 0, %s73
    %s97 = sphi 0, %s99
    %s100 = sphi 0, %s97
    %s101 = sphi 0, %s100
    %s117 = sphi 0, %s101
    %s131 = sphi 0, %s133
    %s134 = sphi 0, %s131
    %s135 = sphi 0, %s134
    %s151 = sphi 0, %s135
    %s159 = sphi 0, %s161
    %s162 = sphi 0, %s159
    %s163 = sphi 0, %s162
    %s179 = sphi 0, %s163
    %s187 = sphi 0, %s189
    %s190 = sphi 0, %s187
    %s191 = sphi 0, %s190
    %s207 = sphi 0, %s191
  $region4: #{glm_transformer.14} parent=0 // loop_header_branch
    %14 = sbr.rel (%p12) target = $region8
  $region5: #{glm_transformer.14} parent=0 // loop_body
    %s16 = ssub.s32 %s11, 1
    %s17 = ssub.s32 %s11, 2
    %s24 = sadd.s32 1, %s19
    %p25 = scmp.ge.s32.totalorder %s24, 2
    %s26 = scalar_select %p25, 0, %s24
    %s27 = sadd.s32 1, %s18
    %s28 = scalar_select %p25, %s27, %s18
    %p29 = scmp.ge.s32.totalorder %s28, 2
    %s30 = scalar_select %p29, 0, %s28
    %s31 = ssub.s32 %s18, %s30
    %s32 = ssub.s32 %s19, %s26
    %s33 = sor.u32 %s31, %s32
    %p34 = scmp.eq.s32.totalorder %s33, 0
    %s36 = sadd.s32 %s35, 1
    %s37 = scalar_select %p34, %s35, %s36
    %p40 = pneg %p34
    %p41 = scmp.eq.s32.totalorder %s11, 3
    %p42 = por %p40, %p41
    %p43 = scmp.ne.s32.totalorder %s35, %s38
    %p44 = scmp.eq.s32.totalorder %s11, 0
    %p45 = por %p43, %p44
    %p46 = scmp.ne.s32.totalorder %s35, %s38
    %p47 = scmp.eq.s32.totalorder %s16, 3
    %p48 = por %p46, %p47
    %p49 = scmp.ne.s32.totalorder %s38, %s39
    %p50 = scmp.eq.s32.totalorder %s16, 0
    %p51 = por %p49, %p50
    %p52 = scmp.ne.s32.totalorder %s38, %s39
    %p53 = scmp.eq.s32.totalorder %s17, 3
    %p54 = por %p52, %p53
    %p56 = scmp.ne.s32.totalorder %s39, %s55
    %p57 = scmp.eq.s32.totalorder %s17, 0
    %p58 = por %p56, %p57
    %s59 = ssub.s32 %s19, 1
    %p60 = scmp.gt.s32.totalorder %s59, 0
    %s61 = scalar_select %p60, %s59, 0
    %s62 = ssub.s32 %s26, 1
    %p63 = scmp.gt.s32.totalorder %s62, 0
    %s64 = scalar_select %p63, %s62, 0
    %s65 = ssub.s32 %s18, %s30
    %s66 = ssub.s32 %s61, %s64
    %s67 = sor.u32 %s65, %s66
    %p68 = scmp.eq.s32.totalorder %s67, 0
    %s70 = sadd.s32 %s69, 1
    %s71 = scalar_select %p68, %s69, %s70
    %p74 = pneg %p68
    %p75 = scmp.eq.s32.totalorder %s11, 3
    %p76 = por %p74, %p75
    %p77 = scmp.ne.s32.totalorder %s69, %s72
    %p78 = scmp.eq.s32.totalorder %s11, 0
    %p79 = por %p77, %p78
    %p80 = scmp.ne.s32.totalorder %s69, %s72
    %p81 = scmp.eq.s32.totalorder %s16, 3
    %p82 = por %p80, %p81
    %p83 = scmp.ne.s32.totalorder %s72, %s73
    %p84 = scmp.eq.s32.totalorder %s16, 0
    %p85 = por %p83, %p84
    %p86 = scmp.ne.s32.totalorder %s72, %s73
    %p87 = scmp.eq.s32.totalorder %s17, 3
    %p88 = por %p86, %p87
    %p90 = scmp.ne.s32.totalorder %s73, %s89
    %p91 = scmp.eq.s32.totalorder %s17, 0
    %p92 = por %p90, %p91
    %s93 = ssub.s32 %s18, %s30
    %s94 = ssub.s32 %s19, %s26
    %s95 = sor.u32 %s93, %s94
    %p96 = scmp.eq.s32.totalorder %s95, 0
    %s98 = sadd.s32 %s97, 1
    %s99 = scalar_select %p96, %s97, %s98
    %p102 = pneg %p96
    %p103 = scmp.eq.s32.totalorder %s11, 3
    %p104 = por %p102, %p103
    %p105 = scmp.ne.s32.totalorder %s97, %s100
    %p106 = scmp.eq.s32.totalorder %s11, 0
    %p107 = por %p105, %p106
    %p108 = scmp.ne.s32.totalorder %s97, %s100
    %p109 = scmp.eq.s32.totalorder %s16, 3
    %p110 = por %p108, %p109
    %p111 = scmp.ne.s32.totalorder %s100, %s101
    %p112 = scmp.eq.s32.totalorder %s16, 0
    %p113 = por %p111, %p112
    %p114 = scmp.ne.s32.totalorder %s100, %s101
    %p115 = scmp.eq.s32.totalorder %s17, 3
    %p116 = por %p114, %p115
    %p118 = scmp.ne.s32.totalorder %s101, %s117
    %p119 = scmp.eq.s32.totalorder %s17, 0
    %p120 = por %p118, %p119
    %s121 = ssub.s32 %s19, 1
    %p122 = scmp.gt.s32.totalorder %s121, 0
    %s123 = scalar_select %p122, %s121, 0
    %s124 = ssub.s32 %s26, 1
    %p125 = scmp.gt.s32.totalorder %s124, 0
    %s126 = scalar_select %p125, %s124, 0
    %s127 = ssub.s32 %s18, %s30
    %s128 = ssub.s32 %s123, %s126
    %s129 = sor.u32 %s127, %s128
    %p130 = scmp.eq.s32.totalorder %s129, 0
    %s132 = sadd.s32 %s131, 1
    %s133 = scalar_select %p130, %s131, %s132
    %p136 = pneg %p130
    %p137 = scmp.eq.s32.totalorder %s11, 3
    %p138 = por %p136, %p137
    %p139 = scmp.ne.s32.totalorder %s131, %s134
    %p140 = scmp.eq.s32.totalorder %s11, 0
    %p141 = por %p139, %p140
    %p142 = scmp.ne.s32.totalorder %s131, %s134
    %p143 = scmp.eq.s32.totalorder %s16, 3
    %p144 = por %p142, %p143
    %p145 = scmp.ne.s32.totalorder %s134, %s135
    %p146 = scmp.eq.s32.totalorder %s16, 0
    %p147 = por %p145, %p146
    %p148 = scmp.ne.s32.totalorder %s134, %s135
    %p149 = scmp.eq.s32.totalorder %s17, 3
    %p150 = por %p148, %p149
    %p152 = scmp.ne.s32.totalorder %s135, %s151
    %p153 = scmp.eq.s32.totalorder %s17, 0
    %p154 = por %p152, %p153
    %s155 = ssub.s32 %s18, %s30
    %s156 = ssub.s32 %s19, %s26
    %s157 = sor.u32 %s155, %s156
    %p158 = scmp.eq.s32.totalorder %s157, 0
    %s160 = sadd.s32 %s159, 1
    %s161 = scalar_select %p158, %s159, %s160
    %p164 = pneg %p158
    %p165 = scmp.eq.s32.totalorder %s11, 3
    %p166 = por %p164, %p165
    %p167 = scmp.ne.s32.totalorder %s159, %s162
    %p168 = scmp.eq.s32.totalorder %s11, 0
    %p169 = por %p167, %p168
    %p170 = scmp.ne.s32.totalorder %s159, %s162
    %p171 = scmp.eq.s32.totalorder %s16, 3
    %p172 = por %p170, %p171
    %p173 = scmp.ne.s32.totalorder %s162, %s163
    %p174 = scmp.eq.s32.totalorder %s16, 0
    %p175 = por %p173, %p174
    %p176 = scmp.ne.s32.totalorder %s162, %s163
    %p177 = scmp.eq.s32.totalorder %s17, 3
    %p178 = por %p176, %p177
    %p180 = scmp.ne.s32.totalorder %s163, %s179
    %p181 = scmp.eq.s32.totalorder %s17, 0
    %p182 = por %p180, %p181
    %s183 = ssub.s32 %s18, %s30
    %s184 = ssub.s32 %s19, %s26
    %s185 = sor.u32 %s183, %s184
    %p186 = scmp.eq.s32.totalorder %s185, 0
    %s188 = sadd.s32 %s187, 1
    %s189 = scalar_select %p186, %s187, %s188
    %p192 = pneg %p186
    %p193 = scmp.eq.s32.totalorder %s11, 3
    %p194 = por %p192, %p193
    %p195 = scmp.ne.s32.totalorder %s187, %s190
    %p196 = scmp.eq.s32.totalorder %s11, 0
    %p197 = por %p195, %p196
    %p198 = scmp.ne.s32.totalorder %s187, %s190
    %p199 = scmp.eq.s32.totalorder %s16, 3
    %p200 = por %p198, %p199
    %p201 = scmp.ne.s32.totalorder %s190, %s191
    %p202 = scmp.eq.s32.totalorder %s16, 0
    %p203 = por %p201, %p202
    %p204 = scmp.ne.s32.totalorder %s190, %s191
    %p205 = scmp.eq.s32.totalorder %s17, 3
    %p206 = por %p204, %p205
    %p208 = scmp.ne.s32.totalorder %s191, %s207
    %p209 = scmp.eq.s32.totalorder %s17, 0
    %p210 = por %p208, %p209
    %p211 = scmp.le.s32.totalorder 1, %s11
    %p212 = scmp.lt.s32.totalorder %s11, 5
    %p213 = pnand %p211, %p212
    %p214 = pneg %p213
    // Predicated region
    $region9: #{glm_transformer.14} parent=5 // pred_check
      _
    $region10: #{glm_transformer.14} parent=5 // pred_check_branch
      %216 = sbr.rel (%p213) target = $region12
    $region11: #{glm_transformer.14} parent=5 // pred_region
      %s217 = ssub.s32 %s11, 1
    $region12: #{glm_transformer.14} parent=5 // pred_fallthru
      _
    %p218 = scmp.lt.s32.totalorder %s11, 4
    // Predicated region
    $region13: #{glm_transformer.14} parent=5 // pred_check
      %p219 = pneg %p218
    $region14: #{glm_transformer.14} parent=5 // pred_check_branch
      %221 = sbr.rel (%p219) target = $region16
    $region15: #{glm_transformer.14} parent=5 // pred_region
      // Predicated region
      $region17: #{glm_transformer.14} parent=15 // pred_check
        %p222 = pneg %p45
      $region18: #{glm_transformer.14} parent=15 // pred_check_branch
        %224 = sbr.rel (%p222) target = $region20
      $region19: #{glm_transformer.14} parent=15 // pred_region
        %p225 = scmp.lt.s32.totalorder %s18, 1
        %s226 = scalar_select %p225, %s18, 1
        %p227 = scmp.lt.s32.totalorder %s19, 1
        %s228 = scalar_select %p227, %s19, 1
        %s229 = smul.addr %s226, 2
        %s230 = sadd.s32 %s228, %s229
        %s231 = smul.addr %s230, 4
        %s232 = scalar_lea.vmem %s0, %s231
      $region20: #{glm_transformer.14} parent=15 // pred_fallthru
        _
      // Predicated region
      $region21: #{glm_transformer.14} parent=15 // pred_check
        %p233 = pneg %p79
      $region22: #{glm_transformer.14} parent=15 // pred_check_branch
        %235 = sbr.rel (%p233) target = $region24
      $region23: #{glm_transformer.14} parent=15 // pred_region
        %s236 = ssub.s32 %s19, 1
        %p237 = scmp.gt.s32.totalorder %s236, 0
        %s238 = scalar_select %p237, %s236, 0
        %p239 = scmp.lt.s32.totalorder %s18, 1
        %s240 = scalar_select %p239, %s18, 1
        %p241 = scmp.lt.s32.totalorder %s238, 1
        %s242 = scalar_select %p241, %s238, 1
        %s243 = smul.addr %s240, 2
        %s244 = sadd.s32 %s242, %s243
        %s245 = smul.addr %s244, 4
        %s246 = scalar_lea.vmem %s1, %s245
        %s247 = ssub.s32 %s19, 1
        %p248 = scmp.gt.s32.totalorder %s247, 0
        %s249 = scalar_select %p248, %s247, 0
      $region24: #{glm_transformer.14} parent=15 // pred_fallthru
        _
      // Predicated region
      $region25: #{glm_transformer.14} parent=15 // pred_check
        %p250 = pneg %p107
      $region26: #{glm_transformer.14} parent=15 // pred_check_branch
        %252 = sbr.rel (%p250) target = $region28
      $region27: #{glm_transformer.14} parent=15 // pred_region
        %p253 = scmp.lt.s32.totalorder %s18, 1
        %s254 = scalar_select %p253, %s18, 1
        %p255 = scmp.lt.s32.totalorder %s19, 1
        %s256 = scalar_select %p255, %s19, 1
        %s257 = smul.addr %s254, 2
        %s258 = sadd.s32 %s256, %s257
        %s259 = smul.addr %s258, 4
        %s260 = scalar_lea.vmem %s2, %s259
      $region28: #{glm_transformer.14} parent=15 // pred_fallthru
        _
      // Predicated region
      $region29: #{glm_transformer.14} parent=15 // pred_check
        %p261 = pneg %p141
      $region30: #{glm_transformer.14} parent=15 // pred_check_branch
        %263 = sbr.rel (%p261) target = $region32
      $region31: #{glm_transformer.14} parent=15 // pred_region
        %s264 = ssub.s32 %s19, 1
        %p265 = scmp.gt.s32.totalorder %s264, 0
        %s266 = scalar_select %p265, %s264, 0
        %p267 = scmp.lt.s32.totalorder %s18, 1
        %s268 = scalar_select %p267, %s18, 1
        %p269 = scmp.lt.s32.totalorder %s266, 1
        %s270 = scalar_select %p269, %s266, 1
        %s271 = smul.addr %s268, 2
        %s272 = sadd.s32 %s270, %s271
        %s273 = smul.addr %s272, 4
        %s274 = scalar_lea.vmem %s3, %s273
        %s275 = ssub.s32 %s19, 1
        %p276 = scmp.gt.s32.totalorder %s275, 0
        %s277 = scalar_select %p276, %s275, 0
      $region32: #{glm_transformer.14} parent=15 // pred_fallthru
        _
      // Predicated region
      $region33: #{glm_transformer.14} parent=15 // pred_check
        %p278 = pneg %p169
      $region34: #{glm_transformer.14} parent=15 // pred_check_branch
        %280 = sbr.rel (%p278) target = $region36
      $region35: #{glm_transformer.14} parent=15 // pred_region
        %p281 = scmp.lt.s32.totalorder %s18, 1
        %s282 = scalar_select %p281, %s18, 1
        %p283 = scmp.lt.s32.totalorder %s19, 1
        %s284 = scalar_select %p283, %s19, 1
        %s285 = smul.addr %s282, 2
        %s286 = sadd.s32 %s284, %s285
        %s287 = smul.addr %s286, 4
        %s288 = scalar_lea.vmem %s4, %s287
      $region36: #{glm_transformer.14} parent=15 // pred_fallthru
        _
    $region16: #{glm_transformer.14} parent=5 // pred_fallthru
      _
    %p289 = scmp.le.s32.totalorder 1, %s11
    %p290 = scmp.lt.s32.totalorder %s11, 5
    %p291 = pnand %p289, %p290
    %p292 = pneg %p291
    // Predicated region
    $region37: #{glm_transformer.14} parent=5 // pred_check
      _
    $region38: #{glm_transformer.14} parent=5 // pred_check_branch
      %294 = sbr.rel (%p291) target = $region40
    $region39: #{glm_transformer.14} parent=5 // pred_region
      %s295 = ssub.s32 %s11, 1
      %p296 = scmp.lt.s32.totalorder %s20, 1
      %s297 = scalar_select %p296, %s20, 1
      %p298 = scmp.lt.s32.totalorder %s21, 1
      %s299 = scalar_select %p298, %s21, 1
      %s300 = smul.addr %s297, 2
      %s301 = sadd.s32 %s299, %s300
      %s302 = smul.addr %s301, 4
      %s303 = scalar_lea.vmem %s0, %s302
      %p304 = pneg %p51
      %p305 = pneg %p48
      %s306 = ssub.s32 %s21, 1
      %p307 = scmp.gt.s32.totalorder %s306, 0
      %s308 = scalar_select %p307, %s306, 0
      %p309 = scmp.lt.s32.totalorder %s20, 1
      %s310 = scalar_select %p309, %s20, 1
      %p311 = scmp.lt.s32.totalorder %s308, 1
      %s312 = scalar_select %p311, %s308, 1
      %s313 = smul.addr %s310, 2
      %s314 = sadd.s32 %s312, %s313
      %s315 = smul.addr %s314, 4
      %s316 = scalar_lea.vmem %s1, %s315
      %p317 = pneg %p85
      %p318 = pneg %p82
      %p319 = scmp.lt.s32.totalorder %s20, 1
      %s320 = scalar_select %p319, %s20, 1
      %p321 = scmp.lt.s32.totalorder %s21, 1
      %s322 = scalar_select %p321, %s21, 1
      %s323 = smul.addr %s320, 2
      %s324 = sadd.s32 %s322, %s323
      %s325 = smul.addr %s324, 4
      %s326 = scalar_lea.vmem %s2, %s325
      %p327 = pneg %p113
      %p328 = pneg %p110
      %s329 = ssub.s32 %s21, 1
      %p330 = scmp.gt.s32.totalorder %s329, 0
      %s331 = scalar_select %p330, %s329, 0
      %p332 = scmp.lt.s32.totalorder %s20, 1
      %s333 = scalar_select %p332, %s20, 1
      %p334 = scmp.lt.s32.totalorder %s331, 1
      %s335 = scalar_select %p334, %s331, 1
      %s336 = smul.addr %s333, 2
      %s337 = sadd.s32 %s335, %s336
      %s338 = smul.addr %s337, 4
      %s339 = scalar_lea.vmem %s3, %s338
      %p340 = pneg %p147
      %p341 = pneg %p144
      %p342 = scmp.lt.s32.totalorder %s20, 1
      %s343 = scalar_select %p342, %s20, 1
      %p344 = scmp.lt.s32.totalorder %s21, 1
      %s345 = scalar_select %p344, %s21, 1
      %s346 = smul.addr %s343, 2
      %s347 = sadd.s32 %s345, %s346
      %s348 = smul.addr %s347, 4
      %s349 = scalar_lea.vmem %s4, %s348
      %p350 = pneg %p175
      %p351 = pneg %p172
      %p352 = pneg %p203
      %p353 = pneg %p200
      %p354 = scmp.lt.s32.totalorder %s20, 1
      %s355 = scalar_select %p354, %s20, 1
      %p356 = scmp.lt.s32.totalorder %s21, 1
      %s357 = scalar_select %p356, %s21, 1
      %s358 = smul.addr %s355, 2
      %s359 = sadd.s32 %s357, %s358
      %s360 = smul.addr %s359, 4
      %s361 = scalar_lea.vmem %s5, %s360
      %p362 = scmp.lt.s32.totalorder %s20, 1
      %s363 = scalar_select %p362, %s20, 1
      %p364 = scmp.lt.s32.totalorder %s21, 1
      %s365 = scalar_select %p364, %s21, 1
      %s366 = smul.addr %s363, 2
      %s367 = sadd.s32 %s365, %s366
      %s368 = smul.addr %s367, 4
      %s369 = scalar_lea.vmem %s0, %s368
      %s370 = ssub.s32 %s21, 1
      %p371 = scmp.gt.s32.totalorder %s370, 0
      %s372 = scalar_select %p371, %s370, 0
      %p373 = scmp.lt.s32.totalorder %s20, 1
      %s374 = scalar_select %p373, %s20, 1
      %p375 = scmp.lt.s32.totalorder %s372, 1
      %s376 = scalar_select %p375, %s372, 1
      %s377 = smul.addr %s374, 2
      %s378 = sadd.s32 %s376, %s377
      %s379 = smul.addr %s378, 4
      %s380 = scalar_lea.vmem %s1, %s379
      %s381 = ssub.s32 %s21, 1
      %p382 = scmp.gt.s32.totalorder %s381, 0
      %s383 = scalar_select %p382, %s381, 0
      %p384 = scmp.lt.s32.totalorder %s20, 1
      %s385 = scalar_select %p384, %s20, 1
      %p386 = scmp.lt.s32.totalorder %s21, 1
      %s387 = scalar_select %p386, %s21, 1
      %s388 = smul.addr %s385, 2
      %s389 = sadd.s32 %s387, %s388
      %s390 = smul.addr %s389, 4
      %s391 = scalar_lea.vmem %s2, %s390
      %s392 = ssub.s32 %s21, 1
      %p393 = scmp.gt.s32.totalorder %s392, 0
      %s394 = scalar_select %p393, %s392, 0
      %p395 = scmp.lt.s32.totalorder %s20, 1
      %s396 = scalar_select %p395, %s20, 1
      %p397 = scmp.lt.s32.totalorder %s394, 1
      %s398 = scalar_select %p397, %s394, 1
      %s399 = smul.addr %s396, 2
      %s400 = sadd.s32 %s398, %s399
      %s401 = smul.addr %s400, 4
      %s402 = scalar_lea.vmem %s3, %s401
      %s403 = ssub.s32 %s21, 1
      %p404 = scmp.gt.s32.totalorder %s403, 0
      %s405 = scalar_select %p404, %s403, 0
      %p406 = scmp.lt.s32.totalorder %s20, 1
      %s407 = scalar_select %p406, %s20, 1
      %p408 = scmp.lt.s32.totalorder %s21, 1
      %s409 = scalar_select %p408, %s21, 1
      %s410 = smul.addr %s407, 2
      %s411 = sadd.s32 %s409, %s410
      %s412 = smul.addr %s411, 4
      %s413 = scalar_lea.vmem %s4, %s412
      %p414 = scmp.lt.s32.totalorder %s20, 1
      %s415 = scalar_select %p414, %s20, 1
      %p416 = scmp.lt.s32.totalorder %s21, 1
      %s417 = scalar_select %p416, %s21, 1
      %s418 = smul.addr %s415, 2
      %s419 = sadd.s32 %s417, %s418
      %s420 = smul.addr %s419, 4
      %s421 = scalar_lea.vmem %s5, %s420
      %v423 = vld [vmem:[%s369] sm:$0xf]
      %v424 = vunpack.c.l.bf16 %v423
      %v425 = vmul.f32 %v424, 0.088388346
      %v426 = vld [vmem:[%s380] sm:$0xf]
      %v427 = vld [vmem:[%s391] sm:$0xf]
      %v429 = vunpack.c.l.b16 %v427
      %v430 = vpack.c.b16 %v429, %v429
      %vm431 = vcmask 1043456
      %v434 = vsel %vm431, %v426, %v430
      %v435 = vld [vmem:[%s402] sm:$0xf]
      %v436 = vld [vmem:[%s413] sm:$0xf]
      %v438 = vunpack.c.l.b16 %v436
      %v439 = vpack.c.b16 %v438, %v438
      %v442 = vsel %vm431, %v435, %v439
      %s444 = smul.u32 %s21, 8
      %v445 = vlaneseq
      %v446 = vshrl.u32 %v445, 7
      %v447 = vstv %s444
      %v448 = vadd.s32 %v447, %v446
      %s449 = ssub.s32 %s21, 1
      %s450 = smul.u32 %s449, 8
      %v451 = vlaneseq
      %v452 = vand.u32 %v451, 127
      %v453 = vstv %s450
      %v454 = vadd.s32 %v453, %v452
      %v455 = vsub.s32 %v448, 8
      %v456 = vadd.s32 %v455, 1
      %vm457 = vcmp.lt.s32.totalorder %v454, %v456
      %vm458 = vcmp.gt.s32.totalorder %v454, %v448
      %vm459 = vmor %vm457, %vm458
      %vm460 = vcmp.lt.s32.totalorder %v454, 0
      %vm461 = vmor %vm459, %vm460
      %v462 = vpack.c.bf16 %v425, %v425
      %vm463 = vcmask 261120
      %v465 = vsel %vm463, %v462, 0
      %v467 = vsel %vm463, %v434, 0
      %469 = vmatpush.bf16.xpose.msra.mxu0 0
      %470 = vmatpush.bf16.xpose.msra.mxu0 0
      %471 = vmatpush.bf16.xpose.msra.mxu0 0
      %472 = vmatpush.bf16.xpose.msra.mxu0 0
      %473 = vmatpush.bf16.xpose.msra.mxu0 0
      %474 = vmatpush.bf16.xpose.msra.mxu0 0
      %475 = vmatpush.bf16.xpose.msra.mxu0 0
      %476 = vmatpush.bf16.xpose.msra.mxu0 %v467
      %477 = vmatmul.bf16.gmra.mxu0 %v465
      %v478 = vpop.f32.mrf.mxu0
      %v479 = vadd.f32 0.0, %v478
      %v480 = vpop.f32.mrf.mxu0
      %481 = vdwg.mxu0
      %v482 = vsel %vm461, -1e+30, %v479
      %vm483 = vcmask 130048
      %v484 = vsel %vm483, %v482, -inf
      %485 = vmax.xlane.f32.xlu0 %v484
      %v486 = vpop.xlane.xlu0 %485
      %v487 = vsub.f32 %v482, %v486
      %v488 = vmul.f32 %v487, 1.442695
      %v489 = vpow.pop %v488
      %v490 = vsel %vm483, %v489, 0.0
      %491 = vadd.xlane.f32.xlu0 %v490
      %v492 = vpop.xlane.xlu0 %491
      %v493 = vrcp.pop %v492
      %v494 = vmul.f32 %v489, %v493
      %v495 = vpack.c.bf16 %v494, %v494
      %v497 = vsel %vm483, %v495, 0
      %499 = vmatpush.bf16.msra.mxu0 0
      %500 = vmatpush.bf16.msra.mxu0 0
      %501 = vmatpush.bf16.msra.mxu0 0
      %502 = vmatpush.bf16.msra.mxu0 0
      %503 = vmatpush.bf16.msra.mxu0 0
      %504 = vmatpush.bf16.msra.mxu0 0
      %505 = vmatpush.bf16.msra.mxu0 0
      %506 = vmatpush.bf16.msra.mxu0 %v442
      %507 = vmatmul.bf16.gmra.mxu0 %v497
      %v508 = vpop.f32.mrf.mxu0
      %v509 = vadd.f32 0.0, %v508
      %v510 = vpop.f32.mrf.mxu0
      %511 = vdwg.mxu0
      %513 = vrot.lane.b32.xlu0 %v462, 96
      %v514 = vpop.permute.xlu0 %513
      %v516 = vsel %vm463, %v514, 0
      %518 = vmatpush.bf16.xpose.msra.mxu0 0
      %519 = vmatpush.bf16.xpose.msra.mxu0 0
      %520 = vmatpush.bf16.xpose.msra.mxu0 0
      %521 = vmatpush.bf16.xpose.msra.mxu0 0
      %522 = vmatpush.bf16.xpose.msra.mxu0 0
      %523 = vmatpush.bf16.xpose.msra.mxu0 0
      %524 = vmatpush.bf16.xpose.msra.mxu0 0
      %525 = vmatpush.bf16.xpose.msra.mxu0 %v467
      %526 = vmatmul.bf16.gmra.mxu0 %v516
      %v527 = vpop.f32.mrf.mxu0
      %v528 = vadd.f32 0.0, %v527
      %v529 = vpop.f32.mrf.mxu0
      %530 = vdwg.mxu0
      %v531 = vsel %vm461, -1e+30, %v528
      %v532 = vsel %vm483, %v531, -inf
      %533 = vmax.xlane.f32.xlu0 %v532
      %v534 = vpop.xlane.xlu0 %533
      %v535 = vsub.f32 %v531, %v534
      %v536 = vmul.f32 %v535, 1.442695
      %v537 = vpow.pop %v536
      %v538 = vsel %vm483, %v537, 0.0
      %539 = vadd.xlane.f32.xlu0 %v538
      %v540 = vpop.xlane.xlu0 %539
      %v541 = vrcp.pop %v540
      %v542 = vmul.f32 %v537, %v541
      %v543 = vpack.c.bf16 %v542, %v542
      %v545 = vsel %vm483, %v543, 0
      %547 = vmatpush.bf16.msra.mxu0 0
      %548 = vmatpush.bf16.msra.mxu0 0
      %549 = vmatpush.bf16.msra.mxu0 0
      %550 = vmatpush.bf16.msra.mxu0 0
      %551 = vmatpush.bf16.msra.mxu0 0
      %552 = vmatpush.bf16.msra.mxu0 0
      %553 = vmatpush.bf16.msra.mxu0 0
      %554 = vmatpush.bf16.msra.mxu0 %v442
      %555 = vmatmul.bf16.gmra.mxu0 %v545
      %v556 = vpop.f32.mrf.mxu0
      %v557 = vadd.f32 0.0, %v556
      %v558 = vpop.f32.mrf.mxu0
      %559 = vdwg.mxu0
      %560 = vrot.lane.b32.xlu0 %v462, 64
      %v561 = vpop.permute.xlu0 %560
      %563 = vrot.lane.b32.xlu0 %v434, 96
      %v564 = vpop.permute.xlu0 %563
      %v566 = vsel %vm463, %v561, 0
      %v569 = vsel %vm463, %v564, 0
      %571 = vmatpush.bf16.xpose.msra.mxu0 0
      %572 = vmatpush.bf16.xpose.msra.mxu0 0
      %573 = vmatpush.bf16.xpose.msra.mxu0 0
      %574 = vmatpush.bf16.xpose.msra.mxu0 0
      %575 = vmatpush.bf16.xpose.msra.mxu0 0
      %576 = vmatpush.bf16.xpose.msra.mxu0 0
      %577 = vmatpush.bf16.xpose.msra.mxu0 0
      %578 = vmatpush.bf16.xpose.msra.mxu0 %v569
      %579 = vmatmul.bf16.gmra.mxu0 %v566
      %v580 = vpop.f32.mrf.mxu0
      %v581 = vadd.f32 0.0, %v580
      %v582 = vpop.f32.mrf.mxu0
      %583 = vdwg.mxu0
      %v584 = vsel %vm461, -1e+30, %v581
      %v585 = vsel %vm483, %v584, -inf
      %586 = vmax.xlane.f32.xlu0 %v585
      %v587 = vpop.xlane.xlu0 %586
      %v588 = vsub.f32 %v584, %v587
      %v589 = vmul.f32 %v588, 1.442695
      %v590 = vpow.pop %v589
      %v591 = vsel %vm483, %v590, 0.0
      %592 = vadd.xlane.f32.xlu0 %v591
      %v593 = vpop.xlane.xlu0 %592
      %v594 = vrcp.pop %v593
      %v595 = vmul.f32 %v590, %v594
      %v596 = vpack.c.bf16 %v595, %v595
      %598 = vrot.lane.b32.xlu0 %v442, 96
      %v599 = vpop.permute.xlu0 %598
      %v602 = vsel %vm483, %v596, 0
      %604 = vmatpush.bf16.msra.mxu0 0
      %605 = vmatpush.bf16.msra.mxu0 0
      %606 = vmatpush.bf16.msra.mxu0 0
      %607 = vmatpush.bf16.msra.mxu0 0
      %608 = vmatpush.bf16.msra.mxu0 0
      %609 = vmatpush.bf16.msra.mxu0 0
      %610 = vmatpush.bf16.msra.mxu0 0
      %611 = vmatpush.bf16.msra.mxu0 %v599
      %612 = vmatmul.bf16.gmra.mxu0 %v602
      %v613 = vpop.f32.mrf.mxu0
      %v614 = vadd.f32 0.0, %v613
      %v615 = vpop.f32.mrf.mxu0
      %616 = vdwg.mxu0
      %617 = vrot.lane.b32.xlu0 %v462, 32
      %v618 = vpop.permute.xlu0 %617
      %v620 = vsel %vm463, %v618, 0
      %622 = vmatpush.bf16.xpose.msra.mxu0 0
      %623 = vmatpush.bf16.xpose.msra.mxu0 0
      %624 = vmatpush.bf16.xpose.msra.mxu0 0
      %625 = vmatpush.bf16.xpose.msra.mxu0 0
      %626 = vmatpush.bf16.xpose.msra.mxu0 0
      %627 = vmatpush.bf16.xpose.msra.mxu0 0
      %628 = vmatpush.bf16.xpose.msra.mxu0 0
      %629 = vmatpush.bf16.xpose.msra.mxu0 %v569
      %630 = vmatmul.bf16.gmra.mxu0 %v620
      %v631 = vpop.f32.mrf.mxu0
      %v632 = vadd.f32 0.0, %v631
      %v633 = vpop.f32.mrf.mxu0
      %634 = vdwg.mxu0
      %v635 = vsel %vm461, -1e+30, %v632
      %v636 = vsel %vm483, %v635, -inf
      %637 = vmax.xlane.f32.xlu0 %v636
      %v638 = vpop.xlane.xlu0 %637
      %v639 = vsub.f32 %v635, %v638
      %v640 = vmul.f32 %v639, 1.442695
      %v641 = vpow.pop %v640
      %v642 = vsel %vm483, %v641, 0.0
      %643 = vadd.xlane.f32.xlu0 %v642
      %v644 = vpop.xlane.xlu0 %643
      %v645 = vrcp.pop %v644
      %v646 = vmul.f32 %v641, %v645
      %v647 = vpack.c.bf16 %v646, %v646
      %v649 = vsel %vm483, %v647, 0
      %651 = vmatpush.bf16.msra.mxu0 0
      %652 = vmatpush.bf16.msra.mxu0 0
      %653 = vmatpush.bf16.msra.mxu0 0
      %654 = vmatpush.bf16.msra.mxu0 0
      %655 = vmatpush.bf16.msra.mxu0 0
      %656 = vmatpush.bf16.msra.mxu0 0
      %657 = vmatpush.bf16.msra.mxu0 0
      %658 = vmatpush.bf16.msra.mxu0 %v599
      %659 = vmatmul.bf16.gmra.mxu0 %v649
      %v660 = vpop.f32.mrf.mxu0
      %v661 = vadd.f32 0.0, %v660
      %v662 = vpop.f32.mrf.mxu0
      %663 = vdwg.mxu0
      %665 = vrot.lane.b32.xlu0 %v557, 32
      %v666 = vpop.permute.xlu0 %665
      %669 = vrot.lane.b32.xlu0 %v614, 64
      %v670 = vpop.permute.xlu0 %669
      %673 = vrot.lane.b32.xlu0 %v661, 96
      %v674 = vpop.permute.xlu0 %673
      %v676 = vsel %vm463, %v509, %v666
      %vm677 = vcmask 523264
      %v678 = vsel %vm677, %v676, %v670
      %vm679 = vcmask 785408
      %v680 = vsel %vm679, %v678, %v674
      %v681 = vpack.c.bf16 %v680, %v680
      %682 = vst [vmem:[%s421] sm:$0xf] %v681
      %p683 = scmp.lt.s32.totalorder %s20, 1
      %s684 = scalar_select %p683, %s20, 1
      %p685 = scmp.lt.s32.totalorder %s21, 1
      %s686 = scalar_select %p685, %s21, 1
      %s687 = smul.addr %s684, 2
      %s688 = sadd.s32 %s686, %s687
      %s689 = smul.addr %s688, 4
      %s690 = scalar_lea.vmem %s5, %s689
      // Predicated region
      $region41: #{glm_transformer.14} parent=39 // pred_check
        %p691 = pneg %p200
      $region42: #{glm_transformer.14} parent=39 // pred_check_branch
        %693 = sbr.rel (%p691) target = $region44
      $region43: #{glm_transformer.14} parent=39 // pred_region
        _
      $region44: #{glm_transformer.14} parent=39 // pred_fallthru
        _
    $region40: #{glm_transformer.14} parent=5 // pred_fallthru
      _
    %p694 = scmp.le.s32.totalorder 2, %s11
    // Predicated region
    $region45: #{glm_transformer.14} parent=5 // pred_check
      %p695 = pneg %p694
    $region46: #{glm_transformer.14} parent=5 // pred_check_branch
      %697 = sbr.rel (%p695) target = $region48
    $region47: #{glm_transformer.14} parent=5 // pred_region
      %s698 = ssub.s32 %s11, 2
      // Predicated region
      $region49: #{glm_transformer.14} parent=47 // pred_check
        %p699 = pneg %p206
      $region50: #{glm_transformer.14} parent=47 // pred_check_branch
        %701 = sbr.rel (%p699) target = $region52
      $region51: #{glm_transformer.14} parent=47 // pred_region
        %p702 = scmp.lt.s32.totalorder %s22, 1
        %s703 = scalar_select %p702, %s22, 1
        %p704 = scmp.lt.s32.totalorder %s23, 1
        %s705 = scalar_select %p704, %s23, 1
        %s706 = smul.addr %s703, 2
        %s707 = sadd.s32 %s705, %s706
        %s708 = smul.addr %s707, 4
        %s709 = scalar_lea.vmem %s5, %s708
      $region52: #{glm_transformer.14} parent=47 // pred_fallthru
        _
    $region48: #{glm_transformer.14} parent=5 // pred_fallthru
      _
  $region6: #{glm_transformer.14} parent=0 // loop_footer
    %s15 = sadd.s32 1, %s11
  $region7: #{glm_transformer.14} parent=0 // loop_footer_branch
    %10 = sbr.rel target = $region3
  $region8: #{glm_transformer.14} parent=0 // loop_exit
    _

// kernel: glm_transformer.12
$region0: #{glm_transformer.12}
  #allocation0 [shape = 'u32[]', space=smem, size = 0x4, offset = 0x4, fixed_abs, tag = 'smem constant byte address 0x4 - core index']
  #allocation1 [shape = 'u32[72,128]{1,0:T(1,128)}', space=vmem, size = 0x9000, scoped, tag = 'internal scratch']
  %s0 = inlined_call_operand.vmem [shape: f32[32,128], index: 0, kind: input, shape index: {}]
  %s1 = inlined_call_operand.vmem [shape: f32[1,128], index: 1, kind: input, shape index: {}]
  %s2 = inlined_call_operand.vmem [shape: bf16[128,256], index: 2, kind: input, shape index: {}]
  %s3 = inlined_call_operand.vmem [shape: bf16[128,256], index: 3, kind: input, shape index: {}]
  %s4 = inlined_call_operand.vmem [shape: bf16[256,128], index: 4, kind: input, shape index: {}]
  %s5 = inlined_call_operand.vmem [shape: f32[32,128], index: 5, kind: output, shape index: {}]
  %s6 = sld [smem:[#allocation0]]
  $region30: #{glm_transformer.12} parent=0
    _
  %s8 = ssub.s32 1, %s6
  %s9 = scalar_select 0, %s8, %s6
  // Predicated region
  $region2: #{glm_transformer.12} parent=0 // pred_check
    _
  $region3: #{glm_transformer.12} parent=0 // pred_check_branch
    %11 = sbr.rel (0) target = $region5
  $region4: #{glm_transformer.12} parent=0 // pred_region
    _
  $region5: #{glm_transformer.12} parent=0 // pred_fallthru
    _
  // Predicated region
  $region6: #{glm_transformer.12} parent=0 // pred_check
    _
  $region7: #{glm_transformer.12} parent=0 // pred_check_branch
    %13 = sbr.rel (0) target = $region9
  $region8: #{glm_transformer.12} parent=0 // pred_region
    _
  $region9: #{glm_transformer.12} parent=0 // pred_fallthru
    _
  // Predicated region
  $region10: #{glm_transformer.12} parent=0 // pred_check
    _
  $region11: #{glm_transformer.12} parent=0 // pred_check_branch
    %15 = sbr.rel (0) target = $region13
  $region12: #{glm_transformer.12} parent=0 // pred_region
    _
  $region13: #{glm_transformer.12} parent=0 // pred_fallthru
    _
  // Predicated region
  $region14: #{glm_transformer.12} parent=0 // pred_check
    _
  $region15: #{glm_transformer.12} parent=0 // pred_check_branch
    %17 = sbr.rel (0) target = $region17
  $region16: #{glm_transformer.12} parent=0 // pred_region
    _
  $region17: #{glm_transformer.12} parent=0 // pred_fallthru
    _
  // Predicated region
  $region18: #{glm_transformer.12} parent=0 // pred_check
    _
  $region19: #{glm_transformer.12} parent=0 // pred_check_branch
    %19 = sbr.rel (0) target = $region21
  $region20: #{glm_transformer.12} parent=0 // pred_region
    _
  $region21: #{glm_transformer.12} parent=0 // pred_fallthru
    _
  %v20 = vld [vmem:[%s0] sm:$0xff]
  %v21 = vld [vmem:[%s0 + $0x8] sm:$0xff]
  %v22 = vld [vmem:[%s0 + $0x10] sm:$0xff]
  %v23 = vld [vmem:[%s0 + $0x18] sm:$0xff]
  %v24 = vmul.f32 %v20, %v20
  %v25 = vmul.f32 %v21, %v21
  %v26 = vmul.f32 %v22, %v22
  %v27 = vmul.f32 %v23, %v23
  %28 = vadd.xlane.f32.xlu0 %v24
  %v29 = vpop.xlane.xlu0 %28
  %30 = vadd.xlane.f32.xlu0 %v25
  %v31 = vpop.xlane.xlu0 %30
  %32 = vadd.xlane.f32.xlu0 %v26
  %v33 = vpop.xlane.xlu0 %32
  %34 = vadd.xlane.f32.xlu0 %v27
  %v35 = vpop.xlane.xlu0 %34
  %v36 = vrcp.pop 128.0
  %v37 = vmul.f32 128.0, %v36
  %v38 = vsub.f32 1.0, %v37
  %v39 = vmul.f32 %v36, %v38
  %v40 = vadd.f32 %v36, %v39
  %vm41 = vweird.f32 %v36
  %v42 = vsel %vm41, %v36, %v40
  %v43 = vmul.f32 %v29, %v42
  %v44 = vmul.f32 %v31, %v42
  %v45 = vmul.f32 %v33, %v42
  %v46 = vmul.f32 %v35, %v42
  %v47 = vadd.f32 %v43, 1e-05
  %v48 = vadd.f32 %v44, 1e-05
  %v49 = vadd.f32 %v45, 1e-05
  %v50 = vadd.f32 %v46, 1e-05
  %v51 = vrsqrt.pop %v47
  %v52 = vmul.f32 %v51, %v47
  %v53 = vmul.f32 %v52, %v51
  %v54 = vmul.f32 0.5, %v53
  %v55 = vsub.f32 1.5, %v54
  %v56 = vmul.f32 %v51, %v55
  %vm57 = vweird.f32 %v47
  %vm58 = vweird.f32 %v51
  %vm59 = vmor %vm57, %vm58
  %v60 = vsel %vm59, %v51, %v56
  %v61 = vrsqrt.pop %v48
  %v62 = vmul.f32 %v61, %v48
  %v63 = vmul.f32 %v62, %v61
  %v64 = vmul.f32 0.5, %v63
  %v65 = vsub.f32 1.5, %v64
  %v66 = vmul.f32 %v61, %v65
  %vm67 = vweird.f32 %v48
  %vm68 = vweird.f32 %v61
  %vm69 = vmor %vm67, %vm68
  %v70 = vsel %vm69, %v61, %v66
  %v71 = vrsqrt.pop %v49
  %v72 = vmul.f32 %v71, %v49
  %v73 = vmul.f32 %v72, %v71
  %v74 = vmul.f32 0.5, %v73
  %v75 = vsub.f32 1.5, %v74
  %v76 = vmul.f32 %v71, %v75
  %vm77 = vweird.f32 %v49
  %vm78 = vweird.f32 %v71
  %vm79 = vmor %vm77, %vm78
  %v80 = vsel %vm79, %v71, %v76
  %v81 = vrsqrt.pop %v50
  %v82 = vmul.f32 %v81, %v50
  %v83 = vmul.f32 %v82, %v81
  %v84 = vmul.f32 0.5, %v83
  %v85 = vsub.f32 1.5, %v84
  %v86 = vmul.f32 %v81, %v85
  %vm87 = vweird.f32 %v50
  %vm88 = vweird.f32 %v81
  %vm89 = vmor %vm87, %vm88
  %v90 = vsel %vm89, %v81, %v86
  %v91 = vmul.f32 %v20, %v60
  %v92 = vmul.f32 %v21, %v70
  %v93 = vmul.f32 %v22, %v80
  %v94 = vmul.f32 %v23, %v90
  %v95 = vld [vmem:[%s1] sm:$0x1]
  %v97 = vperm.slane %v95, 0
  %v99 = vmul.f32 %v91, %v97
  %v100 = vmul.f32 %v92, %v97
  %v101 = vmul.f32 %v93, %v97
  %v102 = vmul.f32 %v94, %v97
  %v103 = vpack.c.bf16 %v100, %v99
  %v104 = vpack.c.bf16 %v102, %v101
  %v105 = vld [vmem:[%s2] sm:$0xff]
  %v106 = vld [vmem:[%s2 + $0x8] sm:$0xff]
  %v107 = vld [vmem:[%s2 + $0x10] sm:$0xff]
  %v108 = vld [vmem:[%s2 + $0x18] sm:$0xff]
  %v109 = vld [vmem:[%s2 + $0x20] sm:$0xff]
  %v110 = vld [vmem:[%s2 + $0x28] sm:$0xff]
  %v111 = vld [vmem:[%s2 + $0x30] sm:$0xff]
  %v112 = vld [vmem:[%s2 + $0x38] sm:$0xff]
  %v113 = vld [vmem:[%s2 + $0x40] sm:$0xff]
  %v114 = vld [vmem:[%s2 + $0x48] sm:$0xff]
  %v115 = vld [vmem:[%s2 + $0x50] sm:$0xff]
  %v116 = vld [vmem:[%s2 + $0x58] sm:$0xff]
  %v117 = vld [vmem:[%s2 + $0x60] sm:$0xff]
  %v118 = vld [vmem:[%s2 + $0x68] sm:$0xff]
  %v119 = vld [vmem:[%s2 + $0x70] sm:$0xff]
  %v120 = vld [vmem:[%s2 + $0x78] sm:$0xff]
  %v137 = vunpack.c.l.b16 %v105
  %v138 = vunpack.c.h.b16 %v105
  %v139 = vunpack.c.l.b16 %v106
  %v140 = vunpack.c.h.b16 %v106
  %v141 = vunpack.c.l.b16 %v107
  %v142 = vunpack.c.h.b16 %v107
  %v143 = vunpack.c.l.b16 %v108
  %v144 = vunpack.c.h.b16 %v108
  %v145 = vunpack.c.l.b16 %v109
  %v146 = vunpack.c.h.b16 %v109
  %v147 = vunpack.c.l.b16 %v110
  %v148 = vunpack.c.h.b16 %v110
  %v149 = vunpack.c.l.b16 %v111
  %v150 = vunpack.c.h.b16 %v111
  %v151 = vunpack.c.l.b16 %v112
  %v152 = vunpack.c.h.b16 %v112
  %v153 = vunpack.c.l.b16 %v113
  %v154 = vunpack.c.h.b16 %v113
  %v155 = vunpack.c.l.b16 %v114
  %v156 = vunpack.c.h.b16 %v114
  %v157 = vunpack.c.l.b16 %v115
  %v158 = vunpack.c.h.b16 %v115
  %v159 = vunpack.c.l.b16 %v116
  %v160 = vunpack.c.h.b16 %v116
  %v161 = vunpack.c.l.b16 %v117
  %v162 = vunpack.c.h.b16 %v117
  %v163 = vunpack.c.l.b16 %v118
  %v164 = vunpack.c.h.b16 %v118
  %v165 = vunpack.c.l.b16 %v119
  %v166 = vunpack.c.h.b16 %v119
  %v167 = vunpack.c.l.b16 %v120
  %v168 = vunpack.c.h.b16 %v120
  %v169 = vpack.c.b16 %v139, %v137
  %v170 = vpack.c.b16 %v140, %v138
  %v171 = vpack.c.b16 %v143, %v141
  %v172 = vpack.c.b16 %v144, %v142
  %v173 = vpack.c.b16 %v147, %v145
  %v174 = vpack.c.b16 %v148, %v146
  %v175 = vpack.c.b16 %v151, %v149
  %v176 = vpack.c.b16 %v152, %v150
  %v177 = vpack.c.b16 %v155, %v153
  %v178 = vpack.c.b16 %v156, %v154
  %v179 = vpack.c.b16 %v159, %v157
  %v180 = vpack.c.b16 %v160, %v158
  %v181 = vpack.c.b16 %v163, %v161
  %v182 = vpack.c.b16 %v164, %v162
  %v183 = vpack.c.b16 %v167, %v165
  %v184 = vpack.c.b16 %v168, %v166
  %201 = vmatpush.bf16.msra.mxu0 %v183
  %202 = vmatpush.bf16.msra.mxu0 %v181
  %203 = vmatpush.bf16.msra.mxu0 %v179
  %204 = vmatpush.bf16.msra.mxu0 %v177
  %205 = vmatpush.bf16.msra.mxu0 %v175
  %206 = vmatpush.bf16.msra.mxu0 %v173
  %207 = vmatpush.bf16.msra.mxu0 %v171
  %208 = vmatpush.bf16.msra.mxu0 %v169
  %209 = vmatmul.bf16.gmra.mxu0 %v103
  %v210 = vpop.f32.mrf.mxu0
  %v211 = vadd.f32 0.0, %v210
  %v212 = vpop.f32.mrf.mxu0
  %v213 = vadd.f32 0.0, %v212
  %214 = vmatmul.bf16.gmra.mxu0 %v104
  %v215 = vpop.f32.mrf.mxu0
  %v216 = vadd.f32 0.0, %v215
  %v217 = vpop.f32.mrf.mxu0
  %v218 = vadd.f32 0.0, %v217
  %219 = vdwg.mxu0
  %220 = vmatpush.bf16.msra.mxu0 %v184
  %221 = vmatpush.bf16.msra.mxu0 %v182
  %222 = vmatpush.bf16.msra.mxu0 %v180
  %223 = vmatpush.bf16.msra.mxu0 %v178
  %224 = vmatpush.bf16.msra.mxu0 %v176
  %225 = vmatpush.bf16.msra.mxu0 %v174
  %226 = vmatpush.bf16.msra.mxu0 %v172
  %227 = vmatpush.bf16.msra.mxu0 %v170
  %228 = vmatmul.bf16.gmra.mxu0 %v103
  %v229 = vpop.f32.mrf.mxu0
  %v230 = vadd.f32 0.0, %v229
  %v231 = vpop.f32.mrf.mxu0
  %v232 = vadd.f32 0.0, %v231
  %233 = vmatmul.bf16.gmra.mxu0 %v104
  %v234 = vpop.f32.mrf.mxu0
  %v235 = vadd.f32 0.0, %v234
  %v236 = vpop.f32.mrf.mxu0
  %v237 = vadd.f32 0.0, %v236
  %238 = vdwg.mxu0
  %v239 = vld [vmem:[%s3] sm:$0xff]
  %v240 = vld [vmem:[%s3 + $0x8] sm:$0xff]
  %v241 = vld [vmem:[%s3 + $0x10] sm:$0xff]
  %v242 = vld [vmem:[%s3 + $0x18] sm:$0xff]
  %v243 = vld [vmem:[%s3 + $0x20] sm:$0xff]
  %v244 = vld [vmem:[%s3 + $0x28] sm:$0xff]
  %v245 = vld [vmem:[%s3 + $0x30] sm:$0xff]
  %v246 = vld [vmem:[%s3 + $0x38] sm:$0xff]
  %v247 = vld [vmem:[%s3 + $0x40] sm:$0xff]
  %v248 = vld [vmem:[%s3 + $0x48] sm:$0xff]
  %v249 = vld [vmem:[%s3 + $0x50] sm:$0xff]
  %v250 = vld [vmem:[%s3 + $0x58] sm:$0xff]
  %v251 = vld [vmem:[%s3 + $0x60] sm:$0xff]
  %v252 = vld [vmem:[%s3 + $0x68] sm:$0xff]
  %v253 = vld [vmem:[%s3 + $0x70] sm:$0xff]
  %v254 = vld [vmem:[%s3 + $0x78] sm:$0xff]
  %v271 = vunpack.c.l.b16 %v239
  %v272 = vunpack.c.h.b16 %v239
  %v273 = vunpack.c.l.b16 %v240
  %v274 = vunpack.c.h.b16 %v240
  %v275 = vunpack.c.l.b16 %v241
  %v276 = vunpack.c.h.b16 %v241
  %v277 = vunpack.c.l.b16 %v242
  %v278 = vunpack.c.h.b16 %v242
  %v279 = vunpack.c.l.b16 %v243
  %v280 = vunpack.c.h.b16 %v243
  %v281 = vunpack.c.l.b16 %v244
  %v282 = vunpack.c.h.b16 %v244
  %v283 = vunpack.c.l.b16 %v245
  %v284 = vunpack.c.h.b16 %v245
  %v285 = vunpack.c.l.b16 %v246
  %v286 = vunpack.c.h.b16 %v246
  %v287 = vunpack.c.l.b16 %v247
  %v288 = vunpack.c.h.b16 %v247
  %v289 = vunpack.c.l.b16 %v248
  %v290 = vunpack.c.h.b16 %v248
  %v291 = vunpack.c.l.b16 %v249
  %v292 = vunpack.c.h.b16 %v249
  %v293 = vunpack.c.l.b16 %v250
  %v294 = vunpack.c.h.b16 %v250
  %v295 = vunpack.c.l.b16 %v251
  %v296 = vunpack.c.h.b16 %v251
  %v297 = vunpack.c.l.b16 %v252
  %v298 = vunpack.c.h.b16 %v252
  %v299 = vunpack.c.l.b16 %v253
  %v300 = vunpack.c.h.b16 %v253
  %v301 = vunpack.c.l.b16 %v254
  %v302 = vunpack.c.h.b16 %v254
  %v303 = vpack.c.b16 %v273, %v271
  %v304 = vpack.c.b16 %v274, %v272
  %v305 = vpack.c.b16 %v277, %v275
  %v306 = vpack.c.b16 %v278, %v276
  %v307 = vpack.c.b16 %v281, %v279
  %v308 = vpack.c.b16 %v282, %v280
  %v309 = vpack.c.b16 %v285, %v283
  %v310 = vpack.c.b16 %v286, %v284
  %v311 = vpack.c.b16 %v289, %v287
  %v312 = vpack.c.b16 %v290, %v288
  %v313 = vpack.c.b16 %v293, %v291
  %v314 = vpack.c.b16 %v294, %v292
  %v315 = vpack.c.b16 %v297, %v295
  %v316 = vpack.c.b16 %v298, %v296
  %v317 = vpack.c.b16 %v301, %v299
  %v318 = vpack.c.b16 %v302, %v300
  %335 = vmatpush.bf16.msra.mxu0 %v317
  %336 = vmatpush.bf16.msra.mxu0 %v315
  %337 = vmatpush.bf16.msra.mxu0 %v313
  %338 = vmatpush.bf16.msra.mxu0 %v311
  %339 = vmatpush.bf16.msra.mxu0 %v309
  %340 = vmatpush.bf16.msra.mxu0 %v307
  %341 = vmatpush.bf16.msra.mxu0 %v305
  %342 = vmatpush.bf16.msra.mxu0 %v303
  %343 = vmatmul.bf16.gmra.mxu0 %v103
  %v344 = vpop.f32.mrf.mxu0
  %v345 = vadd.f32 0.0, %v344
  %v346 = vpop.f32.mrf.mxu0
  %v347 = vadd.f32 0.0, %v346
  %348 = vmatmul.bf16.gmra.mxu0 %v104
  %v349 = vpop.f32.mrf.mxu0
  %v350 = vadd.f32 0.0, %v349
  %v351 = vpop.f32.mrf.mxu0
  %v352 = vadd.f32 0.0, %v351
  %353 = vdwg.mxu0
  %354 = vmatpush.bf16.msra.mxu0 %v318
  %355 = vmatpush.bf16.msra.mxu0 %v316
  %356 = vmatpush.bf16.msra.mxu0 %v314
  %357 = vmatpush.bf16.msra.mxu0 %v312
  %358 = vmatpush.bf16.msra.mxu0 %v310
  %359 = vmatpush.bf16.msra.mxu0 %v308
  %360 = vmatpush.bf16.msra.mxu0 %v306
  %361 = vmatpush.bf16.msra.mxu0 %v304
  %362 = vmatmul.bf16.gmra.mxu0 %v103
  %v363 = vpop.f32.mrf.mxu0
  %v364 = vadd.f32 0.0, %v363
  %v365 = vpop.f32.mrf.mxu0
  %v366 = vadd.f32 0.0, %v365
  %367 = vmatmul.bf16.gmra.mxu0 %v104
  %v368 = vpop.f32.mrf.mxu0
  %v369 = vadd.f32 0.0, %v368
  %v370 = vpop.f32.mrf.mxu0
  %v371 = vadd.f32 0.0, %v370
  %372 = vdwg.mxu0
  %v373 = vxor.u32 %v211, 2147483648
  %v374 = vxor.u32 %v230, 2147483648
  %v375 = vxor.u32 %v213, 2147483648
  %v376 = vxor.u32 %v232, 2147483648
  %v377 = vxor.u32 %v216, 2147483648
  %v378 = vxor.u32 %v235, 2147483648
  %v379 = vxor.u32 %v218, 2147483648
  %v380 = vxor.u32 %v237, 2147483648
  %v381 = vmul.f32 %v373, 1.442695
  %v382 = vpow.pop %v381
  %v383 = vmul.f32 %v374, 1.442695
  %v384 = vpow.pop %v383
  %v385 = vmul.f32 %v375, 1.442695
  %v386 = vpow.pop %v385
  %v387 = vmul.f32 %v376, 1.442695
  %v388 = vpow.pop %v387
  %v389 = vmul.f32 %v377, 1.442695
  %v390 = vpow.pop %v389
  %v391 = vmul.f32 %v378, 1.442695
  %v392 = vpow.pop %v391
  %v393 = vmul.f32 %v379, 1.442695
  %v394 = vpow.pop %v393
  %v395 = vmul.f32 %v380, 1.442695
  %v396 = vpow.pop %v395
  %v397 = vadd.f32 %v382, 1.0
  %v398 = vadd.f32 %v384, 1.0
  %v399 = vadd.f32 %v386, 1.0
  %v400 = vadd.f32 %v388, 1.0
  %v401 = vadd.f32 %v390, 1.0
  %v402 = vadd.f32 %v392, 1.0
  %v403 = vadd.f32 %v394, 1.0
  %v404 = vadd.f32 %v396, 1.0
  %v405 = vrcp.pop %v397
  %v406 = vmul.f32 %v397, %v405
  %v407 = vsub.f32 1.0, %v406
  %v408 = vmul.f32 %v405, %v407
  %v409 = vadd.f32 %v405, %v408
  %vm410 = vweird.f32 %v397
  %vm411 = vweird.f32 %v405
  %vm412 = vmor %vm410, %vm411
  %v413 = vsel %vm412, %v405, %v409
  %v414 = vand.u32 2147483647, %v397
  %vm415 = vcmp.eq.f32.partialorder %v414, 8.507059e+37
  %v416 = vand.u32 %v397, 2147483648
  %v417 = vor.u32 1.1754944e-38, %v416
  %v418 = vsel %vm415, %v417, %v413
  %v419 = vmul.f32 1.0, %v418
  %v420 = vrcp.pop %v398
  %v421 = vmul.f32 %v398, %v420
  %v422 = vsub.f32 1.0, %v421
  %v423 = vmul.f32 %v420, %v422
  %v424 = vadd.f32 %v420, %v423
  %vm425 = vweird.f32 %v398
  %vm426 = vweird.f32 %v420
  %vm427 = vmor %vm425, %vm426
  %v428 = vsel %vm427, %v420, %v424
  %v429 = vand.u32 2147483647, %v398
  %vm430 = vcmp.eq.f32.partialorder %v429, 8.507059e+37
  %v431 = vand.u32 %v398, 2147483648
  %v432 = vor.u32 1.1754944e-38, %v431
  %v433 = vsel %vm430, %v432, %v428
  %v434 = vmul.f32 1.0, %v433
  %v435 = vrcp.pop %v399
  %v436 = vmul.f32 %v399, %v435
  %v437 = vsub.f32 1.0, %v436
  %v438 = vmul.f32 %v435, %v437
  %v439 = vadd.f32 %v435, %v438
  %vm440 = vweird.f32 %v399
  %vm441 = vweird.f32 %v435
  %vm442 = vmor %vm440, %vm441
  %v443 = vsel %vm442, %v435, %v439
  %v444 = vand.u32 2147483647, %v399
  %vm445 = vcmp.eq.f32.partialorder %v444, 8.507059e+37
  %v446 = vand.u32 %v399, 2147483648
  %v447 = vor.u32 1.1754944e-38, %v446
  %v448 = vsel %vm445, %v447, %v443
  %v449 = vmul.f32 1.0, %v448
  %v450 = vrcp.pop %v400
  %v451 = vmul.f32 %v400, %v450
  %v452 = vsub.f32 1.0, %v451
  %v453 = vmul.f32 %v450, %v452
  %v454 = vadd.f32 %v450, %v453
  %vm455 = vweird.f32 %v400
  %vm456 = vweird.f32 %v450
  %vm457 = vmor %vm455, %vm456
  %v458 = vsel %vm457, %v450, %v454
  %v459 = vand.u32 2147483647, %v400
  %vm460 = vcmp.eq.f32.partialorder %v459, 8.507059e+37
  %v461 = vand.u32 %v400, 2147483648
  %v462 = vor.u32 1.1754944e-38, %v461
  %v463 = vsel %vm460, %v462, %v458
  %v464 = vmul.f32 1.0, %v463
  %v465 = vrcp.pop %v401
  %v466 = vmul.f32 %v401, %v465
  %v467 = vsub.f32 1.0, %v466
  %v468 = vmul.f32 %v465, %v467
  %v469 = vadd.f32 %v465, %v468
  %vm470 = vweird.f32 %v401
  %vm471 = vweird.f32 %v465
  %vm472 = vmor %vm470, %vm471
  %v473 = vsel %vm472, %v465, %v469
  %v474 = vand.u32 2147483647, %v401
  %vm475 = vcmp.eq.f32.partialorder %v474, 8.507059e+37
  %v476 = vand.u32 %v401, 2147483648
  %v477 = vor.u32 1.1754944e-38, %v476
  %v478 = vsel %vm475, %v477, %v473
  %v479 = vmul.f32 1.0, %v478
  %v480 = vrcp.pop %v402
  %v481 = vmul.f32 %v402, %v480
  %v482 = vsub.f32 1.0, %v481
  %v483 = vmul.f32 %v480, %v482
  %v484 = vadd.f32 %v480, %v483
  %vm485 = vweird.f32 %v402
  %vm486 = vweird.f32 %v480
  %vm487 = vmor %vm485, %vm486
  %v488 = vsel %vm487, %v480, %v484
  %v489 = vand.u32 2147483647, %v402
  %vm490 = vcmp.eq.f32.partialorder %v489, 8.507059e+37
  %v491 = vand.u32 %v402, 2147483648
  %v492 = vor.u32 1.1754944e-38, %v491
  %v493 = vsel %vm490, %v492, %v488
  %v494 = vmul.f32 1.0, %v493
  %v495 = vrcp.pop %v403
  %v496 = vmul.f32 %v403, %v495
  %v497 = vsub.f32 1.0, %v496
  %v498 = vmul.f32 %v495, %v497
  %v499 = vadd.f32 %v495, %v498
  %vm500 = vweird.f32 %v403
  %vm501 = vweird.f32 %v495
  %vm502 = vmor %vm500, %vm501
  %v503 = vsel %vm502, %v495, %v499
  %v504 = vand.u32 2147483647, %v403
  %vm505 = vcmp.eq.f32.partialorder %v504, 8.507059e+37
  %v506 = vand.u32 %v403, 2147483648
  %v507 = vor.u32 1.1754944e-38, %v506
  %v508 = vsel %vm505, %v507, %v503
  %v509 = vmul.f32 1.0, %v508
  %v510 = vrcp.pop %v404
  %v511 = vmul.f32 %v404, %v510
  %v512 = vsub.f32 1.0, %v511
  %v513 = vmul.f32 %v510, %v512
  %v514 = vadd.f32 %v510, %v513
  %vm515 = vweird.f32 %v404
  %vm516 = vweird.f32 %v510
  %vm517 = vmor %vm515, %vm516
  %v518 = vsel %vm517, %v510, %v514
  %v519 = vand.u32 2147483647, %v404
  %vm520 = vcmp.eq.f32.partialorder %v519, 8.507059e+37
  %v521 = vand.u32 %v404, 2147483648
  %v522 = vor.u32 1.1754944e-38, %v521
  %v523 = vsel %vm520, %v522, %v518
  %v524 = vmul.f32 1.0, %v523
  %v525 = vmul.f32 %v211, %v419
  %v526 = vmul.f32 %v230, %v434
  %v527 = vmul.f32 %v213, %v449
  %v528 = vmul.f32 %v232, %v464
  %v529 = vmul.f32 %v216, %v479
  %v530 = vmul.f32 %v235, %v494
  %v531 = vmul.f32 %v218, %v509
  %v532 = vmul.f32 %v237, %v524
  %v533 = vmul.f32 %v525, %v345
  %v534 = vmul.f32 %v526, %v364
  %v535 = vmul.f32 %v527, %v347
  %v536 = vmul.f32 %v528, %v366
  %v537 = vmul.f32 %v529, %v350
  %v538 = vmul.f32 %v530, %v369
  %v539 = vmul.f32 %v531, %v352
  %v540 = vmul.f32 %v532, %v371
  %v541 = vpack.c.bf16 %v535, %v533
  %v542 = vpack.c.bf16 %v536, %v534
  %v543 = vpack.c.bf16 %v539, %v537
  %v544 = vpack.c.bf16 %v540, %v538
  %v545 = vld [vmem:[%s4] sm:$0xf]
  %v546 = vld [vmem:[%s4 + $0x4] sm:$0xf]
  %v547 = vld [vmem:[%s4 + $0x8] sm:$0xf]
  %v548 = vld [vmem:[%s4 + $0xc] sm:$0xf]
  %v549 = vld [vmem:[%s4 + $0x10] sm:$0xf]
  %v550 = vld [vmem:[%s4 + $0x14] sm:$0xf]
  %v551 = vld [vmem:[%s4 + $0x18] sm:$0xf]
  %v552 = vld [vmem:[%s4 + $0x1c] sm:$0xf]
  %v553 = vld [vmem:[%s4 + $0x20] sm:$0xf]
  %v554 = vld [vmem:[%s4 + $0x24] sm:$0xf]
  %v555 = vld [vmem:[%s4 + $0x28] sm:$0xf]
  %v556 = vld [vmem:[%s4 + $0x2c] sm:$0xf]
  %v557 = vld [vmem:[%s4 + $0x30] sm:$0xf]
  %v558 = vld [vmem:[%s4 + $0x34] sm:$0xf]
  %v559 = vld [vmem:[%s4 + $0x38] sm:$0xf]
  %v560 = vld [vmem:[%s4 + $0x3c] sm:$0xf]
  %v561 = vld [vmem:[%s4 + $0x40] sm:$0xf]
  %v562 = vld [vmem:[%s4 + $0x44] sm:$0xf]
  %v563 = vld [vmem:[%s4 + $0x48] sm:$0xf]
  %v564 = vld [vmem:[%s4 + $0x4c] sm:$0xf]
  %v565 = vld [vmem:[%s4 + $0x50] sm:$0xf]
  %v566 = vld [vmem:[%s4 + $0x54] sm:$0xf]
  %v567 = vld [vmem:[%s4 + $0x58] sm:$0xf]
  %v568 = vld [vmem:[%s4 + $0x5c] sm:$0xf]
  %v569 = vld [vmem:[%s4 + $0x60] sm:$0xf]
  %v570 = vld [vmem:[%s4 + $0x64] sm:$0xf]
  %v571 = vld [vmem:[%s4 + $0x68] sm:$0xf]
  %v572 = vld [vmem:[%s4 + $0x6c] sm:$0xf]
  %v573 = vld [vmem:[%s4 + $0x70] sm:$0xf]
  %v574 = vld [vmem:[%s4 + $0x74] sm:$0xf]
  %v575 = vld [vmem:[%s4 + $0x78] sm:$0xf]
  %v576 = vld [vmem:[%s4 + $0x7c] sm:$0xf]
  %v609 = vunpack.c.l.b16 %v545
  %v610 = vunpack.c.l.b16 %v546
  %v611 = vunpack.c.l.b16 %v547
  %v612 = vunpack.c.l.b16 %v548
  %v613 = vunpack.c.l.b16 %v549
  %v614 = vunpack.c.l.b16 %v550
  %v615 = vunpack.c.l.b16 %v551
  %v616 = vunpack.c.l.b16 %v552
  %v617 = vunpack.c.l.b16 %v553
  %v618 = vunpack.c.l.b16 %v554
  %v619 = vunpack.c.l.b16 %v555
  %v620 = vunpack.c.l.b16 %v556
  %v621 = vunpack.c.l.b16 %v557
  %v622 = vunpack.c.l.b16 %v558
  %v623 = vunpack.c.l.b16 %v559
  %v624 = vunpack.c.l.b16 %v560
  %v625 = vunpack.c.l.b16 %v561
  %v626 = vunpack.c.l.b16 %v562
  %v627 = vunpack.c.l.b16 %v563
  %v628 = vunpack.c.l.b16 %v564
  %v629 = vunpack.c.l.b16 %v565
  %v630 = vunpack.c.l.b16 %v566
  %v631 = vunpack.c.l.b16 %v567
  %v632 = vunpack.c.l.b16 %v568
  %v633 = vunpack.c.l.b16 %v569
  %v634 = vunpack.c.l.b16 %v570
  %v635 = vunpack.c.l.b16 %v571
  %v636 = vunpack.c.l.b16 %v572
  %v637 = vunpack.c.l.b16 %v573
  %v638 = vunpack.c.l.b16 %v574
  %v639 = vunpack.c.l.b16 %v575
  %v640 = vunpack.c.l.b16 %v576
  %v641 = vpack.c.b16 %v610, %v609
  %v642 = vpack.c.b16 %v612, %v611
  %v643 = vpack.c.b16 %v614, %v613
  %v644 = vpack.c.b16 %v616, %v615
  %v645 = vpack.c.b16 %v618, %v617
  %v646 = vpack.c.b16 %v620, %v619
  %v647 = vpack.c.b16 %v622, %v621
  %v648 = vpack.c.b16 %v624, %v623
  %v649 = vpack.c.b16 %v626, %v625
  %v650 = vpack.c.b16 %v628, %v627
  %v651 = vpack.c.b16 %v630, %v629
  %v652 = vpack.c.b16 %v632, %v631
  %v653 = vpack.c.b16 %v634, %v633
  %v654 = vpack.c.b16 %v636, %v635
  %v655 = vpack.c.b16 %v638, %v637
  %v656 = vpack.c.b16 %v640, %v639
  %673 = vmatpush.bf16.msra.mxu0 %v648
  %674 = vmatpush.bf16.msra.mxu0 %v647
  %675 = vmatpush.bf16.msra.mxu0 %v646
  %676 = vmatpush.bf16.msra.mxu0 %v645
  %677 = vmatpush.bf16.msra.mxu0 %v644
  %678 = vmatpush.bf16.msra.mxu0 %v643
  %679 = vmatpush.bf16.msra.mxu0 %v642
  %680 = vmatpush.bf16.msra.mxu0 %v641
  %681 = vmatmul.bf16.gmra.mxu0 %v541
  %v682 = vpop.f32.mrf.mxu0
  %v683 = vadd.f32 0.0, %v682
  %v684 = vpop.f32.mrf.mxu0
  %v685 = vadd.f32 0.0, %v684
  %686 = vmatmul.bf16.gmra.mxu0 %v543
  %v687 = vpop.f32.mrf.mxu0
  %v688 = vadd.f32 0.0, %v687
  %v689 = vpop.f32.mrf.mxu0
  %v690 = vadd.f32 0.0, %v689
  %691 = vdwg.mxu0
  %692 = vmatpush.bf16.msra.mxu0 %v656
  %693 = vmatpush.bf16.msra.mxu0 %v655
  %694 = vmatpush.bf16.msra.mxu0 %v654
  %695 = vmatpush.bf16.msra.mxu0 %v653
  %696 = vmatpush.bf16.msra.mxu0 %v652
  %697 = vmatpush.bf16.msra.mxu0 %v651
  %698 = vmatpush.bf16.msra.mxu0 %v650
  %699 = vmatpush.bf16.msra.mxu0 %v649
  %700 = vmatmul.bf16.gmra.mxu0 %v542
  %v701 = vpop.f32.mrf.mxu0
  %v702 = vadd.f32 %v683, %v701
  %v703 = vpop.f32.mrf.mxu0
  %v704 = vadd.f32 %v685, %v703
  %705 = vmatmul.bf16.gmra.mxu0 %v544
  %v706 = vpop.f32.mrf.mxu0
  %v707 = vadd.f32 %v688, %v706
  %v708 = vpop.f32.mrf.mxu0
  %v709 = vadd.f32 %v690, %v708
  %710 = vdwg.mxu0
  %v711 = vadd.f32 %v20, %v702
  %v712 = vadd.f32 %v21, %v704
  %v713 = vadd.f32 %v22, %v707
  %v714 = vadd.f32 %v23, %v709
  %715 = vst [vmem:[%s5] sm:$0xff] %v711
  %716 = vst [vmem:[%s5 + $0x8] sm:$0xff] %v712
  %717 = vst [vmem:[%s5 + $0x10] sm:$0xff] %v713
  %718 = vst [vmem:[%s5 + $0x18] sm:$0xff] %v714
  // Predicated region
  $region22: #{glm_transformer.12} parent=0 // pred_check
    _
  $region23: #{glm_transformer.12} parent=0 // pred_check_branch
    %720 = sbr.rel (0) target = $region25
  $region24: #{glm_transformer.12} parent=0 // pred_region
    _
  $region25: #{glm_transformer.12} parent=0 // pred_fallthru
    _
  // Predicated region
  $region26: #{glm_transformer.12} parent=0 // pred_check
    _
  $region27: #{glm_transformer.12} parent=0 // pred_check_branch
    %722 = sbr.rel (0) target = $region29
  $region28: #{glm_transformer.12} parent=0 // pred_region
    _
  $region29: #{glm_transformer.12} parent=0 // pred_fallthru
    _

// kernel: glm_transformer.17
$region0: #{glm_transformer.17}
  #allocation0 [shape = 'u32[]', space=smem, size = 0x4, offset = 0x4, fixed_abs, tag = 'smem constant byte address 0x4 - core index']
  #allocation1 [shape = 'u32[72,128]{1,0:T(1,128)}', space=vmem, size = 0x9000, scoped, tag = 'internal scratch']
  %s0 = inlined_call_operand.vmem [shape: f32[32,128], index: 0, kind: input, shape index: {}]
  %s1 = inlined_call_operand.vmem [shape: f32[1,128], index: 1, kind: input, shape index: {}]
  %s2 = inlined_call_operand.vmem [shape: f32[32,128], index: 2, kind: output, shape index: {}]
  %s3 = sld [smem:[#allocation0]]
  $region18: #{glm_transformer.17} parent=0
    _
  %s5 = ssub.s32 1, %s3
  %s6 = scalar_select 0, %s5, %s3
  // Predicated region
  $region2: #{glm_transformer.17} parent=0 // pred_check
    _
  $region3: #{glm_transformer.17} parent=0 // pred_check_branch
    %8 = sbr.rel (0) target = $region5
  $region4: #{glm_transformer.17} parent=0 // pred_region
    _
  $region5: #{glm_transformer.17} parent=0 // pred_fallthru
    _
  // Predicated region
  $region6: #{glm_transformer.17} parent=0 // pred_check
    _
  $region7: #{glm_transformer.17} parent=0 // pred_check_branch
    %10 = sbr.rel (0) target = $region9
  $region8: #{glm_transformer.17} parent=0 // pred_region
    _
  $region9: #{glm_transformer.17} parent=0 // pred_fallthru
    _
  %v11 = vld [vmem:[%s0] sm:$0xff]
  %v12 = vld [vmem:[%s0 + $0x8] sm:$0xff]
  %v13 = vld [vmem:[%s0 + $0x10] sm:$0xff]
  %v14 = vld [vmem:[%s0 + $0x18] sm:$0xff]
  %v15 = vmul.f32 %v11, %v11
  %v16 = vmul.f32 %v12, %v12
  %v17 = vmul.f32 %v13, %v13
  %v18 = vmul.f32 %v14, %v14
  %19 = vadd.xlane.f32.xlu0 %v15
  %v20 = vpop.xlane.xlu0 %19
  %21 = vadd.xlane.f32.xlu0 %v16
  %v22 = vpop.xlane.xlu0 %21
  %23 = vadd.xlane.f32.xlu0 %v17
  %v24 = vpop.xlane.xlu0 %23
  %25 = vadd.xlane.f32.xlu0 %v18
  %v26 = vpop.xlane.xlu0 %25
  %v27 = vrcp.pop 128.0
  %v28 = vmul.f32 128.0, %v27
  %v29 = vsub.f32 1.0, %v28
  %v30 = vmul.f32 %v27, %v29
  %v31 = vadd.f32 %v27, %v30
  %vm32 = vweird.f32 %v27
  %v33 = vsel %vm32, %v27, %v31
  %v34 = vmul.f32 %v20, %v33
  %v35 = vmul.f32 %v22, %v33
  %v36 = vmul.f32 %v24, %v33
  %v37 = vmul.f32 %v26, %v33
  %v38 = vld [vmem:[%s1] sm:$0x1]
  %v39 = vadd.f32 %v34, 1e-05
  %v40 = vadd.f32 %v35, 1e-05
  %v41 = vadd.f32 %v36, 1e-05
  %v42 = vadd.f32 %v37, 1e-05
  %v43 = vrsqrt.pop %v39
  %v44 = vmul.f32 %v43, %v39
  %v45 = vmul.f32 %v44, %v43
  %v46 = vmul.f32 0.5, %v45
  %v47 = vsub.f32 1.5, %v46
  %v48 = vmul.f32 %v43, %v47
  %vm49 = vweird.f32 %v39
  %vm50 = vweird.f32 %v43
  %vm51 = vmor %vm49, %vm50
  %v52 = vsel %vm51, %v43, %v48
  %v53 = vrsqrt.pop %v40
  %v54 = vmul.f32 %v53, %v40
  %v55 = vmul.f32 %v54, %v53
  %v56 = vmul.f32 0.5, %v55
  %v57 = vsub.f32 1.5, %v56
  %v58 = vmul.f32 %v53, %v57
  %vm59 = vweird.f32 %v40
  %vm60 = vweird.f32 %v53
  %vm61 = vmor %vm59, %vm60
  %v62 = vsel %vm61, %v53, %v58
  %v63 = vrsqrt.pop %v41
  %v64 = vmul.f32 %v63, %v41
  %v65 = vmul.f32 %v64, %v63
  %v66 = vmul.f32 0.5, %v65
  %v67 = vsub.f32 1.5, %v66
  %v68 = vmul.f32 %v63, %v67
  %vm69 = vweird.f32 %v41
  %vm70 = vweird.f32 %v63
  %vm71 = vmor %vm69, %vm70
  %v72 = vsel %vm71, %v63, %v68
  %v73 = vrsqrt.pop %v42
  %v74 = vmul.f32 %v73, %v42
  %v75 = vmul.f32 %v74, %v73
  %v76 = vmul.f32 0.5, %v75
  %v77 = vsub.f32 1.5, %v76
  %v78 = vmul.f32 %v73, %v77
  %vm79 = vweird.f32 %v42
  %vm80 = vweird.f32 %v73
  %vm81 = vmor %vm79, %vm80
  %v82 = vsel %vm81, %v73, %v78
  %v83 = vmul.f32 %v11, %v52
  %v84 = vmul.f32 %v12, %v62
  %v85 = vmul.f32 %v13, %v72
  %v86 = vmul.f32 %v14, %v82
  %v88 = vperm.slane %v38, 0
  %v90 = vmul.f32 %v88, %v83
  %v91 = vmul.f32 %v88, %v84
  %v92 = vmul.f32 %v88, %v85
  %v93 = vmul.f32 %v88, %v86
  %94 = vst [vmem:[%s2] sm:$0xff] %v90
  %95 = vst [vmem:[%s2 + $0x8] sm:$0xff] %v91
  %96 = vst [vmem:[%s2 + $0x10] sm:$0xff] %v92
  %97 = vst [vmem:[%s2 + $0x18] sm:$0xff] %v93
  // Predicated region
  $region10: #{glm_transformer.17} parent=0 // pred_check
    _
  $region11: #{glm_transformer.17} parent=0 // pred_check_branch
    %99 = sbr.rel (0) target = $region13
  $region12: #{glm_transformer.17} parent=0 // pred_region
    _
  $region13: #{glm_transformer.17} parent=0 // pred_fallthru
    _
  // Predicated region
  $region14: #{glm_transformer.17} parent=0 // pred_check
    _
  $region15: #{glm_transformer.17} parent=0 // pred_check_branch
    %101 = sbr.rel (0) target = $region17
  $region16: #{glm_transformer.17} parent=0 // pred_region
    _
  $region17: #{glm_transformer.17} parent=0 // pred_fallthru
    _

</llo_original>
